<compile_context>
chip_gen: v5e
topology: v5e:2x2
jax: 0.10.0
libtpu: 0.0.40
codegen_flags: <defaults>
</compile_context>

<pallas_src>
import functools
import math

import jax
import jax.numpy as jnp
from jax.experimental import pallas as pl
from jax.experimental.pallas import tpu as pltpu

N_LAYERS = 5          # N in the reference module
INPUT_SIZE = 16       # cfg.INPUT_SIZE
FH = 4                # cfg.FH


def _vmem():
    return pl.BlockSpec(memory_space=pltpu.MemorySpace.VMEM)


# ----------------------------- fused Pallas kernel ----------------------------

def _fused_forward_kernel(xf_ref, ts_ref,
                          emb_w_ref, emb_b_ref,
                          stw_h_ref, stw_ts_ref, st_b_ref,
                          ln_g_ref, ln_b_ref,
                          w_all_ref, b_all_ref,
                          e_ref, mask_ref,
                          dec_w_ref, dec_b_ref,
                          o_ref):
    H = ln_g_ref.shape[-1]
    L = w_all_ref.shape[0]

    # 1) mlp_embedder
    h = (jnp.dot(xf_ref[...], emb_w_ref[...], preferred_element_type=jnp.float32)
         + emb_b_ref[...])

    # 2) SpatioTemporalEncoder stand-in: Linear(concat([h, t, s])) as split matmuls
    # TODO(synk): SpatioTemporalEncoder source not provided; using concat->Linear stand-in.
    h = (jnp.dot(h, stw_h_ref[...], preferred_element_type=jnp.float32)
         + jnp.dot(ts_ref[...], stw_ts_ref[...], preferred_element_type=jnp.float32)
         + st_b_ref[...])

    # 3) LayerNorm (biased var, eps=1e-5, like torch) + ReLU
    mean = jnp.mean(h, axis=-1, keepdims=True)
    var = jnp.mean((h - mean) ** 2, axis=-1, keepdims=True)
    h = (h - mean) * jax.lax.rsqrt(var + 1e-5) * ln_g_ref[...] + ln_b_ref[...]
    h = jnp.maximum(h, 0.0)

    mask = mask_ref[...]                          # (N, N) in {0., 1.}
    bias = (mask - 1.0) * jnp.float32(1e30)       # additive mask, loop-invariant

    # 4) 5x TransformerConv (heads=1) + residual + relu, all in VMEM
    for l in range(L):
        # one fused [H, 4H] matmul -> lane-dense 128-wide output
        qkvs = (jnp.dot(h, w_all_ref[l], preferred_element_type=jnp.float32)
                + b_all_ref[l])
        q = qkvs[:, 0 * H:1 * H]                  # already scaled by 1/sqrt(H)
        k = qkvs[:, 1 * H:2 * H]
        v = qkvs[:, 2 * H:3 * H]
        skip = qkvs[:, 3 * H:4 * H]

        e = e_ref[l]                              # (N, N, H): e[i, j] = W_e @ edge_attr(j->i)

        # score_ij = q_i . (k_j + e_ij): dense part on MXU + batched edge correction
        score = jax.lax.dot_general(q, k, (((1,), (1,)), ((), ())),
                                    preferred_element_type=jnp.float32)
        score = score + jnp.einsum('ibh,ijh->ibj', q[:, None, :], e,
                                   preferred_element_type=jnp.float32)[:, 0, :]

        s_b = score + bias
        m = jnp.max(s_b, axis=-1, keepdims=True)
        p = jnp.exp(s_b - m) * mask
        denom = jnp.sum(p, axis=-1, keepdims=True)
        alpha = p * pl.reciprocal(jnp.maximum(denom, 1e-30), approx=True)

        # agg_i = sum_j alpha_ij * (v_j + e_ij): MXU matmul + batched edge correction
        agg = jnp.dot(alpha, v, preferred_element_type=jnp.float32)
        agg = agg + jnp.einsum('ibj,ijh->ibh', alpha[:, None, :], e,
                               preferred_element_type=jnp.float32)[:, 0, :]

        h = h + jnp.maximum(agg + skip, 0.0)      # residual + relu (module level)

    # 5) mlp_decoder (padded to lane-dense width; sliced in the wrapper)
    o_ref[...] = (jnp.dot(h, dec_w_ref[...], preferred_element_type=jnp.float32)
                  + dec_b_ref[...])


# ----------------------------- param packing ---------------------------------

def pack_params(p):
    """Fuse per-layer q/k/v/skip weights, fold 1/sqrt(H), pad decoder to 128 lanes."""
    H = p["emb_w"].shape[1]
    scale = 1.0 / math.sqrt(H)
    w_all, b_all, we_all = [], [], []
    for lp in p["convs"]:
        w_all.append(jnp.concatenate(
            [lp["wq"] * scale, lp["wk"], lp["wv"], lp["wskip"]], axis=1))   # (H, 4H)
        b_all.append(jnp.concatenate(
            [lp["bq"] * scale, lp["bk"], lp["bv"], lp["bskip"]], axis=0))   # (4H,)
        we_all.append(lp["we"])                                             # (E_dim, H)
    w_all = jnp.stack(w_all)                        # (L, H, 4H)
    b_all = jnp.stack(b_all)[:, None, :]            # (L, 1, 4H)
    we_all = jnp.concatenate(we_all, axis=1)        # (edge_dim, L*H)

    out_dim = p["dec_w"].shape[1]
    pad = ((out_dim + 127) // 128) * 128
    dec_w = jnp.zeros((H, pad), jnp.float32).at[:, :out_dim].set(p["dec_w"])
    dec_b = jnp.zeros((1, pad), jnp.float32).at[:, :out_dim].set(p["dec_b"])

    return {
        "emb_w": p["emb_w"], "emb_b": p["emb_b"][None, :],
        "stw_h": p["st_w"][:H], "stw_ts": p["st_w"][H:], "st_b": p["st_b"][None, :],
        "ln_g": p["ln_g"][None, :], "ln_b": p["ln_b"][None, :],
        "w_all": w_all, "b_all": b_all, "we_all": we_all,
        "dec_w": dec_w, "dec_b": dec_b,
    }


# ----------------------------- model forward ---------------------------------

def transformer_gnn_forward(packed, x, edge_index, edge_attr, t, s, *,
                            out_features, fh):
    Nn = x.shape[0]
    H = packed["emb_w"].shape[1]
    L = packed["w_all"].shape[0]

    xf = x.reshape(Nn, -1)                          # (N, F*INPUT_SIZE)
    ts = jnp.concatenate([t, s], axis=-1)           # (N, t_dim + s_dim)

    src = edge_index[0]   # j (source)
    dst = edge_index[1]   # i (target)
    mask = jnp.zeros((Nn, Nn), jnp.float32).at[dst, src].set(1.0)

    # lin_edge for all L layers in one matmul + one dense scatter (PyG lin_edge: bias=False)
    # TODO(synk): duplicate (dst, src) edges collapse in the dense scatter; PyG softmaxes
    # parallel edges separately, so multigraph results would diverge.
    e_flat = edge_attr @ packed["we_all"]                                    # (E, L*H)
    e_dense = jnp.zeros((Nn, Nn, L * H), jnp.float32).at[dst, src, :].set(e_flat)
    e_dense = e_dense.reshape(Nn, Nn, L, H).transpose(2, 0, 1, 3)            # (L, N, N, H)

    out_pad = packed["dec_w"].shape[1]
    out = pl.pallas_call(
        _fused_forward_kernel,
        out_shape=jax.ShapeDtypeStruct((Nn, out_pad), jnp.float32),
        in_specs=[_vmem()] * 15,
        out_specs=_vmem(),
    )(xf, ts,
      packed["emb_w"], packed["emb_b"],
      packed["stw_h"], packed["stw_ts"], packed["st_b"],
      packed["ln_g"], packed["ln_b"],
      packed["w_all"], packed["b_all"],
      e_dense, mask,
      packed["dec_w"], packed["dec_b"])

    out_dim = out_features * fh
    return out[:, :out_dim].reshape(Nn, out_features, fh)


# ----------------------------- param init ------------------------------------

def init_params(key, input_features, output_features, edge_dim, hidden_dim,
                input_t_dim, input_s_dim):
    def nrm(k, shape, scale=0.1):
        return scale * jax.random.normal(k, shape, dtype=jnp.float32)

    keys = jax.random.split(key, 8 + 10 * N_LAYERS)
    ki = iter(keys)
    in_dim = input_features * INPUT_SIZE
    params = {
        "emb_w": nrm(next(ki), (in_dim, hidden_dim)),
        "emb_b": nrm(next(ki), (hidden_dim,)),
        "st_w": nrm(next(ki), (hidden_dim + input_t_dim + input_s_dim, hidden_dim)),
        "st_b": nrm(next(ki), (hidden_dim,)),
        "ln_g": jnp.ones((hidden_dim,), jnp.float32),
        "ln_b": jnp.zeros((hidden_dim,), jnp.float32),
        "dec_w": nrm(next(ki), (hidden_dim, output_features * FH)),
        "dec_b": nrm(next(ki), (output_features * FH,)),
        "convs": [],
    }
    for _ in range(N_LAYERS):
        params["convs"].append({
            "wq": nrm(next(ki), (hidden_dim, hidden_dim)),
            "bq": nrm(next(ki), (hidden_dim,)),
            "wk": nrm(next(ki), (hidden_dim, hidden_dim)),
            "bk": nrm(next(ki), (hidden_dim,)),
            "wv": nrm(next(ki), (hidden_dim, hidden_dim)),
            "bv": nrm(next(ki), (hidden_dim,)),
            "wskip": nrm(next(ki), (hidden_dim, hidden_dim)),
            "bskip": nrm(next(ki), (hidden_dim,)),
            "we": nrm(next(ki), (edge_dim, hidden_dim)),          # lin_edge, bias=False (PyG default)
        })
    return params


# ----------------------------- main -------------------------------------------

if __name__ == "__main__":
    num_nodes = 8
    input_features = 4
    output_features = 2
    edge_dim = 8
    hidden_dim = 32
    input_t_dim = 4
    input_s_dim = 6

    key = jax.random.PRNGKey(0)
    k_param, k_x, k_e, k_t, k_s = jax.random.split(key, 5)

    params = init_params(k_param, input_features, output_features, edge_dim,
                         hidden_dim, input_t_dim, input_s_dim)
    packed = pack_params(params)

    # inputs
    x = jax.random.normal(k_x, (num_nodes, input_features, INPUT_SIZE), dtype=jnp.float32)
    t = jax.random.normal(k_t, (num_nodes, input_t_dim), dtype=jnp.float32)
    s = jax.random.normal(k_s, (num_nodes, input_s_dim), dtype=jnp.float32)

    # ring graph + self loops: every node has in-edges from (i-1)%N, (i+1)%N, i
    idx = jnp.arange(num_nodes)
    src = jnp.concatenate([idx, (idx - 1) % num_nodes, (idx + 1) % num_nodes])
    dst = jnp.concatenate([idx, idx, idx])
    edge_index = jnp.stack([src, dst]).astype(jnp.int32)          # [2, E], row0=src, row1=dst
    edge_attr = jax.random.normal(k_e, (edge_index.shape[1], edge_dim), dtype=jnp.float32)

    fwd = jax.jit(functools.partial(transformer_gnn_forward,
                                    out_features=output_features, fh=FH))
    out = fwd(packed, x, edge_index, edge_attr, t, s)
    out = jax.block_until_ready(out)

    assert out.shape == (num_nodes, output_features, FH), out.shape
    assert bool(jnp.all(jnp.isfinite(out)))
    print("KERNEL_OK")
</pallas_src>

<mosaic_0001>
module attributes {stable_mosaic.version = 11 : i64} {
  func.func @_fused_forward_kernel(%arg0: memref<8x64xf32, #tpu.memory_space<vmem>>, %arg1: memref<8x10xf32, #tpu.memory_space<vmem>>, %arg2: memref<64x32xf32, #tpu.memory_space<vmem>>, %arg3: memref<1x32xf32, #tpu.memory_space<vmem>>, %arg4: memref<32x32xf32, #tpu.memory_space<vmem>>, %arg5: memref<10x32xf32, #tpu.memory_space<vmem>>, %arg6: memref<1x32xf32, #tpu.memory_space<vmem>>, %arg7: memref<1x32xf32, #tpu.memory_space<vmem>>, %arg8: memref<1x32xf32, #tpu.memory_space<vmem>>, %arg9: memref<5x32x128xf32, #tpu.memory_space<vmem>>, %arg10: memref<5x1x128xf32, #tpu.memory_space<vmem>>, %arg11: memref<5x8x8x32xf32, #tpu.memory_space<vmem>>, %arg12: memref<8x8xf32, #tpu.memory_space<vmem>>, %arg13: memref<32x128xf32, #tpu.memory_space<vmem>>, %arg14: memref<1x128xf32, #tpu.memory_space<vmem>>, %arg15: memref<8x128xf32, #tpu.memory_space<vmem>>) attributes {dimension_semantics = [], scalar_prefetch = 0 : i64, scratch_operands = 0 : i64, tpu.core_type = #tpu.core_type<tc>} {
    %c0 = arith.constant 0 : index
    %c0_0 = arith.constant 0 : index
    %0 = vector.load %arg0[%c0, %c0_0] : memref<8x64xf32, #tpu.memory_space<vmem>>, vector<8x64xf32>
    %c0_1 = arith.constant 0 : index
    %c0_2 = arith.constant 0 : index
    %1 = vector.load %arg2[%c0_1, %c0_2] : memref<64x32xf32, #tpu.memory_space<vmem>>, vector<64x32xf32>
    %cst = arith.constant dense<0.000000e+00> : vector<8x32xf32>
    %2 = tpu.matmul %0, %1, %cst {dimension_numbers = #tpu.dot_dimension_numbers<[1], [0], [0], [1], [0, 0, 1, 1], [], []>} : vector<8x64xf32>, vector<64x32xf32>, vector<8x32xf32> -> vector<8x32xf32>
    %c0_3 = arith.constant 0 : index
    %c0_4 = arith.constant 0 : index
    %3 = vector.load %arg3[%c0_3, %c0_4] : memref<1x32xf32, #tpu.memory_space<vmem>>, vector<1x32xf32>
    %4 = vector.broadcast %3 : vector<1x32xf32> to vector<8x32xf32>
    %5 = arith.addf %2, %4 : vector<8x32xf32>
    %c0_5 = arith.constant 0 : index
    %c0_6 = arith.constant 0 : index
    %6 = vector.load %arg4[%c0_5, %c0_6] : memref<32x32xf32, #tpu.memory_space<vmem>>, vector<32x32xf32>
    %cst_7 = arith.constant dense<0.000000e+00> : vector<8x32xf32>
    %7 = tpu.matmul %5, %6, %cst_7 {dimension_numbers = #tpu.dot_dimension_numbers<[1], [0], [0], [1], [0, 0, 1, 1], [], []>} : vector<8x32xf32>, vector<32x32xf32>, vector<8x32xf32> -> vector<8x32xf32>
    %c0_8 = arith.constant 0 : index
    %c0_9 = arith.constant 0 : index
    %8 = vector.load %arg1[%c0_8, %c0_9] : memref<8x10xf32, #tpu.memory_space<vmem>>, vector<8x10xf32>
    %c0_10 = arith.constant 0 : index
    %c0_11 = arith.constant 0 : index
    %9 = vector.load %arg5[%c0_10, %c0_11] : memref<10x32xf32, #tpu.memory_space<vmem>>, vector<10x32xf32>
    %cst_12 = arith.constant dense<0.000000e+00> : vector<8x32xf32>
    %10 = tpu.matmul %8, %9, %cst_12 {dimension_numbers = #tpu.dot_dimension_numbers<[1], [0], [0], [1], [0, 0, 1, 1], [], []>} : vector<8x10xf32>, vector<10x32xf32>, vector<8x32xf32> -> vector<8x32xf32>
    %11 = arith.addf %7, %10 : vector<8x32xf32>
    %c0_13 = arith.constant 0 : index
    %c0_14 = arith.constant 0 : index
    %12 = vector.load %arg6[%c0_13, %c0_14] : memref<1x32xf32, #tpu.memory_space<vmem>>, vector<1x32xf32>
    %13 = vector.broadcast %12 : vector<1x32xf32> to vector<8x32xf32>
    %14 = arith.addf %11, %13 : vector<8x32xf32>
    %cst_15 = arith.constant dense<0.000000e+00> : vector<8xf32>
    %15 = vector.multi_reduction <add>, %14, %cst_15 [1] : vector<8x32xf32> to vector<8xf32>
    %16 = vector.shape_cast %15 : vector<8xf32> to vector<8x1xf32>
    %cst_16 = arith.constant 3.200000e+01 : f32
    %17 = vector.broadcast %cst_16 : f32 to vector<8x1xf32>
    %18 = arith.divf %16, %17 : vector<8x1xf32>
    %19 = vector.broadcast %18 : vector<8x1xf32> to vector<8x32xf32>
    %20 = arith.subf %14, %19 : vector<8x32xf32>
    %21 = arith.mulf %20, %20 : vector<8x32xf32>
    %cst_17 = arith.constant dense<0.000000e+00> : vector<8xf32>
    %22 = vector.multi_reduction <add>, %21, %cst_17 [1] : vector<8x32xf32> to vector<8xf32>
    %23 = vector.shape_cast %22 : vector<8xf32> to vector<8x1xf32>
    %cst_18 = arith.constant 3.200000e+01 : f32
    %24 = vector.broadcast %cst_18 : f32 to vector<8x1xf32>
    %25 = arith.divf %23, %24 : vector<8x1xf32>
    %26 = vector.broadcast %18 : vector<8x1xf32> to vector<8x32xf32>
    %27 = arith.subf %14, %26 : vector<8x32xf32>
    %cst_19 = arith.constant 9.99999974E-6 : f32
    %28 = vector.broadcast %cst_19 : f32 to vector<8x1xf32>
    %29 = arith.addf %25, %28 : vector<8x1xf32>
    %30 = math.rsqrt %29 : vector<8x1xf32>
    %31 = vector.broadcast %30 : vector<8x1xf32> to vector<8x32xf32>
    %32 = arith.mulf %27, %31 : vector<8x32xf32>
    %c0_20 = arith.constant 0 : index
    %c0_21 = arith.constant 0 : index
    %33 = vector.load %arg7[%c0_20, %c0_21] : memref<1x32xf32, #tpu.memory_space<vmem>>, vector<1x32xf32>
    %34 = vector.broadcast %33 : vector<1x32xf32> to vector<8x32xf32>
    %35 = arith.mulf %32, %34 : vector<8x32xf32>
    %c0_22 = arith.constant 0 : index
    %c0_23 = arith.constant 0 : index
    %36 = vector.load %arg8[%c0_22, %c0_23] : memref<1x32xf32, #tpu.memory_space<vmem>>, vector<1x32xf32>
    %37 = vector.broadcast %36 : vector<1x32xf32> to vector<8x32xf32>
    %38 = arith.addf %35, %37 : vector<8x32xf32>
    %cst_24 = arith.constant 0.000000e+00 : f32
    %39 = vector.broadcast %cst_24 : f32 to vector<8x32xf32>
    %40 = arith.maximumf %38, %39 : vector<8x32xf32>
    %c0_25 = arith.constant 0 : index
    %c0_26 = arith.constant 0 : index
    %41 = vector.load %arg12[%c0_25, %c0_26] : memref<8x8xf32, #tpu.memory_space<vmem>>, vector<8x8xf32>
    %cst_27 = arith.constant 1.000000e+00 : f32
    %42 = vector.broadcast %cst_27 : f32 to vector<8x8xf32>
    %43 = arith.subf %41, %42 : vector<8x8xf32>
    %cst_28 = arith.constant 1.000000e+30 : f32
    %44 = vector.broadcast %cst_28 : f32 to vector<8x8xf32>
    %45 = arith.mulf %43, %44 : vector<8x8xf32>
    %c0_29 = arith.constant 0 : index
    %c0_30 = arith.constant 0 : index
    %c0_31 = arith.constant 0 : index
    %46 = vector.load %arg9[%c0_29, %c0_30, %c0_31] : memref<5x32x128xf32, #tpu.memory_space<vmem>>, vector<1x32x128xf32>
    %47 = vector.shape_cast %46 : vector<1x32x128xf32> to vector<32x128xf32>
    %cst_32 = arith.constant dense<0.000000e+00> : vector<8x128xf32>
    %48 = tpu.matmul %40, %47, %cst_32 {dimension_numbers = #tpu.dot_dimension_numbers<[1], [0], [0], [1], [0, 0, 1, 1], [], []>} : vector<8x32xf32>, vector<32x128xf32>, vector<8x128xf32> -> vector<8x128xf32>
    %c0_33 = arith.constant 0 : index
    %c0_34 = arith.constant 0 : index
    %c0_35 = arith.constant 0 : index
    %49 = vector.load %arg10[%c0_33, %c0_34, %c0_35] : memref<5x1x128xf32, #tpu.memory_space<vmem>>, vector<1x1x128xf32>
    %50 = vector.shape_cast %49 : vector<1x1x128xf32> to vector<1x128xf32>
    %51 = vector.broadcast %50 : vector<1x128xf32> to vector<8x128xf32>
    %52 = arith.addf %48, %51 : vector<8x128xf32>
    %53 = vector.extract_strided_slice %52 {offsets = [0, 0], sizes = [8, 32], strides = [1, 1]} : vector<8x128xf32> to vector<8x32xf32>
    %54 = vector.extract_strided_slice %52 {offsets = [0, 32], sizes = [8, 32], strides = [1, 1]} : vector<8x128xf32> to vector<8x32xf32>
    %55 = vector.extract_strided_slice %52 {offsets = [0, 64], sizes = [8, 32], strides = [1, 1]} : vector<8x128xf32> to vector<8x32xf32>
    %56 = vector.extract_strided_slice %52 {offsets = [0, 96], sizes = [8, 32], strides = [1, 1]} : vector<8x128xf32> to vector<8x32xf32>
    %c0_36 = arith.constant 0 : index
    %c0_37 = arith.constant 0 : index
    %c0_38 = arith.constant 0 : index
    %c0_39 = arith.constant 0 : index
    %57 = vector.load %arg11[%c0_36, %c0_37, %c0_38, %c0_39] : memref<5x8x8x32xf32, #tpu.memory_space<vmem>>, vector<1x8x8x32xf32>
    %58 = vector.shape_cast %57 : vector<1x8x8x32xf32> to vector<8x8x32xf32>
    %cst_40 = arith.constant dense<0.000000e+00> : vector<8x8xf32>
    %59 = tpu.matmul %53, %54, %cst_40 {dimension_numbers = #tpu.dot_dimension_numbers<[1], [1], [0], [0], [0, 0, 1, 0], [], []>} : vector<8x32xf32>, vector<8x32xf32>, vector<8x8xf32> -> vector<8x8xf32>
    %60 = vector.shape_cast %53 : vector<8x32xf32> to vector<8x1x32xf32>
    "tpu.trace_start"() <{level = 10 : i32, message = "ibh,ijh->ibj"}> : () -> ()
    %cst_41 = arith.constant dense<0.000000e+00> : vector<8x1x8xf32>
    %61 = tpu.matmul %60, %58, %cst_41 {dimension_numbers = #tpu.dot_dimension_numbers<[2], [2], [1], [1], [0, 0, 0, 1, 1, 1], [0], [0]>} : vector<8x1x32xf32>, vector<8x8x32xf32>, vector<8x1x8xf32> -> vector<8x1x8xf32>
    "tpu.trace_stop"() : () -> ()
    %62 = vector.shape_cast %61 : vector<8x1x8xf32> to vector<8x8xf32>
    %63 = arith.addf %59, %62 : vector<8x8xf32>
    %64 = arith.addf %63, %45 : vector<8x8xf32>
    %cst_42 = arith.constant dense<0xFF800000> : vector<8xf32>
    %65 = vector.multi_reduction <maximumf>, %64, %cst_42 [1] : vector<8x8xf32> to vector<8xf32>
    %66 = vector.shape_cast %65 : vector<8xf32> to vector<8x1xf32>
    %67 = vector.broadcast %66 : vector<8x1xf32> to vector<8x8xf32>
    %68 = arith.subf %64, %67 : vector<8x8xf32>
    %69 = math.exp %68 : vector<8x8xf32>
    %70 = arith.mulf %69, %41 : vector<8x8xf32>
    %cst_43 = arith.constant dense<0.000000e+00> : vector<8xf32>
    %71 = vector.multi_reduction <add>, %70, %cst_43 [1] : vector<8x8xf32> to vector<8xf32>
    %72 = vector.shape_cast %71 : vector<8xf32> to vector<8x1xf32>
    %cst_44 = arith.constant 1.000000e-30 : f32
    %73 = vector.broadcast %cst_44 : f32 to vector<8x1xf32>
    %74 = arith.maximumf %72, %73 : vector<8x1xf32>
    %75 = tpu.reciprocal %74 {approx = true} : vector<8x1xf32> -> vector<8x1xf32>
    %76 = vector.broadcast %75 : vector<8x1xf32> to vector<8x8xf32>
    %77 = arith.mulf %70, %76 : vector<8x8xf32>
    %cst_45 = arith.constant dense<0.000000e+00> : vector<8x32xf32>
    %78 = tpu.matmul %77, %55, %cst_45 {dimension_numbers = #tpu.dot_dimension_numbers<[1], [0], [0], [1], [0, 0, 1, 1], [], []>} : vector<8x8xf32>, vector<8x32xf32>, vector<8x32xf32> -> vector<8x32xf32>
    %79 = vector.shape_cast %77 : vector<8x8xf32> to vector<8x1x8xf32>
    "tpu.trace_start"() <{level = 10 : i32, message = "ibj,ijh->ibh"}> : () -> ()
    %cst_46 = arith.constant dense<0.000000e+00> : vector<8x1x32xf32>
    %80 = tpu.matmul %79, %58, %cst_46 {dimension_numbers = #tpu.dot_dimension_numbers<[2], [1], [1], [2], [0, 0, 0, 1, 1, 2], [0], [0]>} : vector<8x1x8xf32>, vector<8x8x32xf32>, vector<8x1x32xf32> -> vector<8x1x32xf32>
    "tpu.trace_stop"() : () -> ()
    %81 = vector.shape_cast %80 : vector<8x1x32xf32> to vector<8x32xf32>
    %82 = arith.addf %78, %81 : vector<8x32xf32>
    %83 = arith.addf %82, %56 : vector<8x32xf32>
    %cst_47 = arith.constant 0.000000e+00 : f32
    %84 = vector.broadcast %cst_47 : f32 to vector<8x32xf32>
    %85 = arith.maximumf %83, %84 : vector<8x32xf32>
    %86 = arith.addf %40, %85 : vector<8x32xf32>
    %c1 = arith.constant 1 : index
    %c0_48 = arith.constant 0 : index
    %c0_49 = arith.constant 0 : index
    %87 = vector.load %arg9[%c1, %c0_48, %c0_49] : memref<5x32x128xf32, #tpu.memory_space<vmem>>, vector<1x32x128xf32>
    %88 = vector.shape_cast %87 : vector<1x32x128xf32> to vector<32x128xf32>
    %cst_50 = arith.constant dense<0.000000e+00> : vector<8x128xf32>
    %89 = tpu.matmul %86, %88, %cst_50 {dimension_numbers = #tpu.dot_dimension_numbers<[1], [0], [0], [1], [0, 0, 1, 1], [], []>} : vector<8x32xf32>, vector<32x128xf32>, vector<8x128xf32> -> vector<8x128xf32>
    %c1_51 = arith.constant 1 : index
    %c0_52 = arith.constant 0 : index
    %c0_53 = arith.constant 0 : index
    %90 = vector.load %arg10[%c1_51, %c0_52, %c0_53] : memref<5x1x128xf32, #tpu.memory_space<vmem>>, vector<1x1x128xf32>
    %91 = vector.shape_cast %90 : vector<1x1x128xf32> to vector<1x128xf32>
    %92 = vector.broadcast %91 : vector<1x128xf32> to vector<8x128xf32>
    %93 = arith.addf %89, %92 : vector<8x128xf32>
    %94 = vector.extract_strided_slice %93 {offsets = [0, 0], sizes = [8, 32], strides = [1, 1]} : vector<8x128xf32> to vector<8x32xf32>
    %95 = vector.extract_strided_slice %93 {offsets = [0, 32], sizes = [8, 32], strides = [1, 1]} : vector<8x128xf32> to vector<8x32xf32>
    %96 = vector.extract_strided_slice %93 {offsets = [0, 64], sizes = [8, 32], strides = [1, 1]} : vector<8x128xf32> to vector<8x32xf32>
    %97 = vector.extract_strided_slice %93 {offsets = [0, 96], sizes = [8, 32], strides = [1, 1]} : vector<8x128xf32> to vector<8x32xf32>
    %c1_54 = arith.constant 1 : index
    %c0_55 = arith.constant 0 : index
    %c0_56 = arith.constant 0 : index
    %c0_57 = arith.constant 0 : index
    %98 = vector.load %arg11[%c1_54, %c0_55, %c0_56, %c0_57] : memref<5x8x8x32xf32, #tpu.memory_space<vmem>>, vector<1x8x8x32xf32>
    %99 = vector.shape_cast %98 : vector<1x8x8x32xf32> to vector<8x8x32xf32>
    %cst_58 = arith.constant dense<0.000000e+00> : vector<8x8xf32>
    %100 = tpu.matmul %94, %95, %cst_58 {dimension_numbers = #tpu.dot_dimension_numbers<[1], [1], [0], [0], [0, 0, 1, 0], [], []>} : vector<8x32xf32>, vector<8x32xf32>, vector<8x8xf32> -> vector<8x8xf32>
    %101 = vector.shape_cast %94 : vector<8x32xf32> to vector<8x1x32xf32>
    "tpu.trace_start"() <{level = 10 : i32, message = "ibh,ijh->ibj"}> : () -> ()
    %cst_59 = arith.constant dense<0.000000e+00> : vector<8x1x8xf32>
    %102 = tpu.matmul %101, %99, %cst_59 {dimension_numbers = #tpu.dot_dimension_numbers<[2], [2], [1], [1], [0, 0, 0, 1, 1, 1], [0], [0]>} : vector<8x1x32xf32>, vector<8x8x32xf32>, vector<8x1x8xf32> -> vector<8x1x8xf32>
    "tpu.trace_stop"() : () -> ()
    %103 = vector.shape_cast %102 : vector<8x1x8xf32> to vector<8x8xf32>
    %104 = arith.addf %100, %103 : vector<8x8xf32>
    %105 = arith.addf %104, %45 : vector<8x8xf32>
    %cst_60 = arith.constant dense<0xFF800000> : vector<8xf32>
    %106 = vector.multi_reduction <maximumf>, %105, %cst_60 [1] : vector<8x8xf32> to vector<8xf32>
    %107 = vector.shape_cast %106 : vector<8xf32> to vector<8x1xf32>
    %108 = vector.broadcast %107 : vector<8x1xf32> to vector<8x8xf32>
    %109 = arith.subf %105, %108 : vector<8x8xf32>
    %110 = math.exp %109 : vector<8x8xf32>
    %111 = arith.mulf %110, %41 : vector<8x8xf32>
    %cst_61 = arith.constant dense<0.000000e+00> : vector<8xf32>
    %112 = vector.multi_reduction <add>, %111, %cst_61 [1] : vector<8x8xf32> to vector<8xf32>
    %113 = vector.shape_cast %112 : vector<8xf32> to vector<8x1xf32>
    %cst_62 = arith.constant 1.000000e-30 : f32
    %114 = vector.broadcast %cst_62 : f32 to vector<8x1xf32>
    %115 = arith.maximumf %113, %114 : vector<8x1xf32>
    %116 = tpu.reciprocal %115 {approx = true} : vector<8x1xf32> -> vector<8x1xf32>
    %117 = vector.broadcast %116 : vector<8x1xf32> to vector<8x8xf32>
    %118 = arith.mulf %111, %117 : vector<8x8xf32>
    %cst_63 = arith.constant dense<0.000000e+00> : vector<8x32xf32>
    %119 = tpu.matmul %118, %96, %cst_63 {dimension_numbers = #tpu.dot_dimension_numbers<[1], [0], [0], [1], [0, 0, 1, 1], [], []>} : vector<8x8xf32>, vector<8x32xf32>, vector<8x32xf32> -> vector<8x32xf32>
    %120 = vector.shape_cast %118 : vector<8x8xf32> to vector<8x1x8xf32>
    "tpu.trace_start"() <{level = 10 : i32, message = "ibj,ijh->ibh"}> : () -> ()
    %cst_64 = arith.constant dense<0.000000e+00> : vector<8x1x32xf32>
    %121 = tpu.matmul %120, %99, %cst_64 {dimension_numbers = #tpu.dot_dimension_numbers<[2], [1], [1], [2], [0, 0, 0, 1, 1, 2], [0], [0]>} : vector<8x1x8xf32>, vector<8x8x32xf32>, vector<8x1x32xf32> -> vector<8x1x32xf32>
    "tpu.trace_stop"() : () -> ()
    %122 = vector.shape_cast %121 : vector<8x1x32xf32> to vector<8x32xf32>
    %123 = arith.addf %119, %122 : vector<8x32xf32>
    %124 = arith.addf %123, %97 : vector<8x32xf32>
    %cst_65 = arith.constant 0.000000e+00 : f32
    %125 = vector.broadcast %cst_65 : f32 to vector<8x32xf32>
    %126 = arith.maximumf %124, %125 : vector<8x32xf32>
    %127 = arith.addf %86, %126 : vector<8x32xf32>
    %c2 = arith.constant 2 : index
    %c0_66 = arith.constant 0 : index
    %c0_67 = arith.constant 0 : index
    %128 = vector.load %arg9[%c2, %c0_66, %c0_67] : memref<5x32x128xf32, #tpu.memory_space<vmem>>, vector<1x32x128xf32>
    %129 = vector.shape_cast %128 : vector<1x32x128xf32> to vector<32x128xf32>
    %cst_68 = arith.constant dense<0.000000e+00> : vector<8x128xf32>
    %130 = tpu.matmul %127, %129, %cst_68 {dimension_numbers = #tpu.dot_dimension_numbers<[1], [0], [0], [1], [0, 0, 1, 1], [], []>} : vector<8x32xf32>, vector<32x128xf32>, vector<8x128xf32> -> vector<8x128xf32>
    %c2_69 = arith.constant 2 : index
    %c0_70 = arith.constant 0 : index
    %c0_71 = arith.constant 0 : index
    %131 = vector.load %arg10[%c2_69, %c0_70, %c0_71] : memref<5x1x128xf32, #tpu.memory_space<vmem>>, vector<1x1x128xf32>
    %132 = vector.shape_cast %131 : vector<1x1x128xf32> to vector<1x128xf32>
    %133 = vector.broadcast %132 : vector<1x128xf32> to vector<8x128xf32>
    %134 = arith.addf %130, %133 : vector<8x128xf32>
    %135 = vector.extract_strided_slice %134 {offsets = [0, 0], sizes = [8, 32], strides = [1, 1]} : vector<8x128xf32> to vector<8x32xf32>
    %136 = vector.extract_strided_slice %134 {offsets = [0, 32], sizes = [8, 32], strides = [1, 1]} : vector<8x128xf32> to vector<8x32xf32>
    %137 = vector.extract_strided_slice %134 {offsets = [0, 64], sizes = [8, 32], strides = [1, 1]} : vector<8x128xf32> to vector<8x32xf32>
    %138 = vector.extract_strided_slice %134 {offsets = [0, 96], sizes = [8, 32], strides = [1, 1]} : vector<8x128xf32> to vector<8x32xf32>
    %c2_72 = arith.constant 2 : index
    %c0_73 = arith.constant 0 : index
    %c0_74 = arith.constant 0 : index
    %c0_75 = arith.constant 0 : index
    %139 = vector.load %arg11[%c2_72, %c0_73, %c0_74, %c0_75] : memref<5x8x8x32xf32, #tpu.memory_space<vmem>>, vector<1x8x8x32xf32>
    %140 = vector.shape_cast %139 : vector<1x8x8x32xf32> to vector<8x8x32xf32>
    %cst_76 = arith.constant dense<0.000000e+00> : vector<8x8xf32>
    %141 = tpu.matmul %135, %136, %cst_76 {dimension_numbers = #tpu.dot_dimension_numbers<[1], [1], [0], [0], [0, 0, 1, 0], [], []>} : vector<8x32xf32>, vector<8x32xf32>, vector<8x8xf32> -> vector<8x8xf32>
    %142 = vector.shape_cast %135 : vector<8x32xf32> to vector<8x1x32xf32>
    "tpu.trace_start"() <{level = 10 : i32, message = "ibh,ijh->ibj"}> : () -> ()
    %cst_77 = arith.constant dense<0.000000e+00> : vector<8x1x8xf32>
    %143 = tpu.matmul %142, %140, %cst_77 {dimension_numbers = #tpu.dot_dimension_numbers<[2], [2], [1], [1], [0, 0, 0, 1, 1, 1], [0], [0]>} : vector<8x1x32xf32>, vector<8x8x32xf32>, vector<8x1x8xf32> -> vector<8x1x8xf32>
    "tpu.trace_stop"() : () -> ()
    %144 = vector.shape_cast %143 : vector<8x1x8xf32> to vector<8x8xf32>
    %145 = arith.addf %141, %144 : vector<8x8xf32>
    %146 = arith.addf %145, %45 : vector<8x8xf32>
    %cst_78 = arith.constant dense<0xFF800000> : vector<8xf32>
    %147 = vector.multi_reduction <maximumf>, %146, %cst_78 [1] : vector<8x8xf32> to vector<8xf32>
    %148 = vector.shape_cast %147 : vector<8xf32> to vector<8x1xf32>
    %149 = vector.broadcast %148 : vector<8x1xf32> to vector<8x8xf32>
    %150 = arith.subf %146, %149 : vector<8x8xf32>
    %151 = math.exp %150 : vector<8x8xf32>
    %152 = arith.mulf %151, %41 : vector<8x8xf32>
    %cst_79 = arith.constant dense<0.000000e+00> : vector<8xf32>
    %153 = vector.multi_reduction <add>, %152, %cst_79 [1] : vector<8x8xf32> to vector<8xf32>
    %154 = vector.shape_cast %153 : vector<8xf32> to vector<8x1xf32>
    %cst_80 = arith.constant 1.000000e-30 : f32
    %155 = vector.broadcast %cst_80 : f32 to vector<8x1xf32>
    %156 = arith.maximumf %154, %155 : vector<8x1xf32>
    %157 = tpu.reciprocal %156 {approx = true} : vector<8x1xf32> -> vector<8x1xf32>
    %158 = vector.broadcast %157 : vector<8x1xf32> to vector<8x8xf32>
    %159 = arith.mulf %152, %158 : vector<8x8xf32>
    %cst_81 = arith.constant dense<0.000000e+00> : vector<8x32xf32>
    %160 = tpu.matmul %159, %137, %cst_81 {dimension_numbers = #tpu.dot_dimension_numbers<[1], [0], [0], [1], [0, 0, 1, 1], [], []>} : vector<8x8xf32>, vector<8x32xf32>, vector<8x32xf32> -> vector<8x32xf32>
    %161 = vector.shape_cast %159 : vector<8x8xf32> to vector<8x1x8xf32>
    "tpu.trace_start"() <{level = 10 : i32, message = "ibj,ijh->ibh"}> : () -> ()
    %cst_82 = arith.constant dense<0.000000e+00> : vector<8x1x32xf32>
    %162 = tpu.matmul %161, %140, %cst_82 {dimension_numbers = #tpu.dot_dimension_numbers<[2], [1], [1], [2], [0, 0, 0, 1, 1, 2], [0], [0]>} : vector<8x1x8xf32>, vector<8x8x32xf32>, vector<8x1x32xf32> -> vector<8x1x32xf32>
    "tpu.trace_stop"() : () -> ()
    %163 = vector.shape_cast %162 : vector<8x1x32xf32> to vector<8x32xf32>
    %164 = arith.addf %160, %163 : vector<8x32xf32>
    %165 = arith.addf %164, %138 : vector<8x32xf32>
    %cst_83 = arith.constant 0.000000e+00 : f32
    %166 = vector.broadcast %cst_83 : f32 to vector<8x32xf32>
    %167 = arith.maximumf %165, %166 : vector<8x32xf32>
    %168 = arith.addf %127, %167 : vector<8x32xf32>
    %c3 = arith.constant 3 : index
    %c0_84 = arith.constant 0 : index
    %c0_85 = arith.constant 0 : index
    %169 = vector.load %arg9[%c3, %c0_84, %c0_85] : memref<5x32x128xf32, #tpu.memory_space<vmem>>, vector<1x32x128xf32>
    %170 = vector.shape_cast %169 : vector<1x32x128xf32> to vector<32x128xf32>
    %cst_86 = arith.constant dense<0.000000e+00> : vector<8x128xf32>
    %171 = tpu.matmul %168, %170, %cst_86 {dimension_numbers = #tpu.dot_dimension_numbers<[1], [0], [0], [1], [0, 0, 1, 1], [], []>} : vector<8x32xf32>, vector<32x128xf32>, vector<8x128xf32> -> vector<8x128xf32>
    %c3_87 = arith.constant 3 : index
    %c0_88 = arith.constant 0 : index
    %c0_89 = arith.constant 0 : index
    %172 = vector.load %arg10[%c3_87, %c0_88, %c0_89] : memref<5x1x128xf32, #tpu.memory_space<vmem>>, vector<1x1x128xf32>
    %173 = vector.shape_cast %172 : vector<1x1x128xf32> to vector<1x128xf32>
    %174 = vector.broadcast %173 : vector<1x128xf32> to vector<8x128xf32>
    %175 = arith.addf %171, %174 : vector<8x128xf32>
    %176 = vector.extract_strided_slice %175 {offsets = [0, 0], sizes = [8, 32], strides = [1, 1]} : vector<8x128xf32> to vector<8x32xf32>
    %177 = vector.extract_strided_slice %175 {offsets = [0, 32], sizes = [8, 32], strides = [1, 1]} : vector<8x128xf32> to vector<8x32xf32>
    %178 = vector.extract_strided_slice %175 {offsets = [0, 64], sizes = [8, 32], strides = [1, 1]} : vector<8x128xf32> to vector<8x32xf32>
    %179 = vector.extract_strided_slice %175 {offsets = [0, 96], sizes = [8, 32], strides = [1, 1]} : vector<8x128xf32> to vector<8x32xf32>
    %c3_90 = arith.constant 3 : index
    %c0_91 = arith.constant 0 : index
    %c0_92 = arith.constant 0 : index
    %c0_93 = arith.constant 0 : index
    %180 = vector.load %arg11[%c3_90, %c0_91, %c0_92, %c0_93] : memref<5x8x8x32xf32, #tpu.memory_space<vmem>>, vector<1x8x8x32xf32>
    %181 = vector.shape_cast %180 : vector<1x8x8x32xf32> to vector<8x8x32xf32>
    %cst_94 = arith.constant dense<0.000000e+00> : vector<8x8xf32>
    %182 = tpu.matmul %176, %177, %cst_94 {dimension_numbers = #tpu.dot_dimension_numbers<[1], [1], [0], [0], [0, 0, 1, 0], [], []>} : vector<8x32xf32>, vector<8x32xf32>, vector<8x8xf32> -> vector<8x8xf32>
    %183 = vector.shape_cast %176 : vector<8x32xf32> to vector<8x1x32xf32>
    "tpu.trace_start"() <{level = 10 : i32, message = "ibh,ijh->ibj"}> : () -> ()
    %cst_95 = arith.constant dense<0.000000e+00> : vector<8x1x8xf32>
    %184 = tpu.matmul %183, %181, %cst_95 {dimension_numbers = #tpu.dot_dimension_numbers<[2], [2], [1], [1], [0, 0, 0, 1, 1, 1], [0], [0]>} : vector<8x1x32xf32>, vector<8x8x32xf32>, vector<8x1x8xf32> -> vector<8x1x8xf32>
    "tpu.trace_stop"() : () -> ()
    %185 = vector.shape_cast %184 : vector<8x1x8xf32> to vector<8x8xf32>
    %186 = arith.addf %182, %185 : vector<8x8xf32>
    %187 = arith.addf %186, %45 : vector<8x8xf32>
    %cst_96 = arith.constant dense<0xFF800000> : vector<8xf32>
    %188 = vector.multi_reduction <maximumf>, %187, %cst_96 [1] : vector<8x8xf32> to vector<8xf32>
    %189 = vector.shape_cast %188 : vector<8xf32> to vector<8x1xf32>
    %190 = vector.broadcast %189 : vector<8x1xf32> to vector<8x8xf32>
    %191 = arith.subf %187, %190 : vector<8x8xf32>
    %192 = math.exp %191 : vector<8x8xf32>
    %193 = arith.mulf %192, %41 : vector<8x8xf32>
    %cst_97 = arith.constant dense<0.000000e+00> : vector<8xf32>
    %194 = vector.multi_reduction <add>, %193, %cst_97 [1] : vector<8x8xf32> to vector<8xf32>
    %195 = vector.shape_cast %194 : vector<8xf32> to vector<8x1xf32>
    %cst_98 = arith.constant 1.000000e-30 : f32
    %196 = vector.broadcast %cst_98 : f32 to vector<8x1xf32>
    %197 = arith.maximumf %195, %196 : vector<8x1xf32>
    %198 = tpu.reciprocal %197 {approx = true} : vector<8x1xf32> -> vector<8x1xf32>
    %199 = vector.broadcast %198 : vector<8x1xf32> to vector<8x8xf32>
    %200 = arith.mulf %193, %199 : vector<8x8xf32>
    %cst_99 = arith.constant dense<0.000000e+00> : vector<8x32xf32>
    %201 = tpu.matmul %200, %178, %cst_99 {dimension_numbers = #tpu.dot_dimension_numbers<[1], [0], [0], [1], [0, 0, 1, 1], [], []>} : vector<8x8xf32>, vector<8x32xf32>, vector<8x32xf32> -> vector<8x32xf32>
    %202 = vector.shape_cast %200 : vector<8x8xf32> to vector<8x1x8xf32>
    "tpu.trace_start"() <{level = 10 : i32, message = "ibj,ijh->ibh"}> : () -> ()
    %cst_100 = arith.constant dense<0.000000e+00> : vector<8x1x32xf32>
    %203 = tpu.matmul %202, %181, %cst_100 {dimension_numbers = #tpu.dot_dimension_numbers<[2], [1], [1], [2], [0, 0, 0, 1, 1, 2], [0], [0]>} : vector<8x1x8xf32>, vector<8x8x32xf32>, vector<8x1x32xf32> -> vector<8x1x32xf32>
    "tpu.trace_stop"() : () -> ()
    %204 = vector.shape_cast %203 : vector<8x1x32xf32> to vector<8x32xf32>
    %205 = arith.addf %201, %204 : vector<8x32xf32>
    %206 = arith.addf %205, %179 : vector<8x32xf32>
    %cst_101 = arith.constant 0.000000e+00 : f32
    %207 = vector.broadcast %cst_101 : f32 to vector<8x32xf32>
    %208 = arith.maximumf %206, %207 : vector<8x32xf32>
    %209 = arith.addf %168, %208 : vector<8x32xf32>
    %c4 = arith.constant 4 : index
    %c0_102 = arith.constant 0 : index
    %c0_103 = arith.constant 0 : index
    %210 = vector.load %arg9[%c4, %c0_102, %c0_103] : memref<5x32x128xf32, #tpu.memory_space<vmem>>, vector<1x32x128xf32>
    %211 = vector.shape_cast %210 : vector<1x32x128xf32> to vector<32x128xf32>
    %cst_104 = arith.constant dense<0.000000e+00> : vector<8x128xf32>
    %212 = tpu.matmul %209, %211, %cst_104 {dimension_numbers = #tpu.dot_dimension_numbers<[1], [0], [0], [1], [0, 0, 1, 1], [], []>} : vector<8x32xf32>, vector<32x128xf32>, vector<8x128xf32> -> vector<8x128xf32>
    %c4_105 = arith.constant 4 : index
    %c0_106 = arith.constant 0 : index
    %c0_107 = arith.constant 0 : index
    %213 = vector.load %arg10[%c4_105, %c0_106, %c0_107] : memref<5x1x128xf32, #tpu.memory_space<vmem>>, vector<1x1x128xf32>
    %214 = vector.shape_cast %213 : vector<1x1x128xf32> to vector<1x128xf32>
    %215 = vector.broadcast %214 : vector<1x128xf32> to vector<8x128xf32>
    %216 = arith.addf %212, %215 : vector<8x128xf32>
    %217 = vector.extract_strided_slice %216 {offsets = [0, 0], sizes = [8, 32], strides = [1, 1]} : vector<8x128xf32> to vector<8x32xf32>
    %218 = vector.extract_strided_slice %216 {offsets = [0, 32], sizes = [8, 32], strides = [1, 1]} : vector<8x128xf32> to vector<8x32xf32>
    %219 = vector.extract_strided_slice %216 {offsets = [0, 64], sizes = [8, 32], strides = [1, 1]} : vector<8x128xf32> to vector<8x32xf32>
    %220 = vector.extract_strided_slice %216 {offsets = [0, 96], sizes = [8, 32], strides = [1, 1]} : vector<8x128xf32> to vector<8x32xf32>
    %c4_108 = arith.constant 4 : index
    %c0_109 = arith.constant 0 : index
    %c0_110 = arith.constant 0 : index
    %c0_111 = arith.constant 0 : index
    %221 = vector.load %arg11[%c4_108, %c0_109, %c0_110, %c0_111] : memref<5x8x8x32xf32, #tpu.memory_space<vmem>>, vector<1x8x8x32xf32>
    %222 = vector.shape_cast %221 : vector<1x8x8x32xf32> to vector<8x8x32xf32>
    %cst_112 = arith.constant dense<0.000000e+00> : vector<8x8xf32>
    %223 = tpu.matmul %217, %218, %cst_112 {dimension_numbers = #tpu.dot_dimension_numbers<[1], [1], [0], [0], [0, 0, 1, 0], [], []>} : vector<8x32xf32>, vector<8x32xf32>, vector<8x8xf32> -> vector<8x8xf32>
    %224 = vector.shape_cast %217 : vector<8x32xf32> to vector<8x1x32xf32>
    "tpu.trace_start"() <{level = 10 : i32, message = "ibh,ijh->ibj"}> : () -> ()
    %cst_113 = arith.constant dense<0.000000e+00> : vector<8x1x8xf32>
    %225 = tpu.matmul %224, %222, %cst_113 {dimension_numbers = #tpu.dot_dimension_numbers<[2], [2], [1], [1], [0, 0, 0, 1, 1, 1], [0], [0]>} : vector<8x1x32xf32>, vector<8x8x32xf32>, vector<8x1x8xf32> -> vector<8x1x8xf32>
    "tpu.trace_stop"() : () -> ()
    %226 = vector.shape_cast %225 : vector<8x1x8xf32> to vector<8x8xf32>
    %227 = arith.addf %223, %226 : vector<8x8xf32>
    %228 = arith.addf %227, %45 : vector<8x8xf32>
    %cst_114 = arith.constant dense<0xFF800000> : vector<8xf32>
    %229 = vector.multi_reduction <maximumf>, %228, %cst_114 [1] : vector<8x8xf32> to vector<8xf32>
    %230 = vector.shape_cast %229 : vector<8xf32> to vector<8x1xf32>
    %231 = vector.broadcast %230 : vector<8x1xf32> to vector<8x8xf32>
    %232 = arith.subf %228, %231 : vector<8x8xf32>
    %233 = math.exp %232 : vector<8x8xf32>
    %234 = arith.mulf %233, %41 : vector<8x8xf32>
    %cst_115 = arith.constant dense<0.000000e+00> : vector<8xf32>
    %235 = vector.multi_reduction <add>, %234, %cst_115 [1] : vector<8x8xf32> to vector<8xf32>
    %236 = vector.shape_cast %235 : vector<8xf32> to vector<8x1xf32>
    %cst_116 = arith.constant 1.000000e-30 : f32
    %237 = vector.broadcast %cst_116 : f32 to vector<8x1xf32>
    %238 = arith.maximumf %236, %237 : vector<8x1xf32>
    %239 = tpu.reciprocal %238 {approx = true} : vector<8x1xf32> -> vector<8x1xf32>
    %240 = vector.broadcast %239 : vector<8x1xf32> to vector<8x8xf32>
    %241 = arith.mulf %234, %240 : vector<8x8xf32>
    %cst_117 = arith.constant dense<0.000000e+00> : vector<8x32xf32>
    %242 = tpu.matmul %241, %219, %cst_117 {dimension_numbers = #tpu.dot_dimension_numbers<[1], [0], [0], [1], [0, 0, 1, 1], [], []>} : vector<8x8xf32>, vector<8x32xf32>, vector<8x32xf32> -> vector<8x32xf32>
    %243 = vector.shape_cast %241 : vector<8x8xf32> to vector<8x1x8xf32>
    "tpu.trace_start"() <{level = 10 : i32, message = "ibj,ijh->ibh"}> : () -> ()
    %cst_118 = arith.constant dense<0.000000e+00> : vector<8x1x32xf32>
    %244 = tpu.matmul %243, %222, %cst_118 {dimension_numbers = #tpu.dot_dimension_numbers<[2], [1], [1], [2], [0, 0, 0, 1, 1, 2], [0], [0]>} : vector<8x1x8xf32>, vector<8x8x32xf32>, vector<8x1x32xf32> -> vector<8x1x32xf32>
    "tpu.trace_stop"() : () -> ()
    %245 = vector.shape_cast %244 : vector<8x1x32xf32> to vector<8x32xf32>
    %246 = arith.addf %242, %245 : vector<8x32xf32>
    %247 = arith.addf %246, %220 : vector<8x32xf32>
    %cst_119 = arith.constant 0.000000e+00 : f32
    %248 = vector.broadcast %cst_119 : f32 to vector<8x32xf32>
    %249 = arith.maximumf %247, %248 : vector<8x32xf32>
    %250 = arith.addf %209, %249 : vector<8x32xf32>
    %c0_120 = arith.constant 0 : index
    %c0_121 = arith.constant 0 : index
    %251 = vector.load %arg13[%c0_120, %c0_121] : memref<32x128xf32, #tpu.memory_space<vmem>>, vector<32x128xf32>
    %cst_122 = arith.constant dense<0.000000e+00> : vector<8x128xf32>
    %252 = tpu.matmul %250, %251, %cst_122 {dimension_numbers = #tpu.dot_dimension_numbers<[1], [0], [0], [1], [0, 0, 1, 1], [], []>} : vector<8x32xf32>, vector<32x128xf32>, vector<8x128xf32> -> vector<8x128xf32>
    %c0_123 = arith.constant 0 : index
    %c0_124 = arith.constant 0 : index
    %253 = vector.load %arg14[%c0_123, %c0_124] : memref<1x128xf32, #tpu.memory_space<vmem>>, vector<1x128xf32>
    %254 = vector.broadcast %253 : vector<1x128xf32> to vector<8x128xf32>
    %255 = arith.addf %252, %254 : vector<8x128xf32>
    %c0_125 = arith.constant 0 : index
    %c0_126 = arith.constant 0 : index
    %256 = vector.load %arg15[%c0_125, %c0_126] : memref<8x128xf32, #tpu.memory_space<vmem>>, vector<8x128xf32>
    tpu.vector_store %arg15[%c0_125, %c0_126], %255 {strides = array<i32>} : memref<8x128xf32, #tpu.memory_space<vmem>>, vector<8x128xf32>,
    return
  }
}

</mosaic_0001>

<llo_original>
// kernel: transformer_gnn_forward.1
$region0: #{transformer_gnn_forward.1}
  #allocation0 [shape = 'u32[]', space=smem, size = 0x4, offset = 0x4, fixed_abs, tag = 'smem constant byte address 0x4 - core index']
  #allocation1 [shape = 'u32[72,128]{1,0:T(1,128)}', space=vmem, size = 0x9000, scoped, tag = 'internal scratch']
  %s0 = inlined_call_operand.vmem [shape: f32[8,64], index: 0, kind: input, shape index: {}]
  %s1 = inlined_call_operand.vmem [shape: f32[8,10], index: 1, kind: input, shape index: {}]
  %s2 = inlined_call_operand.vmem [shape: f32[64,32], index: 2, kind: input, shape index: {}]
  %s3 = inlined_call_operand.vmem [shape: f32[1,32], index: 3, kind: input, shape index: {}]
  %s4 = inlined_call_operand.vmem [shape: f32[32,32], index: 4, kind: input, shape index: {}]
  %s5 = inlined_call_operand.vmem [shape: f32[10,32], index: 5, kind: input, shape index: {}]
  %s6 = inlined_call_operand.vmem [shape: f32[1,32], index: 6, kind: input, shape index: {}]
  %s7 = inlined_call_operand.vmem [shape: f32[1,32], index: 7, kind: input, shape index: {}]
  %s8 = inlined_call_operand.vmem [shape: f32[1,32], index: 8, kind: input, shape index: {}]
  %s9 = inlined_call_operand.vmem [shape: f32[5,32,128], index: 9, kind: input, shape index: {}]
  %s10 = inlined_call_operand.vmem [shape: f32[5,1,128], index: 10, kind: input, shape index: {}]
  %s11 = inlined_call_operand.vmem [shape: f32[5,8,8,32], index: 11, kind: input, shape index: {}]
  %s12 = inlined_call_operand.vmem [shape: f32[8,8], index: 12, kind: input, shape index: {}]
  %s13 = inlined_call_operand.vmem [shape: f32[32,128], index: 13, kind: input, shape index: {}]
  %s14 = inlined_call_operand.vmem [shape: f32[1,128], index: 14, kind: input, shape index: {}]
  %s15 = inlined_call_operand.vmem [shape: f32[8,128], index: 15, kind: output, shape index: {}]
  %s16 = sld [smem:[#allocation0]]
  $region70: #{transformer_gnn_forward.1} parent=0
    _
  %s18 = ssub.s32 1, %s16
  %s19 = scalar_select 0, %s18, %s16
  // Predicated region
  $region2: #{transformer_gnn_forward.1} parent=0 // pred_check
    _
  $region3: #{transformer_gnn_forward.1} parent=0 // pred_check_branch
    %21 = sbr.rel (0) target = $region5
  $region4: #{transformer_gnn_forward.1} parent=0 // pred_region
    _
  $region5: #{transformer_gnn_forward.1} parent=0 // pred_fallthru
    _
  // Predicated region
  $region6: #{transformer_gnn_forward.1} parent=0 // pred_check
    _
  $region7: #{transformer_gnn_forward.1} parent=0 // pred_check_branch
    %23 = sbr.rel (0) target = $region9
  $region8: #{transformer_gnn_forward.1} parent=0 // pred_region
    _
  $region9: #{transformer_gnn_forward.1} parent=0 // pred_fallthru
    _
  // Predicated region
  $region10: #{transformer_gnn_forward.1} parent=0 // pred_check
    _
  $region11: #{transformer_gnn_forward.1} parent=0 // pred_check_branch
    %25 = sbr.rel (0) target = $region13
  $region12: #{transformer_gnn_forward.1} parent=0 // pred_region
    _
  $region13: #{transformer_gnn_forward.1} parent=0 // pred_fallthru
    _
  // Predicated region
  $region14: #{transformer_gnn_forward.1} parent=0 // pred_check
    _
  $region15: #{transformer_gnn_forward.1} parent=0 // pred_check_branch
    %27 = sbr.rel (0) target = $region17
  $region16: #{transformer_gnn_forward.1} parent=0 // pred_region
    _
  $region17: #{transformer_gnn_forward.1} parent=0 // pred_fallthru
    _
  // Predicated region
  $region18: #{transformer_gnn_forward.1} parent=0 // pred_check
    _
  $region19: #{transformer_gnn_forward.1} parent=0 // pred_check_branch
    %29 = sbr.rel (0) target = $region21
  $region20: #{transformer_gnn_forward.1} parent=0 // pred_region
    _
  $region21: #{transformer_gnn_forward.1} parent=0 // pred_fallthru
    _
  // Predicated region
  $region22: #{transformer_gnn_forward.1} parent=0 // pred_check
    _
  $region23: #{transformer_gnn_forward.1} parent=0 // pred_check_branch
    %31 = sbr.rel (0) target = $region25
  $region24: #{transformer_gnn_forward.1} parent=0 // pred_region
    _
  $region25: #{transformer_gnn_forward.1} parent=0 // pred_fallthru
    _
  // Predicated region
  $region26: #{transformer_gnn_forward.1} parent=0 // pred_check
    _
  $region27: #{transformer_gnn_forward.1} parent=0 // pred_check_branch
    %33 = sbr.rel (0) target = $region29
  $region28: #{transformer_gnn_forward.1} parent=0 // pred_region
    _
  $region29: #{transformer_gnn_forward.1} parent=0 // pred_fallthru
    _
  // Predicated region
  $region30: #{transformer_gnn_forward.1} parent=0 // pred_check
    _
  $region31: #{transformer_gnn_forward.1} parent=0 // pred_check_branch
    %35 = sbr.rel (0) target = $region33
  $region32: #{transformer_gnn_forward.1} parent=0 // pred_region
    _
  $region33: #{transformer_gnn_forward.1} parent=0 // pred_fallthru
    _
  // Predicated region
  $region34: #{transformer_gnn_forward.1} parent=0 // pred_check
    _
  $region35: #{transformer_gnn_forward.1} parent=0 // pred_check_branch
    %37 = sbr.rel (0) target = $region37
  $region36: #{transformer_gnn_forward.1} parent=0 // pred_region
    _
  $region37: #{transformer_gnn_forward.1} parent=0 // pred_fallthru
    _
  // Predicated region
  $region38: #{transformer_gnn_forward.1} parent=0 // pred_check
    _
  $region39: #{transformer_gnn_forward.1} parent=0 // pred_check_branch
    %39 = sbr.rel (0) target = $region41
  $region40: #{transformer_gnn_forward.1} parent=0 // pred_region
    _
  $region41: #{transformer_gnn_forward.1} parent=0 // pred_fallthru
    _
  // Predicated region
  $region42: #{transformer_gnn_forward.1} parent=0 // pred_check
    _
  $region43: #{transformer_gnn_forward.1} parent=0 // pred_check_branch
    %41 = sbr.rel (0) target = $region45
  $region44: #{transformer_gnn_forward.1} parent=0 // pred_region
    _
  $region45: #{transformer_gnn_forward.1} parent=0 // pred_fallthru
    _
  // Predicated region
  $region46: #{transformer_gnn_forward.1} parent=0 // pred_check
    _
  $region47: #{transformer_gnn_forward.1} parent=0 // pred_check_branch
    %43 = sbr.rel (0) target = $region49
  $region48: #{transformer_gnn_forward.1} parent=0 // pred_region
    _
  $region49: #{transformer_gnn_forward.1} parent=0 // pred_fallthru
    _
  // Predicated region
  $region50: #{transformer_gnn_forward.1} parent=0 // pred_check
    _
  $region51: #{transformer_gnn_forward.1} parent=0 // pred_check_branch
    %45 = sbr.rel (0) target = $region53
  $region52: #{transformer_gnn_forward.1} parent=0 // pred_region
    _
  $region53: #{transformer_gnn_forward.1} parent=0 // pred_fallthru
    _
  // Predicated region
  $region54: #{transformer_gnn_forward.1} parent=0 // pred_check
    _
  $region55: #{transformer_gnn_forward.1} parent=0 // pred_check_branch
    %47 = sbr.rel (0) target = $region57
  $region56: #{transformer_gnn_forward.1} parent=0 // pred_region
    _
  $region57: #{transformer_gnn_forward.1} parent=0 // pred_fallthru
    _
  // Predicated region
  $region58: #{transformer_gnn_forward.1} parent=0 // pred_check
    _
  $region59: #{transformer_gnn_forward.1} parent=0 // pred_check_branch
    %49 = sbr.rel (0) target = $region61
  $region60: #{transformer_gnn_forward.1} parent=0 // pred_region
    _
  $region61: #{transformer_gnn_forward.1} parent=0 // pred_fallthru
    _
  %v50 = vld [vmem:[%s0] sm:$0xff]
  %v51 = vld [vmem:[%s2] sm:$0xff]
  %v52 = vld [vmem:[%s2 + $0x8] sm:$0xff]
  %v53 = vld [vmem:[%s2 + $0x10] sm:$0xff]
  %v54 = vld [vmem:[%s2 + $0x18] sm:$0xff]
  %v55 = vld [vmem:[%s2 + $0x20] sm:$0xff]
  %v56 = vld [vmem:[%s2 + $0x28] sm:$0xff]
  %v57 = vld [vmem:[%s2 + $0x30] sm:$0xff]
  %v58 = vld [vmem:[%s2 + $0x38] sm:$0xff]
  %v59 = vld [vmem:[%s3] sm:$0x1]
  %v61 = vperm.slane %v59, 0
  %vm63 = vcmask 523264
  %v65 = vsel %vm63, %v50, 0
  %67 = vmatpush.msra.mxu0 0.0
  %68 = vmatpush.msra.mxu0 0.0
  %69 = vmatpush.msra.mxu0 0.0
  %70 = vmatpush.msra.mxu0 0.0
  %71 = vmatpush.msra.mxu0 0.0
  %72 = vmatpush.msra.mxu0 0.0
  %73 = vmatpush.msra.mxu0 0.0
  %74 = vmatpush.msra.mxu0 0.0
  %75 = vmatpush.msra.mxu0 %v58
  %76 = vmatpush.msra.mxu0 %v57
  %77 = vmatpush.msra.mxu0 %v56
  %78 = vmatpush.msra.mxu0 %v55
  %79 = vmatpush.msra.mxu0 %v54
  %80 = vmatpush.msra.mxu0 %v53
  %81 = vmatpush.msra.mxu0 %v52
  %82 = vmatpush.msra.mxu0 %v51
  %83 = vmatmul.f32.gmra.mxu0 %v65
  %v84 = vpop.f32.mrf.mxu0
  %v85 = vadd.f32 %v61, %v84
  %86 = vdwg.mxu0
  %v87 = vld [vmem:[%s4] sm:$0xff]
  %v88 = vld [vmem:[%s4 + $0x8] sm:$0xff]
  %v89 = vld [vmem:[%s4 + $0x10] sm:$0xff]
  %v90 = vld [vmem:[%s4 + $0x18] sm:$0xff]
  %v91 = vld [vmem:[%s1] sm:$0xff]
  %v92 = vld [vmem:[%s5] sm:$0xff]
  %v93 = vld [vmem:[%s5 + $0x8] sm:$0x3]
  %vm94 = vcmask 80896
  %v96 = vsel %vm94, %v91, 0
  %vm98 = vcmask 1041408
  %v100 = vsel %vm98, %v93, 0
  %102 = vmatpush.msra.mxu0 0.0
  %103 = vmatpush.msra.mxu0 0.0
  %104 = vmatpush.msra.mxu0 0.0
  %105 = vmatpush.msra.mxu0 0.0
  %106 = vmatpush.msra.mxu0 0.0
  %107 = vmatpush.msra.mxu0 0.0
  %108 = vmatpush.msra.mxu0 0.0
  %109 = vmatpush.msra.mxu0 0.0
  %110 = vmatpush.msra.mxu0 0.0
  %111 = vmatpush.msra.mxu0 0.0
  %112 = vmatpush.msra.mxu0 0.0
  %113 = vmatpush.msra.mxu0 0.0
  %114 = vmatpush.msra.mxu0 0.0
  %115 = vmatpush.msra.mxu0 0.0
  %116 = vmatpush.msra.mxu0 %v100
  %117 = vmatpush.msra.mxu0 %v92
  %118 = vmatmul.f32.gmra.mxu0 %v96
  %v119 = vpop.f32.mrf.mxu0
  %v120 = vadd.f32 0.0, %v119
  %121 = vdwg.mxu0
  %vm122 = vcmask 261120
  %v124 = vsel %vm122, %v85, 0
  %126 = vmatpush.msra.mxu0 0.0
  %127 = vmatpush.msra.mxu0 0.0
  %128 = vmatpush.msra.mxu0 0.0
  %129 = vmatpush.msra.mxu0 0.0
  %130 = vmatpush.msra.mxu0 0.0
  %131 = vmatpush.msra.mxu0 0.0
  %132 = vmatpush.msra.mxu0 0.0
  %133 = vmatpush.msra.mxu0 0.0
  %134 = vmatpush.msra.mxu0 0.0
  %135 = vmatpush.msra.mxu0 0.0
  %136 = vmatpush.msra.mxu0 0.0
  %137 = vmatpush.msra.mxu0 0.0
  %138 = vmatpush.msra.mxu0 %v90
  %139 = vmatpush.msra.mxu0 %v89
  %140 = vmatpush.msra.mxu0 %v88
  %141 = vmatpush.msra.mxu0 %v87
  %142 = vmatmul.f32.gmra.mxu0 %v124
  %v143 = vpop.f32.mrf.mxu0
  %v144 = vadd.f32 %v120, %v143
  %145 = vdwg.mxu0
  %v146 = vld [vmem:[%s6] sm:$0x1]
  %v148 = vperm.slane %v146, 0
  %v150 = vadd.f32 %v144, %v148
  %v151 = vsel %vm122, %v150, 0.0
  %152 = vadd.xlane.f32.xlu0 %v151
  %v153 = vpop.xlane.xlu0 %152
  %v154 = vrcp.pop 32.0
  %v155 = vmul.f32 32.0, %v154
  %v156 = vsub.f32 1.0, %v155
  %v157 = vmul.f32 %v154, %v156
  %v158 = vadd.f32 %v154, %v157
  %vm159 = vweird.f32 %v154
  %v160 = vsel %vm159, %v154, %v158
  %v161 = vmul.f32 %v153, %v160
  %v162 = vsub.f32 %v150, %v161
  %v163 = vmul.f32 %v162, %v162
  %v164 = vsel %vm122, %v163, 0.0
  %165 = vadd.xlane.f32.xlu0 %v164
  %v166 = vpop.xlane.xlu0 %165
  %v167 = vmul.f32 %v166, %v160
  %v168 = vadd.f32 %v167, 1e-05
  %v169 = vrsqrt.pop %v168
  %v170 = vmul.f32 %v169, %v168
  %v171 = vmul.f32 %v170, %v169
  %v172 = vmul.f32 0.5, %v171
  %v173 = vsub.f32 1.5, %v172
  %v174 = vmul.f32 %v169, %v173
  %vm175 = vweird.f32 %v168
  %vm176 = vweird.f32 %v169
  %vm177 = vmor %vm175, %vm176
  %v178 = vsel %vm177, %v169, %v174
  %v179 = vmul.f32 %v162, %v178
  %v180 = vld [vmem:[%s7] sm:$0x1]
  %v182 = vperm.slane %v180, 0
  %v184 = vmul.f32 %v179, %v182
  %v185 = vld [vmem:[%s8] sm:$0x1]
  %v187 = vperm.slane %v185, 0
  %v189 = vadd.f32 %v184, %v187
  %v190 = vmax.f32 %v189, 0.0
  %v191 = vld [vmem:[%s12] sm:$0xff]
  %v192 = vsub.f32 %v191, 1.0
  %v193 = vmul.f32 %v192, 1e+30
  %v194 = vld [vmem:[%s9] sm:$0xff]
  %v195 = vld [vmem:[%s9 + $0x8] sm:$0xff]
  %v196 = vld [vmem:[%s9 + $0x10] sm:$0xff]
  %v197 = vld [vmem:[%s9 + $0x18] sm:$0xff]
  %v198 = vld [vmem:[%s10] sm:$0x1]
  %v200 = vperm.slane %v198, 0
  %v203 = vsel %vm122, %v190, 0
  %205 = vmatpush.msra.mxu0 0.0
  %206 = vmatpush.msra.mxu0 0.0
  %207 = vmatpush.msra.mxu0 0.0
  %208 = vmatpush.msra.mxu0 0.0
  %209 = vmatpush.msra.mxu0 0.0
  %210 = vmatpush.msra.mxu0 0.0
  %211 = vmatpush.msra.mxu0 0.0
  %212 = vmatpush.msra.mxu0 0.0
  %213 = vmatpush.msra.mxu0 0.0
  %214 = vmatpush.msra.mxu0 0.0
  %215 = vmatpush.msra.mxu0 0.0
  %216 = vmatpush.msra.mxu0 0.0
  %217 = vmatpush.msra.mxu0 %v197
  %218 = vmatpush.msra.mxu0 %v196
  %219 = vmatpush.msra.mxu0 %v195
  %220 = vmatpush.msra.mxu0 %v194
  %221 = vmatmul.f32.gmra.mxu0 %v203
  %v222 = vpop.f32.mrf.mxu0
  %v223 = vadd.f32 %v200, %v222
  %224 = vdwg.mxu0
  %v225 = vld [vmem:[%s11] sm:$0xff]
  %v226 = vld [vmem:[%s11 + $0x8] sm:$0xff]
  %v227 = vld [vmem:[%s11 + $0x10] sm:$0xff]
  %v228 = vld [vmem:[%s11 + $0x18] sm:$0xff]
  %v229 = vld [vmem:[%s11 + $0x20] sm:$0xff]
  %v230 = vld [vmem:[%s11 + $0x28] sm:$0xff]
  %v231 = vld [vmem:[%s11 + $0x30] sm:$0xff]
  %v232 = vld [vmem:[%s11 + $0x38] sm:$0xff]
  %v234 = vrot.slane %v223, 1
  %v235 = vrot.slane %v223, 2
  %v236 = vrot.slane %v223, 3
  %v237 = vrot.slane %v223, 4
  %v238 = vrot.slane %v223, 5
  %v239 = vrot.slane %v223, 6
  %v240 = vrot.slane %v223, 7
  %v241 = vsel %vm122, %v223, 0
  %v244 = vsel %vm122, %v225, 0
  %246 = vmatpush.xpose.msra.mxu0 0.0
  %247 = vmatpush.xpose.msra.mxu0 0.0
  %248 = vmatpush.xpose.msra.mxu0 0.0
  %249 = vmatpush.xpose.msra.mxu0 0.0
  %250 = vmatpush.xpose.msra.mxu0 0.0
  %251 = vmatpush.xpose.msra.mxu0 0.0
  %252 = vmatpush.xpose.msra.mxu0 0.0
  %253 = vmatpush.xpose.msra.mxu0 0.0
  %254 = vmatpush.xpose.msra.mxu0 0.0
  %255 = vmatpush.xpose.msra.mxu0 0.0
  %256 = vmatpush.xpose.msra.mxu0 0.0
  %257 = vmatpush.xpose.msra.mxu0 0.0
  %258 = vmatpush.xpose.msra.mxu0 0.0
  %259 = vmatpush.xpose.msra.mxu0 0.0
  %260 = vmatpush.xpose.msra.mxu0 0.0
  %261 = vmatpush.xpose.msra.mxu0 %v244
  %262 = vmatmul.f32.gmra.mxu0 %v241
  %v263 = vpop.f32.mrf.mxu0
  %v264 = vadd.f32 0.0, %v263
  %265 = vdwg.mxu0
  %v266 = vsel %vm122, %v234, 0
  %v269 = vsel %vm122, %v226, 0
  %271 = vmatpush.xpose.msra.mxu0 0.0
  %272 = vmatpush.xpose.msra.mxu0 0.0
  %273 = vmatpush.xpose.msra.mxu0 0.0
  %274 = vmatpush.xpose.msra.mxu0 0.0
  %275 = vmatpush.xpose.msra.mxu0 0.0
  %276 = vmatpush.xpose.msra.mxu0 0.0
  %277 = vmatpush.xpose.msra.mxu0 0.0
  %278 = vmatpush.xpose.msra.mxu0 0.0
  %279 = vmatpush.xpose.msra.mxu0 0.0
  %280 = vmatpush.xpose.msra.mxu0 0.0
  %281 = vmatpush.xpose.msra.mxu0 0.0
  %282 = vmatpush.xpose.msra.mxu0 0.0
  %283 = vmatpush.xpose.msra.mxu0 0.0
  %284 = vmatpush.xpose.msra.mxu0 0.0
  %285 = vmatpush.xpose.msra.mxu0 0.0
  %286 = vmatpush.xpose.msra.mxu0 %v269
  %287 = vmatmul.f32.gmra.mxu0 %v266
  %v288 = vpop.f32.mrf.mxu0
  %v289 = vadd.f32 0.0, %v288
  %290 = vdwg.mxu0
  %v291 = vsel %vm122, %v235, 0
  %v294 = vsel %vm122, %v227, 0
  %296 = vmatpush.xpose.msra.mxu0 0.0
  %297 = vmatpush.xpose.msra.mxu0 0.0
  %298 = vmatpush.xpose.msra.mxu0 0.0
  %299 = vmatpush.xpose.msra.mxu0 0.0
  %300 = vmatpush.xpose.msra.mxu0 0.0
  %301 = vmatpush.xpose.msra.mxu0 0.0
  %302 = vmatpush.xpose.msra.mxu0 0.0
  %303 = vmatpush.xpose.msra.mxu0 0.0
  %304 = vmatpush.xpose.msra.mxu0 0.0
  %305 = vmatpush.xpose.msra.mxu0 0.0
  %306 = vmatpush.xpose.msra.mxu0 0.0
  %307 = vmatpush.xpose.msra.mxu0 0.0
  %308 = vmatpush.xpose.msra.mxu0 0.0
  %309 = vmatpush.xpose.msra.mxu0 0.0
  %310 = vmatpush.xpose.msra.mxu0 0.0
  %311 = vmatpush.xpose.msra.mxu0 %v294
  %312 = vmatmul.f32.gmra.mxu0 %v291
  %v313 = vpop.f32.mrf.mxu0
  %v314 = vadd.f32 0.0, %v313
  %315 = vdwg.mxu0
  %v316 = vsel %vm122, %v236, 0
  %v319 = vsel %vm122, %v228, 0
  %321 = vmatpush.xpose.msra.mxu0 0.0
  %322 = vmatpush.xpose.msra.mxu0 0.0
  %323 = vmatpush.xpose.msra.mxu0 0.0
  %324 = vmatpush.xpose.msra.mxu0 0.0
  %325 = vmatpush.xpose.msra.mxu0 0.0
  %326 = vmatpush.xpose.msra.mxu0 0.0
  %327 = vmatpush.xpose.msra.mxu0 0.0
  %328 = vmatpush.xpose.msra.mxu0 0.0
  %329 = vmatpush.xpose.msra.mxu0 0.0
  %330 = vmatpush.xpose.msra.mxu0 0.0
  %331 = vmatpush.xpose.msra.mxu0 0.0
  %332 = vmatpush.xpose.msra.mxu0 0.0
  %333 = vmatpush.xpose.msra.mxu0 0.0
  %334 = vmatpush.xpose.msra.mxu0 0.0
  %335 = vmatpush.xpose.msra.mxu0 0.0
  %336 = vmatpush.xpose.msra.mxu0 %v319
  %337 = vmatmul.f32.gmra.mxu0 %v316
  %v338 = vpop.f32.mrf.mxu0
  %v339 = vadd.f32 0.0, %v338
  %340 = vdwg.mxu0
  %v341 = vsel %vm122, %v237, 0
  %v344 = vsel %vm122, %v229, 0
  %346 = vmatpush.xpose.msra.mxu0 0.0
  %347 = vmatpush.xpose.msra.mxu0 0.0
  %348 = vmatpush.xpose.msra.mxu0 0.0
  %349 = vmatpush.xpose.msra.mxu0 0.0
  %350 = vmatpush.xpose.msra.mxu0 0.0
  %351 = vmatpush.xpose.msra.mxu0 0.0
  %352 = vmatpush.xpose.msra.mxu0 0.0
  %353 = vmatpush.xpose.msra.mxu0 0.0
  %354 = vmatpush.xpose.msra.mxu0 0.0
  %355 = vmatpush.xpose.msra.mxu0 0.0
  %356 = vmatpush.xpose.msra.mxu0 0.0
  %357 = vmatpush.xpose.msra.mxu0 0.0
  %358 = vmatpush.xpose.msra.mxu0 0.0
  %359 = vmatpush.xpose.msra.mxu0 0.0
  %360 = vmatpush.xpose.msra.mxu0 0.0
  %361 = vmatpush.xpose.msra.mxu0 %v344
  %362 = vmatmul.f32.gmra.mxu0 %v341
  %v363 = vpop.f32.mrf.mxu0
  %v364 = vadd.f32 0.0, %v363
  %365 = vdwg.mxu0
  %v366 = vsel %vm122, %v238, 0
  %v369 = vsel %vm122, %v230, 0
  %371 = vmatpush.xpose.msra.mxu0 0.0
  %372 = vmatpush.xpose.msra.mxu0 0.0
  %373 = vmatpush.xpose.msra.mxu0 0.0
  %374 = vmatpush.xpose.msra.mxu0 0.0
  %375 = vmatpush.xpose.msra.mxu0 0.0
  %376 = vmatpush.xpose.msra.mxu0 0.0
  %377 = vmatpush.xpose.msra.mxu0 0.0
  %378 = vmatpush.xpose.msra.mxu0 0.0
  %379 = vmatpush.xpose.msra.mxu0 0.0
  %380 = vmatpush.xpose.msra.mxu0 0.0
  %381 = vmatpush.xpose.msra.mxu0 0.0
  %382 = vmatpush.xpose.msra.mxu0 0.0
  %383 = vmatpush.xpose.msra.mxu0 0.0
  %384 = vmatpush.xpose.msra.mxu0 0.0
  %385 = vmatpush.xpose.msra.mxu0 0.0
  %386 = vmatpush.xpose.msra.mxu0 %v369
  %387 = vmatmul.f32.gmra.mxu0 %v366
  %v388 = vpop.f32.mrf.mxu0
  %v389 = vadd.f32 0.0, %v388
  %390 = vdwg.mxu0
  %v391 = vsel %vm122, %v239, 0
  %v394 = vsel %vm122, %v231, 0
  %396 = vmatpush.xpose.msra.mxu0 0.0
  %397 = vmatpush.xpose.msra.mxu0 0.0
  %398 = vmatpush.xpose.msra.mxu0 0.0
  %399 = vmatpush.xpose.msra.mxu0 0.0
  %400 = vmatpush.xpose.msra.mxu0 0.0
  %401 = vmatpush.xpose.msra.mxu0 0.0
  %402 = vmatpush.xpose.msra.mxu0 0.0
  %403 = vmatpush.xpose.msra.mxu0 0.0
  %404 = vmatpush.xpose.msra.mxu0 0.0
  %405 = vmatpush.xpose.msra.mxu0 0.0
  %406 = vmatpush.xpose.msra.mxu0 0.0
  %407 = vmatpush.xpose.msra.mxu0 0.0
  %408 = vmatpush.xpose.msra.mxu0 0.0
  %409 = vmatpush.xpose.msra.mxu0 0.0
  %410 = vmatpush.xpose.msra.mxu0 0.0
  %411 = vmatpush.xpose.msra.mxu0 %v394
  %412 = vmatmul.f32.gmra.mxu0 %v391
  %v413 = vpop.f32.mrf.mxu0
  %v414 = vadd.f32 0.0, %v413
  %415 = vdwg.mxu0
  %v416 = vsel %vm122, %v240, 0
  %v419 = vsel %vm122, %v232, 0
  %421 = vmatpush.xpose.msra.mxu0 0.0
  %422 = vmatpush.xpose.msra.mxu0 0.0
  %423 = vmatpush.xpose.msra.mxu0 0.0
  %424 = vmatpush.xpose.msra.mxu0 0.0
  %425 = vmatpush.xpose.msra.mxu0 0.0
  %426 = vmatpush.xpose.msra.mxu0 0.0
  %427 = vmatpush.xpose.msra.mxu0 0.0
  %428 = vmatpush.xpose.msra.mxu0 0.0
  %429 = vmatpush.xpose.msra.mxu0 0.0
  %430 = vmatpush.xpose.msra.mxu0 0.0
  %431 = vmatpush.xpose.msra.mxu0 0.0
  %432 = vmatpush.xpose.msra.mxu0 0.0
  %433 = vmatpush.xpose.msra.mxu0 0.0
  %434 = vmatpush.xpose.msra.mxu0 0.0
  %435 = vmatpush.xpose.msra.mxu0 0.0
  %436 = vmatpush.xpose.msra.mxu0 %v419
  %437 = vmatmul.f32.gmra.mxu0 %v416
  %v438 = vpop.f32.mrf.mxu0
  %v439 = vadd.f32 0.0, %v438
  %440 = vdwg.mxu0
  %441 = vrot.lane.b32.xlu0 %v223, 96
  %v442 = vpop.permute.xlu0 %441
  %v451 = vrot.slane %v289, 7
  %vm452 = vcmask 1041409
  %v453 = vsel %vm452, %v451, %v264
  %v454 = vrot.slane %v314, 6
  %vm455 = vcmask 1042434
  %v456 = vsel %vm455, %v454, %v453
  %v457 = vrot.slane %v339, 5
  %vm458 = vcmask 1043459
  %v459 = vsel %vm458, %v457, %v456
  %v460 = vrot.slane %v364, 4
  %vm461 = vcmask 1044484
  %v462 = vsel %vm461, %v460, %v459
  %v463 = vrot.slane %v389, 3
  %vm464 = vcmask 1045509
  %v465 = vsel %vm464, %v463, %v462
  %v466 = vrot.slane %v414, 2
  %vm467 = vcmask 1046534
  %v468 = vsel %vm467, %v466, %v465
  %v469 = vrot.slane %v439, 1
  %vm470 = vcmask 1047559
  %v471 = vsel %vm470, %v469, %v468
  %v473 = vsel %vm122, %v442, 0
  %475 = vmatpush.xpose.msra.mxu0 0.0
  %476 = vmatpush.xpose.msra.mxu0 0.0
  %477 = vmatpush.xpose.msra.mxu0 0.0
  %478 = vmatpush.xpose.msra.mxu0 0.0
  %479 = vmatpush.xpose.msra.mxu0 0.0
  %480 = vmatpush.xpose.msra.mxu0 0.0
  %481 = vmatpush.xpose.msra.mxu0 0.0
  %482 = vmatpush.xpose.msra.mxu0 0.0
  %483 = vmatpush.xpose.msra.mxu0 0.0
  %484 = vmatpush.xpose.msra.mxu0 0.0
  %485 = vmatpush.xpose.msra.mxu0 0.0
  %486 = vmatpush.xpose.msra.mxu0 0.0
  %487 = vmatpush.xpose.msra.mxu0 0.0
  %488 = vmatpush.xpose.msra.mxu0 0.0
  %489 = vmatpush.xpose.msra.mxu0 0.0
  %490 = vmatpush.xpose.msra.mxu0 %v473
  %491 = vmatmul.f32.gmra.mxu0 %v241
  %v492 = vpop.f32.mrf.mxu0
  %v493 = vadd.f32 %v471, %v492
  %494 = vdwg.mxu0
  %v495 = vadd.f32 %v493, %v193
  %vm496 = vcmask 64512
  %v497 = vsel %vm496, %v495, -inf
  %498 = vmax.xlane.f32.xlu0 %v497
  %v499 = vpop.xlane.xlu0 %498
  %v500 = vsub.f32 %v495, %v499
  %v501 = vmul.f32 %v500, 1.442695
  %v502 = vpow.pop %v501
  %v503 = vmul.f32 %v502, %v191
  %v504 = vsel %vm496, %v503, 0.0
  %505 = vadd.xlane.f32.xlu0 %v504
  %v506 = vpop.xlane.xlu0 %505
  %v507 = vmax.f32 %v506, 1e-30
  %v508 = vrcp.pop %v507
  %v509 = vmul.f32 %v503, %v508
  %v511 = vrot.slane %v509, 1
  %v512 = vrot.slane %v509, 2
  %v513 = vrot.slane %v509, 3
  %v514 = vrot.slane %v509, 4
  %v515 = vrot.slane %v509, 5
  %v516 = vrot.slane %v509, 6
  %v517 = vrot.slane %v509, 7
  %v518 = vsel %vm496, %v509, 0
  %520 = vmatpush.msra.mxu0 0.0
  %521 = vmatpush.msra.mxu0 0.0
  %522 = vmatpush.msra.mxu0 0.0
  %523 = vmatpush.msra.mxu0 0.0
  %524 = vmatpush.msra.mxu0 0.0
  %525 = vmatpush.msra.mxu0 0.0
  %526 = vmatpush.msra.mxu0 0.0
  %527 = vmatpush.msra.mxu0 0.0
  %528 = vmatpush.msra.mxu0 0.0
  %529 = vmatpush.msra.mxu0 0.0
  %530 = vmatpush.msra.mxu0 0.0
  %531 = vmatpush.msra.mxu0 0.0
  %532 = vmatpush.msra.mxu0 0.0
  %533 = vmatpush.msra.mxu0 0.0
  %534 = vmatpush.msra.mxu0 0.0
  %535 = vmatpush.msra.mxu0 %v225
  %536 = vmatmul.f32.gmra.mxu0 %v518
  %v537 = vpop.f32.mrf.mxu0
  %v538 = vadd.f32 0.0, %v537
  %539 = vdwg.mxu0
  %v540 = vsel %vm496, %v511, 0
  %542 = vmatpush.msra.mxu0 0.0
  %543 = vmatpush.msra.mxu0 0.0
  %544 = vmatpush.msra.mxu0 0.0
  %545 = vmatpush.msra.mxu0 0.0
  %546 = vmatpush.msra.mxu0 0.0
  %547 = vmatpush.msra.mxu0 0.0
  %548 = vmatpush.msra.mxu0 0.0
  %549 = vmatpush.msra.mxu0 0.0
  %550 = vmatpush.msra.mxu0 0.0
  %551 = vmatpush.msra.mxu0 0.0
  %552 = vmatpush.msra.mxu0 0.0
  %553 = vmatpush.msra.mxu0 0.0
  %554 = vmatpush.msra.mxu0 0.0
  %555 = vmatpush.msra.mxu0 0.0
  %556 = vmatpush.msra.mxu0 0.0
  %557 = vmatpush.msra.mxu0 %v226
  %558 = vmatmul.f32.gmra.mxu0 %v540
  %v559 = vpop.f32.mrf.mxu0
  %v560 = vadd.f32 0.0, %v559
  %561 = vdwg.mxu0
  %v562 = vsel %vm496, %v512, 0
  %564 = vmatpush.msra.mxu0 0.0
  %565 = vmatpush.msra.mxu0 0.0
  %566 = vmatpush.msra.mxu0 0.0
  %567 = vmatpush.msra.mxu0 0.0
  %568 = vmatpush.msra.mxu0 0.0
  %569 = vmatpush.msra.mxu0 0.0
  %570 = vmatpush.msra.mxu0 0.0
  %571 = vmatpush.msra.mxu0 0.0
  %572 = vmatpush.msra.mxu0 0.0
  %573 = vmatpush.msra.mxu0 0.0
  %574 = vmatpush.msra.mxu0 0.0
  %575 = vmatpush.msra.mxu0 0.0
  %576 = vmatpush.msra.mxu0 0.0
  %577 = vmatpush.msra.mxu0 0.0
  %578 = vmatpush.msra.mxu0 0.0
  %579 = vmatpush.msra.mxu0 %v227
  %580 = vmatmul.f32.gmra.mxu0 %v562
  %v581 = vpop.f32.mrf.mxu0
  %v582 = vadd.f32 0.0, %v581
  %583 = vdwg.mxu0
  %v584 = vsel %vm496, %v513, 0
  %586 = vmatpush.msra.mxu0 0.0
  %587 = vmatpush.msra.mxu0 0.0
  %588 = vmatpush.msra.mxu0 0.0
  %589 = vmatpush.msra.mxu0 0.0
  %590 = vmatpush.msra.mxu0 0.0
  %591 = vmatpush.msra.mxu0 0.0
  %592 = vmatpush.msra.mxu0 0.0
  %593 = vmatpush.msra.mxu0 0.0
  %594 = vmatpush.msra.mxu0 0.0
  %595 = vmatpush.msra.mxu0 0.0
  %596 = vmatpush.msra.mxu0 0.0
  %597 = vmatpush.msra.mxu0 0.0
  %598 = vmatpush.msra.mxu0 0.0
  %599 = vmatpush.msra.mxu0 0.0
  %600 = vmatpush.msra.mxu0 0.0
  %601 = vmatpush.msra.mxu0 %v228
  %602 = vmatmul.f32.gmra.mxu0 %v584
  %v603 = vpop.f32.mrf.mxu0
  %v604 = vadd.f32 0.0, %v603
  %605 = vdwg.mxu0
  %v606 = vsel %vm496, %v514, 0
  %608 = vmatpush.msra.mxu0 0.0
  %609 = vmatpush.msra.mxu0 0.0
  %610 = vmatpush.msra.mxu0 0.0
  %611 = vmatpush.msra.mxu0 0.0
  %612 = vmatpush.msra.mxu0 0.0
  %613 = vmatpush.msra.mxu0 0.0
  %614 = vmatpush.msra.mxu0 0.0
  %615 = vmatpush.msra.mxu0 0.0
  %616 = vmatpush.msra.mxu0 0.0
  %617 = vmatpush.msra.mxu0 0.0
  %618 = vmatpush.msra.mxu0 0.0
  %619 = vmatpush.msra.mxu0 0.0
  %620 = vmatpush.msra.mxu0 0.0
  %621 = vmatpush.msra.mxu0 0.0
  %622 = vmatpush.msra.mxu0 0.0
  %623 = vmatpush.msra.mxu0 %v229
  %624 = vmatmul.f32.gmra.mxu0 %v606
  %v625 = vpop.f32.mrf.mxu0
  %v626 = vadd.f32 0.0, %v625
  %627 = vdwg.mxu0
  %v628 = vsel %vm496, %v515, 0
  %630 = vmatpush.msra.mxu0 0.0
  %631 = vmatpush.msra.mxu0 0.0
  %632 = vmatpush.msra.mxu0 0.0
  %633 = vmatpush.msra.mxu0 0.0
  %634 = vmatpush.msra.mxu0 0.0
  %635 = vmatpush.msra.mxu0 0.0
  %636 = vmatpush.msra.mxu0 0.0
  %637 = vmatpush.msra.mxu0 0.0
  %638 = vmatpush.msra.mxu0 0.0
  %639 = vmatpush.msra.mxu0 0.0
  %640 = vmatpush.msra.mxu0 0.0
  %641 = vmatpush.msra.mxu0 0.0
  %642 = vmatpush.msra.mxu0 0.0
  %643 = vmatpush.msra.mxu0 0.0
  %644 = vmatpush.msra.mxu0 0.0
  %645 = vmatpush.msra.mxu0 %v230
  %646 = vmatmul.f32.gmra.mxu0 %v628
  %v647 = vpop.f32.mrf.mxu0
  %v648 = vadd.f32 0.0, %v647
  %649 = vdwg.mxu0
  %v650 = vsel %vm496, %v516, 0
  %652 = vmatpush.msra.mxu0 0.0
  %653 = vmatpush.msra.mxu0 0.0
  %654 = vmatpush.msra.mxu0 0.0
  %655 = vmatpush.msra.mxu0 0.0
  %656 = vmatpush.msra.mxu0 0.0
  %657 = vmatpush.msra.mxu0 0.0
  %658 = vmatpush.msra.mxu0 0.0
  %659 = vmatpush.msra.mxu0 0.0
  %660 = vmatpush.msra.mxu0 0.0
  %661 = vmatpush.msra.mxu0 0.0
  %662 = vmatpush.msra.mxu0 0.0
  %663 = vmatpush.msra.mxu0 0.0
  %664 = vmatpush.msra.mxu0 0.0
  %665 = vmatpush.msra.mxu0 0.0
  %666 = vmatpush.msra.mxu0 0.0
  %667 = vmatpush.msra.mxu0 %v231
  %668 = vmatmul.f32.gmra.mxu0 %v650
  %v669 = vpop.f32.mrf.mxu0
  %v670 = vadd.f32 0.0, %v669
  %671 = vdwg.mxu0
  %v672 = vsel %vm496, %v517, 0
  %674 = vmatpush.msra.mxu0 0.0
  %675 = vmatpush.msra.mxu0 0.0
  %676 = vmatpush.msra.mxu0 0.0
  %677 = vmatpush.msra.mxu0 0.0
  %678 = vmatpush.msra.mxu0 0.0
  %679 = vmatpush.msra.mxu0 0.0
  %680 = vmatpush.msra.mxu0 0.0
  %681 = vmatpush.msra.mxu0 0.0
  %682 = vmatpush.msra.mxu0 0.0
  %683 = vmatpush.msra.mxu0 0.0
  %684 = vmatpush.msra.mxu0 0.0
  %685 = vmatpush.msra.mxu0 0.0
  %686 = vmatpush.msra.mxu0 0.0
  %687 = vmatpush.msra.mxu0 0.0
  %688 = vmatpush.msra.mxu0 0.0
  %689 = vmatpush.msra.mxu0 %v232
  %690 = vmatmul.f32.gmra.mxu0 %v672
  %v691 = vpop.f32.mrf.mxu0
  %v692 = vadd.f32 0.0, %v691
  %693 = vdwg.mxu0
  %694 = vrot.lane.b32.xlu0 %v223, 64
  %v695 = vpop.permute.xlu0 %694
  %v705 = vrot.slane %v560, 7
  %v706 = vsel %vm452, %v705, %v538
  %v707 = vrot.slane %v582, 6
  %v708 = vsel %vm455, %v707, %v706
  %v709 = vrot.slane %v604, 5
  %v710 = vsel %vm458, %v709, %v708
  %v711 = vrot.slane %v626, 4
  %v712 = vsel %vm461, %v711, %v710
  %v713 = vrot.slane %v648, 3
  %v714 = vsel %vm464, %v713, %v712
  %v715 = vrot.slane %v670, 2
  %v716 = vsel %vm467, %v715, %v714
  %v717 = vrot.slane %v692, 1
  %v718 = vsel %vm470, %v717, %v716
  %720 = vmatpush.msra.mxu0 0.0
  %721 = vmatpush.msra.mxu0 0.0
  %722 = vmatpush.msra.mxu0 0.0
  %723 = vmatpush.msra.mxu0 0.0
  %724 = vmatpush.msra.mxu0 0.0
  %725 = vmatpush.msra.mxu0 0.0
  %726 = vmatpush.msra.mxu0 0.0
  %727 = vmatpush.msra.mxu0 0.0
  %728 = vmatpush.msra.mxu0 0.0
  %729 = vmatpush.msra.mxu0 0.0
  %730 = vmatpush.msra.mxu0 0.0
  %731 = vmatpush.msra.mxu0 0.0
  %732 = vmatpush.msra.mxu0 0.0
  %733 = vmatpush.msra.mxu0 0.0
  %734 = vmatpush.msra.mxu0 0.0
  %735 = vmatpush.msra.mxu0 %v695
  %736 = vmatmul.f32.gmra.mxu0 %v518
  %v737 = vpop.f32.mrf.mxu0
  %v738 = vadd.f32 %v718, %v737
  %739 = vdwg.mxu0
  %740 = vrot.lane.b32.xlu0 %v223, 32
  %v741 = vpop.permute.xlu0 %740
  %v743 = vadd.f32 %v738, %v741
  %v744 = vmax.f32 %v743, 0.0
  %v745 = vadd.f32 %v190, %v744
  %s746 = scalar_lea.vmem %s9, 32
  %v747 = vld [vmem:[%s746] sm:$0xff]
  %v748 = vld [vmem:[%s746 + $0x8] sm:$0xff]
  %v749 = vld [vmem:[%s746 + $0x10] sm:$0xff]
  %v750 = vld [vmem:[%s746 + $0x18] sm:$0xff]
  %s751 = scalar_lea.vmem %s10, 1
  %v752 = vld [vmem:[%s751] sm:$0x1]
  %v754 = vperm.slane %v752, 0
  %v757 = vsel %vm122, %v745, 0
  %759 = vmatpush.msra.mxu0 0.0
  %760 = vmatpush.msra.mxu0 0.0
  %761 = vmatpush.msra.mxu0 0.0
  %762 = vmatpush.msra.mxu0 0.0
  %763 = vmatpush.msra.mxu0 0.0
  %764 = vmatpush.msra.mxu0 0.0
  %765 = vmatpush.msra.mxu0 0.0
  %766 = vmatpush.msra.mxu0 0.0
  %767 = vmatpush.msra.mxu0 0.0
  %768 = vmatpush.msra.mxu0 0.0
  %769 = vmatpush.msra.mxu0 0.0
  %770 = vmatpush.msra.mxu0 0.0
  %771 = vmatpush.msra.mxu0 %v750
  %772 = vmatpush.msra.mxu0 %v749
  %773 = vmatpush.msra.mxu0 %v748
  %774 = vmatpush.msra.mxu0 %v747
  %775 = vmatmul.f32.gmra.mxu0 %v757
  %v776 = vpop.f32.mrf.mxu0
  %v777 = vadd.f32 %v754, %v776
  %778 = vdwg.mxu0
  %s779 = scalar_lea.vmem %s11, 64
  %v780 = vld [vmem:[%s779] sm:$0xff]
  %v781 = vld [vmem:[%s779 + $0x8] sm:$0xff]
  %v782 = vld [vmem:[%s779 + $0x10] sm:$0xff]
  %v783 = vld [vmem:[%s779 + $0x18] sm:$0xff]
  %v784 = vld [vmem:[%s779 + $0x20] sm:$0xff]
  %v785 = vld [vmem:[%s779 + $0x28] sm:$0xff]
  %v786 = vld [vmem:[%s779 + $0x30] sm:$0xff]
  %v787 = vld [vmem:[%s779 + $0x38] sm:$0xff]
  %v789 = vrot.slane %v777, 1
  %v790 = vrot.slane %v777, 2
  %v791 = vrot.slane %v777, 3
  %v792 = vrot.slane %v777, 4
  %v793 = vrot.slane %v777, 5
  %v794 = vrot.slane %v777, 6
  %v795 = vrot.slane %v777, 7
  %v796 = vsel %vm122, %v777, 0
  %v799 = vsel %vm122, %v780, 0
  %801 = vmatpush.xpose.msra.mxu0 0.0
  %802 = vmatpush.xpose.msra.mxu0 0.0
  %803 = vmatpush.xpose.msra.mxu0 0.0
  %804 = vmatpush.xpose.msra.mxu0 0.0
  %805 = vmatpush.xpose.msra.mxu0 0.0
  %806 = vmatpush.xpose.msra.mxu0 0.0
  %807 = vmatpush.xpose.msra.mxu0 0.0
  %808 = vmatpush.xpose.msra.mxu0 0.0
  %809 = vmatpush.xpose.msra.mxu0 0.0
  %810 = vmatpush.xpose.msra.mxu0 0.0
  %811 = vmatpush.xpose.msra.mxu0 0.0
  %812 = vmatpush.xpose.msra.mxu0 0.0
  %813 = vmatpush.xpose.msra.mxu0 0.0
  %814 = vmatpush.xpose.msra.mxu0 0.0
  %815 = vmatpush.xpose.msra.mxu0 0.0
  %816 = vmatpush.xpose.msra.mxu0 %v799
  %817 = vmatmul.f32.gmra.mxu0 %v796
  %v818 = vpop.f32.mrf.mxu0
  %v819 = vadd.f32 0.0, %v818
  %820 = vdwg.mxu0
  %v821 = vsel %vm122, %v789, 0
  %v824 = vsel %vm122, %v781, 0
  %826 = vmatpush.xpose.msra.mxu0 0.0
  %827 = vmatpush.xpose.msra.mxu0 0.0
  %828 = vmatpush.xpose.msra.mxu0 0.0
  %829 = vmatpush.xpose.msra.mxu0 0.0
  %830 = vmatpush.xpose.msra.mxu0 0.0
  %831 = vmatpush.xpose.msra.mxu0 0.0
  %832 = vmatpush.xpose.msra.mxu0 0.0
  %833 = vmatpush.xpose.msra.mxu0 0.0
  %834 = vmatpush.xpose.msra.mxu0 0.0
  %835 = vmatpush.xpose.msra.mxu0 0.0
  %836 = vmatpush.xpose.msra.mxu0 0.0
  %837 = vmatpush.xpose.msra.mxu0 0.0
  %838 = vmatpush.xpose.msra.mxu0 0.0
  %839 = vmatpush.xpose.msra.mxu0 0.0
  %840 = vmatpush.xpose.msra.mxu0 0.0
  %841 = vmatpush.xpose.msra.mxu0 %v824
  %842 = vmatmul.f32.gmra.mxu0 %v821
  %v843 = vpop.f32.mrf.mxu0
  %v844 = vadd.f32 0.0, %v843
  %845 = vdwg.mxu0
  %v846 = vsel %vm122, %v790, 0
  %v849 = vsel %vm122, %v782, 0
  %851 = vmatpush.xpose.msra.mxu0 0.0
  %852 = vmatpush.xpose.msra.mxu0 0.0
  %853 = vmatpush.xpose.msra.mxu0 0.0
  %854 = vmatpush.xpose.msra.mxu0 0.0
  %855 = vmatpush.xpose.msra.mxu0 0.0
  %856 = vmatpush.xpose.msra.mxu0 0.0
  %857 = vmatpush.xpose.msra.mxu0 0.0
  %858 = vmatpush.xpose.msra.mxu0 0.0
  %859 = vmatpush.xpose.msra.mxu0 0.0
  %860 = vmatpush.xpose.msra.mxu0 0.0
  %861 = vmatpush.xpose.msra.mxu0 0.0
  %862 = vmatpush.xpose.msra.mxu0 0.0
  %863 = vmatpush.xpose.msra.mxu0 0.0
  %864 = vmatpush.xpose.msra.mxu0 0.0
  %865 = vmatpush.xpose.msra.mxu0 0.0
  %866 = vmatpush.xpose.msra.mxu0 %v849
  %867 = vmatmul.f32.gmra.mxu0 %v846
  %v868 = vpop.f32.mrf.mxu0
  %v869 = vadd.f32 0.0, %v868
  %870 = vdwg.mxu0
  %v871 = vsel %vm122, %v791, 0
  %v874 = vsel %vm122, %v783, 0
  %876 = vmatpush.xpose.msra.mxu0 0.0
  %877 = vmatpush.xpose.msra.mxu0 0.0
  %878 = vmatpush.xpose.msra.mxu0 0.0
  %879 = vmatpush.xpose.msra.mxu0 0.0
  %880 = vmatpush.xpose.msra.mxu0 0.0
  %881 = vmatpush.xpose.msra.mxu0 0.0
  %882 = vmatpush.xpose.msra.mxu0 0.0
  %883 = vmatpush.xpose.msra.mxu0 0.0
  %884 = vmatpush.xpose.msra.mxu0 0.0
  %885 = vmatpush.xpose.msra.mxu0 0.0
  %886 = vmatpush.xpose.msra.mxu0 0.0
  %887 = vmatpush.xpose.msra.mxu0 0.0
  %888 = vmatpush.xpose.msra.mxu0 0.0
  %889 = vmatpush.xpose.msra.mxu0 0.0
  %890 = vmatpush.xpose.msra.mxu0 0.0
  %891 = vmatpush.xpose.msra.mxu0 %v874
  %892 = vmatmul.f32.gmra.mxu0 %v871
  %v893 = vpop.f32.mrf.mxu0
  %v894 = vadd.f32 0.0, %v893
  %895 = vdwg.mxu0
  %v896 = vsel %vm122, %v792, 0
  %v899 = vsel %vm122, %v784, 0
  %901 = vmatpush.xpose.msra.mxu0 0.0
  %902 = vmatpush.xpose.msra.mxu0 0.0
  %903 = vmatpush.xpose.msra.mxu0 0.0
  %904 = vmatpush.xpose.msra.mxu0 0.0
  %905 = vmatpush.xpose.msra.mxu0 0.0
  %906 = vmatpush.xpose.msra.mxu0 0.0
  %907 = vmatpush.xpose.msra.mxu0 0.0
  %908 = vmatpush.xpose.msra.mxu0 0.0
  %909 = vmatpush.xpose.msra.mxu0 0.0
  %910 = vmatpush.xpose.msra.mxu0 0.0
  %911 = vmatpush.xpose.msra.mxu0 0.0
  %912 = vmatpush.xpose.msra.mxu0 0.0
  %913 = vmatpush.xpose.msra.mxu0 0.0
  %914 = vmatpush.xpose.msra.mxu0 0.0
  %915 = vmatpush.xpose.msra.mxu0 0.0
  %916 = vmatpush.xpose.msra.mxu0 %v899
  %917 = vmatmul.f32.gmra.mxu0 %v896
  %v918 = vpop.f32.mrf.mxu0
  %v919 = vadd.f32 0.0, %v918
  %920 = vdwg.mxu0
  %v921 = vsel %vm122, %v793, 0
  %v924 = vsel %vm122, %v785, 0
  %926 = vmatpush.xpose.msra.mxu0 0.0
  %927 = vmatpush.xpose.msra.mxu0 0.0
  %928 = vmatpush.xpose.msra.mxu0 0.0
  %929 = vmatpush.xpose.msra.mxu0 0.0
  %930 = vmatpush.xpose.msra.mxu0 0.0
  %931 = vmatpush.xpose.msra.mxu0 0.0
  %932 = vmatpush.xpose.msra.mxu0 0.0
  %933 = vmatpush.xpose.msra.mxu0 0.0
  %934 = vmatpush.xpose.msra.mxu0 0.0
  %935 = vmatpush.xpose.msra.mxu0 0.0
  %936 = vmatpush.xpose.msra.mxu0 0.0
  %937 = vmatpush.xpose.msra.mxu0 0.0
  %938 = vmatpush.xpose.msra.mxu0 0.0
  %939 = vmatpush.xpose.msra.mxu0 0.0
  %940 = vmatpush.xpose.msra.mxu0 0.0
  %941 = vmatpush.xpose.msra.mxu0 %v924
  %942 = vmatmul.f32.gmra.mxu0 %v921
  %v943 = vpop.f32.mrf.mxu0
  %v944 = vadd.f32 0.0, %v943
  %945 = vdwg.mxu0
  %v946 = vsel %vm122, %v794, 0
  %v949 = vsel %vm122, %v786, 0
  %951 = vmatpush.xpose.msra.mxu0 0.0
  %952 = vmatpush.xpose.msra.mxu0 0.0
  %953 = vmatpush.xpose.msra.mxu0 0.0
  %954 = vmatpush.xpose.msra.mxu0 0.0
  %955 = vmatpush.xpose.msra.mxu0 0.0
  %956 = vmatpush.xpose.msra.mxu0 0.0
  %957 = vmatpush.xpose.msra.mxu0 0.0
  %958 = vmatpush.xpose.msra.mxu0 0.0
  %959 = vmatpush.xpose.msra.mxu0 0.0
  %960 = vmatpush.xpose.msra.mxu0 0.0
  %961 = vmatpush.xpose.msra.mxu0 0.0
  %962 = vmatpush.xpose.msra.mxu0 0.0
  %963 = vmatpush.xpose.msra.mxu0 0.0
  %964 = vmatpush.xpose.msra.mxu0 0.0
  %965 = vmatpush.xpose.msra.mxu0 0.0
  %966 = vmatpush.xpose.msra.mxu0 %v949
  %967 = vmatmul.f32.gmra.mxu0 %v946
  %v968 = vpop.f32.mrf.mxu0
  %v969 = vadd.f32 0.0, %v968
  %970 = vdwg.mxu0
  %v971 = vsel %vm122, %v795, 0
  %v974 = vsel %vm122, %v787, 0
  %976 = vmatpush.xpose.msra.mxu0 0.0
  %977 = vmatpush.xpose.msra.mxu0 0.0
  %978 = vmatpush.xpose.msra.mxu0 0.0
  %979 = vmatpush.xpose.msra.mxu0 0.0
  %980 = vmatpush.xpose.msra.mxu0 0.0
  %981 = vmatpush.xpose.msra.mxu0 0.0
  %982 = vmatpush.xpose.msra.mxu0 0.0
  %983 = vmatpush.xpose.msra.mxu0 0.0
  %984 = vmatpush.xpose.msra.mxu0 0.0
  %985 = vmatpush.xpose.msra.mxu0 0.0
  %986 = vmatpush.xpose.msra.mxu0 0.0
  %987 = vmatpush.xpose.msra.mxu0 0.0
  %988 = vmatpush.xpose.msra.mxu0 0.0
  %989 = vmatpush.xpose.msra.mxu0 0.0
  %990 = vmatpush.xpose.msra.mxu0 0.0
  %991 = vmatpush.xpose.msra.mxu0 %v974
  %992 = vmatmul.f32.gmra.mxu0 %v971
  %v993 = vpop.f32.mrf.mxu0
  %v994 = vadd.f32 0.0, %v993
  %995 = vdwg.mxu0
  %996 = vrot.lane.b32.xlu0 %v777, 96
  %v997 = vpop.permute.xlu0 %996
  %v1006 = vrot.slane %v844, 7
  %v1007 = vsel %vm452, %v1006, %v819
  %v1008 = vrot.slane %v869, 6
  %v1009 = vsel %vm455, %v1008, %v1007
  %v1010 = vrot.slane %v894, 5
  %v1011 = vsel %vm458, %v1010, %v1009
  %v1012 = vrot.slane %v919, 4
  %v1013 = vsel %vm461, %v1012, %v1011
  %v1014 = vrot.slane %v944, 3
  %v1015 = vsel %vm464, %v1014, %v1013
  %v1016 = vrot.slane %v969, 2
  %v1017 = vsel %vm467, %v1016, %v1015
  %v1018 = vrot.slane %v994, 1
  %v1019 = vsel %vm470, %v1018, %v1017
  %v1021 = vsel %vm122, %v997, 0
  %1023 = vmatpush.xpose.msra.mxu0 0.0
  %1024 = vmatpush.xpose.msra.mxu0 0.0
  %1025 = vmatpush.xpose.msra.mxu0 0.0
  %1026 = vmatpush.xpose.msra.mxu0 0.0
  %1027 = vmatpush.xpose.msra.mxu0 0.0
  %1028 = vmatpush.xpose.msra.mxu0 0.0
  %1029 = vmatpush.xpose.msra.mxu0 0.0
  %1030 = vmatpush.xpose.msra.mxu0 0.0
  %1031 = vmatpush.xpose.msra.mxu0 0.0
  %1032 = vmatpush.xpose.msra.mxu0 0.0
  %1033 = vmatpush.xpose.msra.mxu0 0.0
  %1034 = vmatpush.xpose.msra.mxu0 0.0
  %1035 = vmatpush.xpose.msra.mxu0 0.0
  %1036 = vmatpush.xpose.msra.mxu0 0.0
  %1037 = vmatpush.xpose.msra.mxu0 0.0
  %1038 = vmatpush.xpose.msra.mxu0 %v1021
  %1039 = vmatmul.f32.gmra.mxu0 %v796
  %v1040 = vpop.f32.mrf.mxu0
  %v1041 = vadd.f32 %v1019, %v1040
  %1042 = vdwg.mxu0
  %v1043 = vadd.f32 %v1041, %v193
  %v1044 = vsel %vm496, %v1043, -inf
  %1045 = vmax.xlane.f32.xlu0 %v1044
  %v1046 = vpop.xlane.xlu0 %1045
  %v1047 = vsub.f32 %v1043, %v1046
  %v1048 = vmul.f32 %v1047, 1.442695
  %v1049 = vpow.pop %v1048
  %v1050 = vmul.f32 %v1049, %v191
  %v1051 = vsel %vm496, %v1050, 0.0
  %1052 = vadd.xlane.f32.xlu0 %v1051
  %v1053 = vpop.xlane.xlu0 %1052
  %v1054 = vmax.f32 %v1053, 1e-30
  %v1055 = vrcp.pop %v1054
  %v1056 = vmul.f32 %v1050, %v1055
  %v1058 = vrot.slane %v1056, 1
  %v1059 = vrot.slane %v1056, 2
  %v1060 = vrot.slane %v1056, 3
  %v1061 = vrot.slane %v1056, 4
  %v1062 = vrot.slane %v1056, 5
  %v1063 = vrot.slane %v1056, 6
  %v1064 = vrot.slane %v1056, 7
  %v1065 = vsel %vm496, %v1056, 0
  %1067 = vmatpush.msra.mxu0 0.0
  %1068 = vmatpush.msra.mxu0 0.0
  %1069 = vmatpush.msra.mxu0 0.0
  %1070 = vmatpush.msra.mxu0 0.0
  %1071 = vmatpush.msra.mxu0 0.0
  %1072 = vmatpush.msra.mxu0 0.0
  %1073 = vmatpush.msra.mxu0 0.0
  %1074 = vmatpush.msra.mxu0 0.0
  %1075 = vmatpush.msra.mxu0 0.0
  %1076 = vmatpush.msra.mxu0 0.0
  %1077 = vmatpush.msra.mxu0 0.0
  %1078 = vmatpush.msra.mxu0 0.0
  %1079 = vmatpush.msra.mxu0 0.0
  %1080 = vmatpush.msra.mxu0 0.0
  %1081 = vmatpush.msra.mxu0 0.0
  %1082 = vmatpush.msra.mxu0 %v780
  %1083 = vmatmul.f32.gmra.mxu0 %v1065
  %v1084 = vpop.f32.mrf.mxu0
  %v1085 = vadd.f32 0.0, %v1084
  %1086 = vdwg.mxu0
  %v1087 = vsel %vm496, %v1058, 0
  %1089 = vmatpush.msra.mxu0 0.0
  %1090 = vmatpush.msra.mxu0 0.0
  %1091 = vmatpush.msra.mxu0 0.0
  %1092 = vmatpush.msra.mxu0 0.0
  %1093 = vmatpush.msra.mxu0 0.0
  %1094 = vmatpush.msra.mxu0 0.0
  %1095 = vmatpush.msra.mxu0 0.0
  %1096 = vmatpush.msra.mxu0 0.0
  %1097 = vmatpush.msra.mxu0 0.0
  %1098 = vmatpush.msra.mxu0 0.0
  %1099 = vmatpush.msra.mxu0 0.0
  %1100 = vmatpush.msra.mxu0 0.0
  %1101 = vmatpush.msra.mxu0 0.0
  %1102 = vmatpush.msra.mxu0 0.0
  %1103 = vmatpush.msra.mxu0 0.0
  %1104 = vmatpush.msra.mxu0 %v781
  %1105 = vmatmul.f32.gmra.mxu0 %v1087
  %v1106 = vpop.f32.mrf.mxu0
  %v1107 = vadd.f32 0.0, %v1106
  %1108 = vdwg.mxu0
  %v1109 = vsel %vm496, %v1059, 0
  %1111 = vmatpush.msra.mxu0 0.0
  %1112 = vmatpush.msra.mxu0 0.0
  %1113 = vmatpush.msra.mxu0 0.0
  %1114 = vmatpush.msra.mxu0 0.0
  %1115 = vmatpush.msra.mxu0 0.0
  %1116 = vmatpush.msra.mxu0 0.0
  %1117 = vmatpush.msra.mxu0 0.0
  %1118 = vmatpush.msra.mxu0 0.0
  %1119 = vmatpush.msra.mxu0 0.0
  %1120 = vmatpush.msra.mxu0 0.0
  %1121 = vmatpush.msra.mxu0 0.0
  %1122 = vmatpush.msra.mxu0 0.0
  %1123 = vmatpush.msra.mxu0 0.0
  %1124 = vmatpush.msra.mxu0 0.0
  %1125 = vmatpush.msra.mxu0 0.0
  %1126 = vmatpush.msra.mxu0 %v782
  %1127 = vmatmul.f32.gmra.mxu0 %v1109
  %v1128 = vpop.f32.mrf.mxu0
  %v1129 = vadd.f32 0.0, %v1128
  %1130 = vdwg.mxu0
  %v1131 = vsel %vm496, %v1060, 0
  %1133 = vmatpush.msra.mxu0 0.0
  %1134 = vmatpush.msra.mxu0 0.0
  %1135 = vmatpush.msra.mxu0 0.0
  %1136 = vmatpush.msra.mxu0 0.0
  %1137 = vmatpush.msra.mxu0 0.0
  %1138 = vmatpush.msra.mxu0 0.0
  %1139 = vmatpush.msra.mxu0 0.0
  %1140 = vmatpush.msra.mxu0 0.0
  %1141 = vmatpush.msra.mxu0 0.0
  %1142 = vmatpush.msra.mxu0 0.0
  %1143 = vmatpush.msra.mxu0 0.0
  %1144 = vmatpush.msra.mxu0 0.0
  %1145 = vmatpush.msra.mxu0 0.0
  %1146 = vmatpush.msra.mxu0 0.0
  %1147 = vmatpush.msra.mxu0 0.0
  %1148 = vmatpush.msra.mxu0 %v783
  %1149 = vmatmul.f32.gmra.mxu0 %v1131
  %v1150 = vpop.f32.mrf.mxu0
  %v1151 = vadd.f32 0.0, %v1150
  %1152 = vdwg.mxu0
  %v1153 = vsel %vm496, %v1061, 0
  %1155 = vmatpush.msra.mxu0 0.0
  %1156 = vmatpush.msra.mxu0 0.0
  %1157 = vmatpush.msra.mxu0 0.0
  %1158 = vmatpush.msra.mxu0 0.0
  %1159 = vmatpush.msra.mxu0 0.0
  %1160 = vmatpush.msra.mxu0 0.0
  %1161 = vmatpush.msra.mxu0 0.0
  %1162 = vmatpush.msra.mxu0 0.0
  %1163 = vmatpush.msra.mxu0 0.0
  %1164 = vmatpush.msra.mxu0 0.0
  %1165 = vmatpush.msra.mxu0 0.0
  %1166 = vmatpush.msra.mxu0 0.0
  %1167 = vmatpush.msra.mxu0 0.0
  %1168 = vmatpush.msra.mxu0 0.0
  %1169 = vmatpush.msra.mxu0 0.0
  %1170 = vmatpush.msra.mxu0 %v784
  %1171 = vmatmul.f32.gmra.mxu0 %v1153
  %v1172 = vpop.f32.mrf.mxu0
  %v1173 = vadd.f32 0.0, %v1172
  %1174 = vdwg.mxu0
  %v1175 = vsel %vm496, %v1062, 0
  %1177 = vmatpush.msra.mxu0 0.0
  %1178 = vmatpush.msra.mxu0 0.0
  %1179 = vmatpush.msra.mxu0 0.0
  %1180 = vmatpush.msra.mxu0 0.0
  %1181 = vmatpush.msra.mxu0 0.0
  %1182 = vmatpush.msra.mxu0 0.0
  %1183 = vmatpush.msra.mxu0 0.0
  %1184 = vmatpush.msra.mxu0 0.0
  %1185 = vmatpush.msra.mxu0 0.0
  %1186 = vmatpush.msra.mxu0 0.0
  %1187 = vmatpush.msra.mxu0 0.0
  %1188 = vmatpush.msra.mxu0 0.0
  %1189 = vmatpush.msra.mxu0 0.0
  %1190 = vmatpush.msra.mxu0 0.0
  %1191 = vmatpush.msra.mxu0 0.0
  %1192 = vmatpush.msra.mxu0 %v785
  %1193 = vmatmul.f32.gmra.mxu0 %v1175
  %v1194 = vpop.f32.mrf.mxu0
  %v1195 = vadd.f32 0.0, %v1194
  %1196 = vdwg.mxu0
  %v1197 = vsel %vm496, %v1063, 0
  %1199 = vmatpush.msra.mxu0 0.0
  %1200 = vmatpush.msra.mxu0 0.0
  %1201 = vmatpush.msra.mxu0 0.0
  %1202 = vmatpush.msra.mxu0 0.0
  %1203 = vmatpush.msra.mxu0 0.0
  %1204 = vmatpush.msra.mxu0 0.0
  %1205 = vmatpush.msra.mxu0 0.0
  %1206 = vmatpush.msra.mxu0 0.0
  %1207 = vmatpush.msra.mxu0 0.0
  %1208 = vmatpush.msra.mxu0 0.0
  %1209 = vmatpush.msra.mxu0 0.0
  %1210 = vmatpush.msra.mxu0 0.0
  %1211 = vmatpush.msra.mxu0 0.0
  %1212 = vmatpush.msra.mxu0 0.0
  %1213 = vmatpush.msra.mxu0 0.0
  %1214 = vmatpush.msra.mxu0 %v786
  %1215 = vmatmul.f32.gmra.mxu0 %v1197
  %v1216 = vpop.f32.mrf.mxu0
  %v1217 = vadd.f32 0.0, %v1216
  %1218 = vdwg.mxu0
  %v1219 = vsel %vm496, %v1064, 0
  %1221 = vmatpush.msra.mxu0 0.0
  %1222 = vmatpush.msra.mxu0 0.0
  %1223 = vmatpush.msra.mxu0 0.0
  %1224 = vmatpush.msra.mxu0 0.0
  %1225 = vmatpush.msra.mxu0 0.0
  %1226 = vmatpush.msra.mxu0 0.0
  %1227 = vmatpush.msra.mxu0 0.0
  %1228 = vmatpush.msra.mxu0 0.0
  %1229 = vmatpush.msra.mxu0 0.0
  %1230 = vmatpush.msra.mxu0 0.0
  %1231 = vmatpush.msra.mxu0 0.0
  %1232 = vmatpush.msra.mxu0 0.0
  %1233 = vmatpush.msra.mxu0 0.0
  %1234 = vmatpush.msra.mxu0 0.0
  %1235 = vmatpush.msra.mxu0 0.0
  %1236 = vmatpush.msra.mxu0 %v787
  %1237 = vmatmul.f32.gmra.mxu0 %v1219
  %v1238 = vpop.f32.mrf.mxu0
  %v1239 = vadd.f32 0.0, %v1238
  %1240 = vdwg.mxu0
  %1241 = vrot.lane.b32.xlu0 %v777, 64
  %v1242 = vpop.permute.xlu0 %1241
  %v1252 = vrot.slane %v1107, 7
  %v1253 = vsel %vm452, %v1252, %v1085
  %v1254 = vrot.slane %v1129, 6
  %v1255 = vsel %vm455, %v1254, %v1253
  %v1256 = vrot.slane %v1151, 5
  %v1257 = vsel %vm458, %v1256, %v1255
  %v1258 = vrot.slane %v1173, 4
  %v1259 = vsel %vm461, %v1258, %v1257
  %v1260 = vrot.slane %v1195, 3
  %v1261 = vsel %vm464, %v1260, %v1259
  %v1262 = vrot.slane %v1217, 2
  %v1263 = vsel %vm467, %v1262, %v1261
  %v1264 = vrot.slane %v1239, 1
  %v1265 = vsel %vm470, %v1264, %v1263
  %1267 = vmatpush.msra.mxu0 0.0
  %1268 = vmatpush.msra.mxu0 0.0
  %1269 = vmatpush.msra.mxu0 0.0
  %1270 = vmatpush.msra.mxu0 0.0
  %1271 = vmatpush.msra.mxu0 0.0
  %1272 = vmatpush.msra.mxu0 0.0
  %1273 = vmatpush.msra.mxu0 0.0
  %1274 = vmatpush.msra.mxu0 0.0
  %1275 = vmatpush.msra.mxu0 0.0
  %1276 = vmatpush.msra.mxu0 0.0
  %1277 = vmatpush.msra.mxu0 0.0
  %1278 = vmatpush.msra.mxu0 0.0
  %1279 = vmatpush.msra.mxu0 0.0
  %1280 = vmatpush.msra.mxu0 0.0
  %1281 = vmatpush.msra.mxu0 0.0
  %1282 = vmatpush.msra.mxu0 %v1242
  %1283 = vmatmul.f32.gmra.mxu0 %v1065
  %v1284 = vpop.f32.mrf.mxu0
  %v1285 = vadd.f32 %v1265, %v1284
  %1286 = vdwg.mxu0
  %1287 = vrot.lane.b32.xlu0 %v777, 32
  %v1288 = vpop.permute.xlu0 %1287
  %v1290 = vadd.f32 %v1285, %v1288
  %v1291 = vmax.f32 %v1290, 0.0
  %v1292 = vadd.f32 %v745, %v1291
  %s1293 = scalar_lea.vmem %s9, 64
  %v1294 = vld [vmem:[%s1293] sm:$0xff]
  %v1295 = vld [vmem:[%s1293 + $0x8] sm:$0xff]
  %v1296 = vld [vmem:[%s1293 + $0x10] sm:$0xff]
  %v1297 = vld [vmem:[%s1293 + $0x18] sm:$0xff]
  %s1298 = scalar_lea.vmem %s10, 2
  %v1299 = vld [vmem:[%s1298] sm:$0x1]
  %v1301 = vperm.slane %v1299, 0
  %v1304 = vsel %vm122, %v1292, 0
  %1306 = vmatpush.msra.mxu0 0.0
  %1307 = vmatpush.msra.mxu0 0.0
  %1308 = vmatpush.msra.mxu0 0.0
  %1309 = vmatpush.msra.mxu0 0.0
  %1310 = vmatpush.msra.mxu0 0.0
  %1311 = vmatpush.msra.mxu0 0.0
  %1312 = vmatpush.msra.mxu0 0.0
  %1313 = vmatpush.msra.mxu0 0.0
  %1314 = vmatpush.msra.mxu0 0.0
  %1315 = vmatpush.msra.mxu0 0.0
  %1316 = vmatpush.msra.mxu0 0.0
  %1317 = vmatpush.msra.mxu0 0.0
  %1318 = vmatpush.msra.mxu0 %v1297
  %1319 = vmatpush.msra.mxu0 %v1296
  %1320 = vmatpush.msra.mxu0 %v1295
  %1321 = vmatpush.msra.mxu0 %v1294
  %1322 = vmatmul.f32.gmra.mxu0 %v1304
  %v1323 = vpop.f32.mrf.mxu0
  %v1324 = vadd.f32 %v1301, %v1323
  %1325 = vdwg.mxu0
  %s1326 = scalar_lea.vmem %s11, 128
  %v1327 = vld [vmem:[%s1326] sm:$0xff]
  %v1328 = vld [vmem:[%s1326 + $0x8] sm:$0xff]
  %v1329 = vld [vmem:[%s1326 + $0x10] sm:$0xff]
  %v1330 = vld [vmem:[%s1326 + $0x18] sm:$0xff]
  %v1331 = vld [vmem:[%s1326 + $0x20] sm:$0xff]
  %v1332 = vld [vmem:[%s1326 + $0x28] sm:$0xff]
  %v1333 = vld [vmem:[%s1326 + $0x30] sm:$0xff]
  %v1334 = vld [vmem:[%s1326 + $0x38] sm:$0xff]
  %v1336 = vrot.slane %v1324, 1
  %v1337 = vrot.slane %v1324, 2
  %v1338 = vrot.slane %v1324, 3
  %v1339 = vrot.slane %v1324, 4
  %v1340 = vrot.slane %v1324, 5
  %v1341 = vrot.slane %v1324, 6
  %v1342 = vrot.slane %v1324, 7
  %v1343 = vsel %vm122, %v1324, 0
  %v1346 = vsel %vm122, %v1327, 0
  %1348 = vmatpush.xpose.msra.mxu0 0.0
  %1349 = vmatpush.xpose.msra.mxu0 0.0
  %1350 = vmatpush.xpose.msra.mxu0 0.0
  %1351 = vmatpush.xpose.msra.mxu0 0.0
  %1352 = vmatpush.xpose.msra.mxu0 0.0
  %1353 = vmatpush.xpose.msra.mxu0 0.0
  %1354 = vmatpush.xpose.msra.mxu0 0.0
  %1355 = vmatpush.xpose.msra.mxu0 0.0
  %1356 = vmatpush.xpose.msra.mxu0 0.0
  %1357 = vmatpush.xpose.msra.mxu0 0.0
  %1358 = vmatpush.xpose.msra.mxu0 0.0
  %1359 = vmatpush.xpose.msra.mxu0 0.0
  %1360 = vmatpush.xpose.msra.mxu0 0.0
  %1361 = vmatpush.xpose.msra.mxu0 0.0
  %1362 = vmatpush.xpose.msra.mxu0 0.0
  %1363 = vmatpush.xpose.msra.mxu0 %v1346
  %1364 = vmatmul.f32.gmra.mxu0 %v1343
  %v1365 = vpop.f32.mrf.mxu0
  %v1366 = vadd.f32 0.0, %v1365
  %1367 = vdwg.mxu0
  %v1368 = vsel %vm122, %v1336, 0
  %v1371 = vsel %vm122, %v1328, 0
  %1373 = vmatpush.xpose.msra.mxu0 0.0
  %1374 = vmatpush.xpose.msra.mxu0 0.0
  %1375 = vmatpush.xpose.msra.mxu0 0.0
  %1376 = vmatpush.xpose.msra.mxu0 0.0
  %1377 = vmatpush.xpose.msra.mxu0 0.0
  %1378 = vmatpush.xpose.msra.mxu0 0.0
  %1379 = vmatpush.xpose.msra.mxu0 0.0
  %1380 = vmatpush.xpose.msra.mxu0 0.0
  %1381 = vmatpush.xpose.msra.mxu0 0.0
  %1382 = vmatpush.xpose.msra.mxu0 0.0
  %1383 = vmatpush.xpose.msra.mxu0 0.0
  %1384 = vmatpush.xpose.msra.mxu0 0.0
  %1385 = vmatpush.xpose.msra.mxu0 0.0
  %1386 = vmatpush.xpose.msra.mxu0 0.0
  %1387 = vmatpush.xpose.msra.mxu0 0.0
  %1388 = vmatpush.xpose.msra.mxu0 %v1371
  %1389 = vmatmul.f32.gmra.mxu0 %v1368
  %v1390 = vpop.f32.mrf.mxu0
  %v1391 = vadd.f32 0.0, %v1390
  %1392 = vdwg.mxu0
  %v1393 = vsel %vm122, %v1337, 0
  %v1396 = vsel %vm122, %v1329, 0
  %1398 = vmatpush.xpose.msra.mxu0 0.0
  %1399 = vmatpush.xpose.msra.mxu0 0.0
  %1400 = vmatpush.xpose.msra.mxu0 0.0
  %1401 = vmatpush.xpose.msra.mxu0 0.0
  %1402 = vmatpush.xpose.msra.mxu0 0.0
  %1403 = vmatpush.xpose.msra.mxu0 0.0
  %1404 = vmatpush.xpose.msra.mxu0 0.0
  %1405 = vmatpush.xpose.msra.mxu0 0.0
  %1406 = vmatpush.xpose.msra.mxu0 0.0
  %1407 = vmatpush.xpose.msra.mxu0 0.0
  %1408 = vmatpush.xpose.msra.mxu0 0.0
  %1409 = vmatpush.xpose.msra.mxu0 0.0
  %1410 = vmatpush.xpose.msra.mxu0 0.0
  %1411 = vmatpush.xpose.msra.mxu0 0.0
  %1412 = vmatpush.xpose.msra.mxu0 0.0
  %1413 = vmatpush.xpose.msra.mxu0 %v1396
  %1414 = vmatmul.f32.gmra.mxu0 %v1393
  %v1415 = vpop.f32.mrf.mxu0
  %v1416 = vadd.f32 0.0, %v1415
  %1417 = vdwg.mxu0
  %v1418 = vsel %vm122, %v1338, 0
  %v1421 = vsel %vm122, %v1330, 0
  %1423 = vmatpush.xpose.msra.mxu0 0.0
  %1424 = vmatpush.xpose.msra.mxu0 0.0
  %1425 = vmatpush.xpose.msra.mxu0 0.0
  %1426 = vmatpush.xpose.msra.mxu0 0.0
  %1427 = vmatpush.xpose.msra.mxu0 0.0
  %1428 = vmatpush.xpose.msra.mxu0 0.0
  %1429 = vmatpush.xpose.msra.mxu0 0.0
  %1430 = vmatpush.xpose.msra.mxu0 0.0
  %1431 = vmatpush.xpose.msra.mxu0 0.0
  %1432 = vmatpush.xpose.msra.mxu0 0.0
  %1433 = vmatpush.xpose.msra.mxu0 0.0
  %1434 = vmatpush.xpose.msra.mxu0 0.0
  %1435 = vmatpush.xpose.msra.mxu0 0.0
  %1436 = vmatpush.xpose.msra.mxu0 0.0
  %1437 = vmatpush.xpose.msra.mxu0 0.0
  %1438 = vmatpush.xpose.msra.mxu0 %v1421
  %1439 = vmatmul.f32.gmra.mxu0 %v1418
  %v1440 = vpop.f32.mrf.mxu0
  %v1441 = vadd.f32 0.0, %v1440
  %1442 = vdwg.mxu0
  %v1443 = vsel %vm122, %v1339, 0
  %v1446 = vsel %vm122, %v1331, 0
  %1448 = vmatpush.xpose.msra.mxu0 0.0
  %1449 = vmatpush.xpose.msra.mxu0 0.0
  %1450 = vmatpush.xpose.msra.mxu0 0.0
  %1451 = vmatpush.xpose.msra.mxu0 0.0
  %1452 = vmatpush.xpose.msra.mxu0 0.0
  %1453 = vmatpush.xpose.msra.mxu0 0.0
  %1454 = vmatpush.xpose.msra.mxu0 0.0
  %1455 = vmatpush.xpose.msra.mxu0 0.0
  %1456 = vmatpush.xpose.msra.mxu0 0.0
  %1457 = vmatpush.xpose.msra.mxu0 0.0
  %1458 = vmatpush.xpose.msra.mxu0 0.0
  %1459 = vmatpush.xpose.msra.mxu0 0.0
  %1460 = vmatpush.xpose.msra.mxu0 0.0
  %1461 = vmatpush.xpose.msra.mxu0 0.0
  %1462 = vmatpush.xpose.msra.mxu0 0.0
  %1463 = vmatpush.xpose.msra.mxu0 %v1446
  %1464 = vmatmul.f32.gmra.mxu0 %v1443
  %v1465 = vpop.f32.mrf.mxu0
  %v1466 = vadd.f32 0.0, %v1465
  %1467 = vdwg.mxu0
  %v1468 = vsel %vm122, %v1340, 0
  %v1471 = vsel %vm122, %v1332, 0
  %1473 = vmatpush.xpose.msra.mxu0 0.0
  %1474 = vmatpush.xpose.msra.mxu0 0.0
  %1475 = vmatpush.xpose.msra.mxu0 0.0
  %1476 = vmatpush.xpose.msra.mxu0 0.0
  %1477 = vmatpush.xpose.msra.mxu0 0.0
  %1478 = vmatpush.xpose.msra.mxu0 0.0
  %1479 = vmatpush.xpose.msra.mxu0 0.0
  %1480 = vmatpush.xpose.msra.mxu0 0.0
  %1481 = vmatpush.xpose.msra.mxu0 0.0
  %1482 = vmatpush.xpose.msra.mxu0 0.0
  %1483 = vmatpush.xpose.msra.mxu0 0.0
  %1484 = vmatpush.xpose.msra.mxu0 0.0
  %1485 = vmatpush.xpose.msra.mxu0 0.0
  %1486 = vmatpush.xpose.msra.mxu0 0.0
  %1487 = vmatpush.xpose.msra.mxu0 0.0
  %1488 = vmatpush.xpose.msra.mxu0 %v1471
  %1489 = vmatmul.f32.gmra.mxu0 %v1468
  %v1490 = vpop.f32.mrf.mxu0
  %v1491 = vadd.f32 0.0, %v1490
  %1492 = vdwg.mxu0
  %v1493 = vsel %vm122, %v1341, 0
  %v1496 = vsel %vm122, %v1333, 0
  %1498 = vmatpush.xpose.msra.mxu0 0.0
  %1499 = vmatpush.xpose.msra.mxu0 0.0
  %1500 = vmatpush.xpose.msra.mxu0 0.0
  %1501 = vmatpush.xpose.msra.mxu0 0.0
  %1502 = vmatpush.xpose.msra.mxu0 0.0
  %1503 = vmatpush.xpose.msra.mxu0 0.0
  %1504 = vmatpush.xpose.msra.mxu0 0.0
  %1505 = vmatpush.xpose.msra.mxu0 0.0
  %1506 = vmatpush.xpose.msra.mxu0 0.0
  %1507 = vmatpush.xpose.msra.mxu0 0.0
  %1508 = vmatpush.xpose.msra.mxu0 0.0
  %1509 = vmatpush.xpose.msra.mxu0 0.0
  %1510 = vmatpush.xpose.msra.mxu0 0.0
  %1511 = vmatpush.xpose.msra.mxu0 0.0
  %1512 = vmatpush.xpose.msra.mxu0 0.0
  %1513 = vmatpush.xpose.msra.mxu0 %v1496
  %1514 = vmatmul.f32.gmra.mxu0 %v1493
  %v1515 = vpop.f32.mrf.mxu0
  %v1516 = vadd.f32 0.0, %v1515
  %1517 = vdwg.mxu0
  %v1518 = vsel %vm122, %v1342, 0
  %v1521 = vsel %vm122, %v1334, 0
  %1523 = vmatpush.xpose.msra.mxu0 0.0
  %1524 = vmatpush.xpose.msra.mxu0 0.0
  %1525 = vmatpush.xpose.msra.mxu0 0.0
  %1526 = vmatpush.xpose.msra.mxu0 0.0
  %1527 = vmatpush.xpose.msra.mxu0 0.0
  %1528 = vmatpush.xpose.msra.mxu0 0.0
  %1529 = vmatpush.xpose.msra.mxu0 0.0
  %1530 = vmatpush.xpose.msra.mxu0 0.0
  %1531 = vmatpush.xpose.msra.mxu0 0.0
  %1532 = vmatpush.xpose.msra.mxu0 0.0
  %1533 = vmatpush.xpose.msra.mxu0 0.0
  %1534 = vmatpush.xpose.msra.mxu0 0.0
  %1535 = vmatpush.xpose.msra.mxu0 0.0
  %1536 = vmatpush.xpose.msra.mxu0 0.0
  %1537 = vmatpush.xpose.msra.mxu0 0.0
  %1538 = vmatpush.xpose.msra.mxu0 %v1521
  %1539 = vmatmul.f32.gmra.mxu0 %v1518
  %v1540 = vpop.f32.mrf.mxu0
  %v1541 = vadd.f32 0.0, %v1540
  %1542 = vdwg.mxu0
  %1543 = vrot.lane.b32.xlu0 %v1324, 96
  %v1544 = vpop.permute.xlu0 %1543
  %v1553 = vrot.slane %v1391, 7
  %v1554 = vsel %vm452, %v1553, %v1366
  %v1555 = vrot.slane %v1416, 6
  %v1556 = vsel %vm455, %v1555, %v1554
  %v1557 = vrot.slane %v1441, 5
  %v1558 = vsel %vm458, %v1557, %v1556
  %v1559 = vrot.slane %v1466, 4
  %v1560 = vsel %vm461, %v1559, %v1558
  %v1561 = vrot.slane %v1491, 3
  %v1562 = vsel %vm464, %v1561, %v1560
  %v1563 = vrot.slane %v1516, 2
  %v1564 = vsel %vm467, %v1563, %v1562
  %v1565 = vrot.slane %v1541, 1
  %v1566 = vsel %vm470, %v1565, %v1564
  %v1568 = vsel %vm122, %v1544, 0
  %1570 = vmatpush.xpose.msra.mxu0 0.0
  %1571 = vmatpush.xpose.msra.mxu0 0.0
  %1572 = vmatpush.xpose.msra.mxu0 0.0
  %1573 = vmatpush.xpose.msra.mxu0 0.0
  %1574 = vmatpush.xpose.msra.mxu0 0.0
  %1575 = vmatpush.xpose.msra.mxu0 0.0
  %1576 = vmatpush.xpose.msra.mxu0 0.0
  %1577 = vmatpush.xpose.msra.mxu0 0.0
  %1578 = vmatpush.xpose.msra.mxu0 0.0
  %1579 = vmatpush.xpose.msra.mxu0 0.0
  %1580 = vmatpush.xpose.msra.mxu0 0.0
  %1581 = vmatpush.xpose.msra.mxu0 0.0
  %1582 = vmatpush.xpose.msra.mxu0 0.0
  %1583 = vmatpush.xpose.msra.mxu0 0.0
  %1584 = vmatpush.xpose.msra.mxu0 0.0
  %1585 = vmatpush.xpose.msra.mxu0 %v1568
  %1586 = vmatmul.f32.gmra.mxu0 %v1343
  %v1587 = vpop.f32.mrf.mxu0
  %v1588 = vadd.f32 %v1566, %v1587
  %1589 = vdwg.mxu0
  %v1590 = vadd.f32 %v1588, %v193
  %v1591 = vsel %vm496, %v1590, -inf
  %1592 = vmax.xlane.f32.xlu0 %v1591
  %v1593 = vpop.xlane.xlu0 %1592
  %v1594 = vsub.f32 %v1590, %v1593
  %v1595 = vmul.f32 %v1594, 1.442695
  %v1596 = vpow.pop %v1595
  %v1597 = vmul.f32 %v1596, %v191
  %v1598 = vsel %vm496, %v1597, 0.0
  %1599 = vadd.xlane.f32.xlu0 %v1598
  %v1600 = vpop.xlane.xlu0 %1599
  %v1601 = vmax.f32 %v1600, 1e-30
  %v1602 = vrcp.pop %v1601
  %v1603 = vmul.f32 %v1597, %v1602
  %v1605 = vrot.slane %v1603, 1
  %v1606 = vrot.slane %v1603, 2
  %v1607 = vrot.slane %v1603, 3
  %v1608 = vrot.slane %v1603, 4
  %v1609 = vrot.slane %v1603, 5
  %v1610 = vrot.slane %v1603, 6
  %v1611 = vrot.slane %v1603, 7
  %v1612 = vsel %vm496, %v1603, 0
  %1614 = vmatpush.msra.mxu0 0.0
  %1615 = vmatpush.msra.mxu0 0.0
  %1616 = vmatpush.msra.mxu0 0.0
  %1617 = vmatpush.msra.mxu0 0.0
  %1618 = vmatpush.msra.mxu0 0.0
  %1619 = vmatpush.msra.mxu0 0.0
  %1620 = vmatpush.msra.mxu0 0.0
  %1621 = vmatpush.msra.mxu0 0.0
  %1622 = vmatpush.msra.mxu0 0.0
  %1623 = vmatpush.msra.mxu0 0.0
  %1624 = vmatpush.msra.mxu0 0.0
  %1625 = vmatpush.msra.mxu0 0.0
  %1626 = vmatpush.msra.mxu0 0.0
  %1627 = vmatpush.msra.mxu0 0.0
  %1628 = vmatpush.msra.mxu0 0.0
  %1629 = vmatpush.msra.mxu0 %v1327
  %1630 = vmatmul.f32.gmra.mxu0 %v1612
  %v1631 = vpop.f32.mrf.mxu0
  %v1632 = vadd.f32 0.0, %v1631
  %1633 = vdwg.mxu0
  %v1634 = vsel %vm496, %v1605, 0
  %1636 = vmatpush.msra.mxu0 0.0
  %1637 = vmatpush.msra.mxu0 0.0
  %1638 = vmatpush.msra.mxu0 0.0
  %1639 = vmatpush.msra.mxu0 0.0
  %1640 = vmatpush.msra.mxu0 0.0
  %1641 = vmatpush.msra.mxu0 0.0
  %1642 = vmatpush.msra.mxu0 0.0
  %1643 = vmatpush.msra.mxu0 0.0
  %1644 = vmatpush.msra.mxu0 0.0
  %1645 = vmatpush.msra.mxu0 0.0
  %1646 = vmatpush.msra.mxu0 0.0
  %1647 = vmatpush.msra.mxu0 0.0
  %1648 = vmatpush.msra.mxu0 0.0
  %1649 = vmatpush.msra.mxu0 0.0
  %1650 = vmatpush.msra.mxu0 0.0
  %1651 = vmatpush.msra.mxu0 %v1328
  %1652 = vmatmul.f32.gmra.mxu0 %v1634
  %v1653 = vpop.f32.mrf.mxu0
  %v1654 = vadd.f32 0.0, %v1653
  %1655 = vdwg.mxu0
  %v1656 = vsel %vm496, %v1606, 0
  %1658 = vmatpush.msra.mxu0 0.0
  %1659 = vmatpush.msra.mxu0 0.0
  %1660 = vmatpush.msra.mxu0 0.0
  %1661 = vmatpush.msra.mxu0 0.0
  %1662 = vmatpush.msra.mxu0 0.0
  %1663 = vmatpush.msra.mxu0 0.0
  %1664 = vmatpush.msra.mxu0 0.0
  %1665 = vmatpush.msra.mxu0 0.0
  %1666 = vmatpush.msra.mxu0 0.0
  %1667 = vmatpush.msra.mxu0 0.0
  %1668 = vmatpush.msra.mxu0 0.0
  %1669 = vmatpush.msra.mxu0 0.0
  %1670 = vmatpush.msra.mxu0 0.0
  %1671 = vmatpush.msra.mxu0 0.0
  %1672 = vmatpush.msra.mxu0 0.0
  %1673 = vmatpush.msra.mxu0 %v1329
  %1674 = vmatmul.f32.gmra.mxu0 %v1656
  %v1675 = vpop.f32.mrf.mxu0
  %v1676 = vadd.f32 0.0, %v1675
  %1677 = vdwg.mxu0
  %v1678 = vsel %vm496, %v1607, 0
  %1680 = vmatpush.msra.mxu0 0.0
  %1681 = vmatpush.msra.mxu0 0.0
  %1682 = vmatpush.msra.mxu0 0.0
  %1683 = vmatpush.msra.mxu0 0.0
  %1684 = vmatpush.msra.mxu0 0.0
  %1685 = vmatpush.msra.mxu0 0.0
  %1686 = vmatpush.msra.mxu0 0.0
  %1687 = vmatpush.msra.mxu0 0.0
  %1688 = vmatpush.msra.mxu0 0.0
  %1689 = vmatpush.msra.mxu0 0.0
  %1690 = vmatpush.msra.mxu0 0.0
  %1691 = vmatpush.msra.mxu0 0.0
  %1692 = vmatpush.msra.mxu0 0.0
  %1693 = vmatpush.msra.mxu0 0.0
  %1694 = vmatpush.msra.mxu0 0.0
  %1695 = vmatpush.msra.mxu0 %v1330
  %1696 = vmatmul.f32.gmra.mxu0 %v1678
  %v1697 = vpop.f32.mrf.mxu0
  %v1698 = vadd.f32 0.0, %v1697
  %1699 = vdwg.mxu0
  %v1700 = vsel %vm496, %v1608, 0
  %1702 = vmatpush.msra.mxu0 0.0
  %1703 = vmatpush.msra.mxu0 0.0
  %1704 = vmatpush.msra.mxu0 0.0
  %1705 = vmatpush.msra.mxu0 0.0
  %1706 = vmatpush.msra.mxu0 0.0
  %1707 = vmatpush.msra.mxu0 0.0
  %1708 = vmatpush.msra.mxu0 0.0
  %1709 = vmatpush.msra.mxu0 0.0
  %1710 = vmatpush.msra.mxu0 0.0
  %1711 = vmatpush.msra.mxu0 0.0
  %1712 = vmatpush.msra.mxu0 0.0
  %1713 = vmatpush.msra.mxu0 0.0
  %1714 = vmatpush.msra.mxu0 0.0
  %1715 = vmatpush.msra.mxu0 0.0
  %1716 = vmatpush.msra.mxu0 0.0
  %1717 = vmatpush.msra.mxu0 %v1331
  %1718 = vmatmul.f32.gmra.mxu0 %v1700
  %v1719 = vpop.f32.mrf.mxu0
  %v1720 = vadd.f32 0.0, %v1719
  %1721 = vdwg.mxu0
  %v1722 = vsel %vm496, %v1609, 0
  %1724 = vmatpush.msra.mxu0 0.0
  %1725 = vmatpush.msra.mxu0 0.0
  %1726 = vmatpush.msra.mxu0 0.0
  %1727 = vmatpush.msra.mxu0 0.0
  %1728 = vmatpush.msra.mxu0 0.0
  %1729 = vmatpush.msra.mxu0 0.0
  %1730 = vmatpush.msra.mxu0 0.0
  %1731 = vmatpush.msra.mxu0 0.0
  %1732 = vmatpush.msra.mxu0 0.0
  %1733 = vmatpush.msra.mxu0 0.0
  %1734 = vmatpush.msra.mxu0 0.0
  %1735 = vmatpush.msra.mxu0 0.0
  %1736 = vmatpush.msra.mxu0 0.0
  %1737 = vmatpush.msra.mxu0 0.0
  %1738 = vmatpush.msra.mxu0 0.0
  %1739 = vmatpush.msra.mxu0 %v1332
  %1740 = vmatmul.f32.gmra.mxu0 %v1722
  %v1741 = vpop.f32.mrf.mxu0
  %v1742 = vadd.f32 0.0, %v1741
  %1743 = vdwg.mxu0
  %v1744 = vsel %vm496, %v1610, 0
  %1746 = vmatpush.msra.mxu0 0.0
  %1747 = vmatpush.msra.mxu0 0.0
  %1748 = vmatpush.msra.mxu0 0.0
  %1749 = vmatpush.msra.mxu0 0.0
  %1750 = vmatpush.msra.mxu0 0.0
  %1751 = vmatpush.msra.mxu0 0.0
  %1752 = vmatpush.msra.mxu0 0.0
  %1753 = vmatpush.msra.mxu0 0.0
  %1754 = vmatpush.msra.mxu0 0.0
  %1755 = vmatpush.msra.mxu0 0.0
  %1756 = vmatpush.msra.mxu0 0.0
  %1757 = vmatpush.msra.mxu0 0.0
  %1758 = vmatpush.msra.mxu0 0.0
  %1759 = vmatpush.msra.mxu0 0.0
  %1760 = vmatpush.msra.mxu0 0.0
  %1761 = vmatpush.msra.mxu0 %v1333
  %1762 = vmatmul.f32.gmra.mxu0 %v1744
  %v1763 = vpop.f32.mrf.mxu0
  %v1764 = vadd.f32 0.0, %v1763
  %1765 = vdwg.mxu0
  %v1766 = vsel %vm496, %v1611, 0
  %1768 = vmatpush.msra.mxu0 0.0
  %1769 = vmatpush.msra.mxu0 0.0
  %1770 = vmatpush.msra.mxu0 0.0
  %1771 = vmatpush.msra.mxu0 0.0
  %1772 = vmatpush.msra.mxu0 0.0
  %1773 = vmatpush.msra.mxu0 0.0
  %1774 = vmatpush.msra.mxu0 0.0
  %1775 = vmatpush.msra.mxu0 0.0
  %1776 = vmatpush.msra.mxu0 0.0
  %1777 = vmatpush.msra.mxu0 0.0
  %1778 = vmatpush.msra.mxu0 0.0
  %1779 = vmatpush.msra.mxu0 0.0
  %1780 = vmatpush.msra.mxu0 0.0
  %1781 = vmatpush.msra.mxu0 0.0
  %1782 = vmatpush.msra.mxu0 0.0
  %1783 = vmatpush.msra.mxu0 %v1334
  %1784 = vmatmul.f32.gmra.mxu0 %v1766
  %v1785 = vpop.f32.mrf.mxu0
  %v1786 = vadd.f32 0.0, %v1785
  %1787 = vdwg.mxu0
  %1788 = vrot.lane.b32.xlu0 %v1324, 64
  %v1789 = vpop.permute.xlu0 %1788
  %v1799 = vrot.slane %v1654, 7
  %v1800 = vsel %vm452, %v1799, %v1632
  %v1801 = vrot.slane %v1676, 6
  %v1802 = vsel %vm455, %v1801, %v1800
  %v1803 = vrot.slane %v1698, 5
  %v1804 = vsel %vm458, %v1803, %v1802
  %v1805 = vrot.slane %v1720, 4
  %v1806 = vsel %vm461, %v1805, %v1804
  %v1807 = vrot.slane %v1742, 3
  %v1808 = vsel %vm464, %v1807, %v1806
  %v1809 = vrot.slane %v1764, 2
  %v1810 = vsel %vm467, %v1809, %v1808
  %v1811 = vrot.slane %v1786, 1
  %v1812 = vsel %vm470, %v1811, %v1810
  %1814 = vmatpush.msra.mxu0 0.0
  %1815 = vmatpush.msra.mxu0 0.0
  %1816 = vmatpush.msra.mxu0 0.0
  %1817 = vmatpush.msra.mxu0 0.0
  %1818 = vmatpush.msra.mxu0 0.0
  %1819 = vmatpush.msra.mxu0 0.0
  %1820 = vmatpush.msra.mxu0 0.0
  %1821 = vmatpush.msra.mxu0 0.0
  %1822 = vmatpush.msra.mxu0 0.0
  %1823 = vmatpush.msra.mxu0 0.0
  %1824 = vmatpush.msra.mxu0 0.0
  %1825 = vmatpush.msra.mxu0 0.0
  %1826 = vmatpush.msra.mxu0 0.0
  %1827 = vmatpush.msra.mxu0 0.0
  %1828 = vmatpush.msra.mxu0 0.0
  %1829 = vmatpush.msra.mxu0 %v1789
  %1830 = vmatmul.f32.gmra.mxu0 %v1612
  %v1831 = vpop.f32.mrf.mxu0
  %v1832 = vadd.f32 %v1812, %v1831
  %1833 = vdwg.mxu0
  %1834 = vrot.lane.b32.xlu0 %v1324, 32
  %v1835 = vpop.permute.xlu0 %1834
  %v1837 = vadd.f32 %v1832, %v1835
  %v1838 = vmax.f32 %v1837, 0.0
  %v1839 = vadd.f32 %v1292, %v1838
  %s1840 = scalar_lea.vmem %s9, 96
  %v1841 = vld [vmem:[%s1840] sm:$0xff]
  %v1842 = vld [vmem:[%s1840 + $0x8] sm:$0xff]
  %v1843 = vld [vmem:[%s1840 + $0x10] sm:$0xff]
  %v1844 = vld [vmem:[%s1840 + $0x18] sm:$0xff]
  %s1845 = scalar_lea.vmem %s10, 3
  %v1846 = vld [vmem:[%s1845] sm:$0x1]
  %v1848 = vperm.slane %v1846, 0
  %v1851 = vsel %vm122, %v1839, 0
  %1853 = vmatpush.msra.mxu0 0.0
  %1854 = vmatpush.msra.mxu0 0.0
  %1855 = vmatpush.msra.mxu0 0.0
  %1856 = vmatpush.msra.mxu0 0.0
  %1857 = vmatpush.msra.mxu0 0.0
  %1858 = vmatpush.msra.mxu0 0.0
  %1859 = vmatpush.msra.mxu0 0.0
  %1860 = vmatpush.msra.mxu0 0.0
  %1861 = vmatpush.msra.mxu0 0.0
  %1862 = vmatpush.msra.mxu0 0.0
  %1863 = vmatpush.msra.mxu0 0.0
  %1864 = vmatpush.msra.mxu0 0.0
  %1865 = vmatpush.msra.mxu0 %v1844
  %1866 = vmatpush.msra.mxu0 %v1843
  %1867 = vmatpush.msra.mxu0 %v1842
  %1868 = vmatpush.msra.mxu0 %v1841
  %1869 = vmatmul.f32.gmra.mxu0 %v1851
  %v1870 = vpop.f32.mrf.mxu0
  %v1871 = vadd.f32 %v1848, %v1870
  %1872 = vdwg.mxu0
  %s1873 = scalar_lea.vmem %s11, 192
  %v1874 = vld [vmem:[%s1873] sm:$0xff]
  %v1875 = vld [vmem:[%s1873 + $0x8] sm:$0xff]
  %v1876 = vld [vmem:[%s1873 + $0x10] sm:$0xff]
  %v1877 = vld [vmem:[%s1873 + $0x18] sm:$0xff]
  %v1878 = vld [vmem:[%s1873 + $0x20] sm:$0xff]
  %v1879 = vld [vmem:[%s1873 + $0x28] sm:$0xff]
  %v1880 = vld [vmem:[%s1873 + $0x30] sm:$0xff]
  %v1881 = vld [vmem:[%s1873 + $0x38] sm:$0xff]
  %v1883 = vrot.slane %v1871, 1
  %v1884 = vrot.slane %v1871, 2
  %v1885 = vrot.slane %v1871, 3
  %v1886 = vrot.slane %v1871, 4
  %v1887 = vrot.slane %v1871, 5
  %v1888 = vrot.slane %v1871, 6
  %v1889 = vrot.slane %v1871, 7
  %v1890 = vsel %vm122, %v1871, 0
  %v1893 = vsel %vm122, %v1874, 0
  %1895 = vmatpush.xpose.msra.mxu0 0.0
  %1896 = vmatpush.xpose.msra.mxu0 0.0
  %1897 = vmatpush.xpose.msra.mxu0 0.0
  %1898 = vmatpush.xpose.msra.mxu0 0.0
  %1899 = vmatpush.xpose.msra.mxu0 0.0
  %1900 = vmatpush.xpose.msra.mxu0 0.0
  %1901 = vmatpush.xpose.msra.mxu0 0.0
  %1902 = vmatpush.xpose.msra.mxu0 0.0
  %1903 = vmatpush.xpose.msra.mxu0 0.0
  %1904 = vmatpush.xpose.msra.mxu0 0.0
  %1905 = vmatpush.xpose.msra.mxu0 0.0
  %1906 = vmatpush.xpose.msra.mxu0 0.0
  %1907 = vmatpush.xpose.msra.mxu0 0.0
  %1908 = vmatpush.xpose.msra.mxu0 0.0
  %1909 = vmatpush.xpose.msra.mxu0 0.0
  %1910 = vmatpush.xpose.msra.mxu0 %v1893
  %1911 = vmatmul.f32.gmra.mxu0 %v1890
  %v1912 = vpop.f32.mrf.mxu0
  %v1913 = vadd.f32 0.0, %v1912
  %1914 = vdwg.mxu0
  %v1915 = vsel %vm122, %v1883, 0
  %v1918 = vsel %vm122, %v1875, 0
  %1920 = vmatpush.xpose.msra.mxu0 0.0
  %1921 = vmatpush.xpose.msra.mxu0 0.0
  %1922 = vmatpush.xpose.msra.mxu0 0.0
  %1923 = vmatpush.xpose.msra.mxu0 0.0
  %1924 = vmatpush.xpose.msra.mxu0 0.0
  %1925 = vmatpush.xpose.msra.mxu0 0.0
  %1926 = vmatpush.xpose.msra.mxu0 0.0
  %1927 = vmatpush.xpose.msra.mxu0 0.0
  %1928 = vmatpush.xpose.msra.mxu0 0.0
  %1929 = vmatpush.xpose.msra.mxu0 0.0
  %1930 = vmatpush.xpose.msra.mxu0 0.0
  %1931 = vmatpush.xpose.msra.mxu0 0.0
  %1932 = vmatpush.xpose.msra.mxu0 0.0
  %1933 = vmatpush.xpose.msra.mxu0 0.0
  %1934 = vmatpush.xpose.msra.mxu0 0.0
  %1935 = vmatpush.xpose.msra.mxu0 %v1918
  %1936 = vmatmul.f32.gmra.mxu0 %v1915
  %v1937 = vpop.f32.mrf.mxu0
  %v1938 = vadd.f32 0.0, %v1937
  %1939 = vdwg.mxu0
  %v1940 = vsel %vm122, %v1884, 0
  %v1943 = vsel %vm122, %v1876, 0
  %1945 = vmatpush.xpose.msra.mxu0 0.0
  %1946 = vmatpush.xpose.msra.mxu0 0.0
  %1947 = vmatpush.xpose.msra.mxu0 0.0
  %1948 = vmatpush.xpose.msra.mxu0 0.0
  %1949 = vmatpush.xpose.msra.mxu0 0.0
  %1950 = vmatpush.xpose.msra.mxu0 0.0
  %1951 = vmatpush.xpose.msra.mxu0 0.0
  %1952 = vmatpush.xpose.msra.mxu0 0.0
  %1953 = vmatpush.xpose.msra.mxu0 0.0
  %1954 = vmatpush.xpose.msra.mxu0 0.0
  %1955 = vmatpush.xpose.msra.mxu0 0.0
  %1956 = vmatpush.xpose.msra.mxu0 0.0
  %1957 = vmatpush.xpose.msra.mxu0 0.0
  %1958 = vmatpush.xpose.msra.mxu0 0.0
  %1959 = vmatpush.xpose.msra.mxu0 0.0
  %1960 = vmatpush.xpose.msra.mxu0 %v1943
  %1961 = vmatmul.f32.gmra.mxu0 %v1940
  %v1962 = vpop.f32.mrf.mxu0
  %v1963 = vadd.f32 0.0, %v1962
  %1964 = vdwg.mxu0
  %v1965 = vsel %vm122, %v1885, 0
  %v1968 = vsel %vm122, %v1877, 0
  %1970 = vmatpush.xpose.msra.mxu0 0.0
  %1971 = vmatpush.xpose.msra.mxu0 0.0
  %1972 = vmatpush.xpose.msra.mxu0 0.0
  %1973 = vmatpush.xpose.msra.mxu0 0.0
  %1974 = vmatpush.xpose.msra.mxu0 0.0
  %1975 = vmatpush.xpose.msra.mxu0 0.0
  %1976 = vmatpush.xpose.msra.mxu0 0.0
  %1977 = vmatpush.xpose.msra.mxu0 0.0
  %1978 = vmatpush.xpose.msra.mxu0 0.0
  %1979 = vmatpush.xpose.msra.mxu0 0.0
  %1980 = vmatpush.xpose.msra.mxu0 0.0
  %1981 = vmatpush.xpose.msra.mxu0 0.0
  %1982 = vmatpush.xpose.msra.mxu0 0.0
  %1983 = vmatpush.xpose.msra.mxu0 0.0
  %1984 = vmatpush.xpose.msra.mxu0 0.0
  %1985 = vmatpush.xpose.msra.mxu0 %v1968
  %1986 = vmatmul.f32.gmra.mxu0 %v1965
  %v1987 = vpop.f32.mrf.mxu0
  %v1988 = vadd.f32 0.0, %v1987
  %1989 = vdwg.mxu0
  %v1990 = vsel %vm122, %v1886, 0
  %v1993 = vsel %vm122, %v1878, 0
  %1995 = vmatpush.xpose.msra.mxu0 0.0
  %1996 = vmatpush.xpose.msra.mxu0 0.0
  %1997 = vmatpush.xpose.msra.mxu0 0.0
  %1998 = vmatpush.xpose.msra.mxu0 0.0
  %1999 = vmatpush.xpose.msra.mxu0 0.0
  %2000 = vmatpush.xpose.msra.mxu0 0.0
  %2001 = vmatpush.xpose.msra.mxu0 0.0
  %2002 = vmatpush.xpose.msra.mxu0 0.0
  %2003 = vmatpush.xpose.msra.mxu0 0.0
  %2004 = vmatpush.xpose.msra.mxu0 0.0
  %2005 = vmatpush.xpose.msra.mxu0 0.0
  %2006 = vmatpush.xpose.msra.mxu0 0.0
  %2007 = vmatpush.xpose.msra.mxu0 0.0
  %2008 = vmatpush.xpose.msra.mxu0 0.0
  %2009 = vmatpush.xpose.msra.mxu0 0.0
  %2010 = vmatpush.xpose.msra.mxu0 %v1993
  %2011 = vmatmul.f32.gmra.mxu0 %v1990
  %v2012 = vpop.f32.mrf.mxu0
  %v2013 = vadd.f32 0.0, %v2012
  %2014 = vdwg.mxu0
  %v2015 = vsel %vm122, %v1887, 0
  %v2018 = vsel %vm122, %v1879, 0
  %2020 = vmatpush.xpose.msra.mxu0 0.0
  %2021 = vmatpush.xpose.msra.mxu0 0.0
  %2022 = vmatpush.xpose.msra.mxu0 0.0
  %2023 = vmatpush.xpose.msra.mxu0 0.0
  %2024 = vmatpush.xpose.msra.mxu0 0.0
  %2025 = vmatpush.xpose.msra.mxu0 0.0
  %2026 = vmatpush.xpose.msra.mxu0 0.0
  %2027 = vmatpush.xpose.msra.mxu0 0.0
  %2028 = vmatpush.xpose.msra.mxu0 0.0
  %2029 = vmatpush.xpose.msra.mxu0 0.0
  %2030 = vmatpush.xpose.msra.mxu0 0.0
  %2031 = vmatpush.xpose.msra.mxu0 0.0
  %2032 = vmatpush.xpose.msra.mxu0 0.0
  %2033 = vmatpush.xpose.msra.mxu0 0.0
  %2034 = vmatpush.xpose.msra.mxu0 0.0
  %2035 = vmatpush.xpose.msra.mxu0 %v2018
  %2036 = vmatmul.f32.gmra.mxu0 %v2015
  %v2037 = vpop.f32.mrf.mxu0
  %v2038 = vadd.f32 0.0, %v2037
  %2039 = vdwg.mxu0
  %v2040 = vsel %vm122, %v1888, 0
  %v2043 = vsel %vm122, %v1880, 0
  %2045 = vmatpush.xpose.msra.mxu0 0.0
  %2046 = vmatpush.xpose.msra.mxu0 0.0
  %2047 = vmatpush.xpose.msra.mxu0 0.0
  %2048 = vmatpush.xpose.msra.mxu0 0.0
  %2049 = vmatpush.xpose.msra.mxu0 0.0
  %2050 = vmatpush.xpose.msra.mxu0 0.0
  %2051 = vmatpush.xpose.msra.mxu0 0.0
  %2052 = vmatpush.xpose.msra.mxu0 0.0
  %2053 = vmatpush.xpose.msra.mxu0 0.0
  %2054 = vmatpush.xpose.msra.mxu0 0.0
  %2055 = vmatpush.xpose.msra.mxu0 0.0
  %2056 = vmatpush.xpose.msra.mxu0 0.0
  %2057 = vmatpush.xpose.msra.mxu0 0.0
  %2058 = vmatpush.xpose.msra.mxu0 0.0
  %2059 = vmatpush.xpose.msra.mxu0 0.0
  %2060 = vmatpush.xpose.msra.mxu0 %v2043
  %2061 = vmatmul.f32.gmra.mxu0 %v2040
  %v2062 = vpop.f32.mrf.mxu0
  %v2063 = vadd.f32 0.0, %v2062
  %2064 = vdwg.mxu0
  %v2065 = vsel %vm122, %v1889, 0
  %v2068 = vsel %vm122, %v1881, 0
  %2070 = vmatpush.xpose.msra.mxu0 0.0
  %2071 = vmatpush.xpose.msra.mxu0 0.0
  %2072 = vmatpush.xpose.msra.mxu0 0.0
  %2073 = vmatpush.xpose.msra.mxu0 0.0
  %2074 = vmatpush.xpose.msra.mxu0 0.0
  %2075 = vmatpush.xpose.msra.mxu0 0.0
  %2076 = vmatpush.xpose.msra.mxu0 0.0
  %2077 = vmatpush.xpose.msra.mxu0 0.0
  %2078 = vmatpush.xpose.msra.mxu0 0.0
  %2079 = vmatpush.xpose.msra.mxu0 0.0
  %2080 = vmatpush.xpose.msra.mxu0 0.0
  %2081 = vmatpush.xpose.msra.mxu0 0.0
  %2082 = vmatpush.xpose.msra.mxu0 0.0
  %2083 = vmatpush.xpose.msra.mxu0 0.0
  %2084 = vmatpush.xpose.msra.mxu0 0.0
  %2085 = vmatpush.xpose.msra.mxu0 %v2068
  %2086 = vmatmul.f32.gmra.mxu0 %v2065
  %v2087 = vpop.f32.mrf.mxu0
  %v2088 = vadd.f32 0.0, %v2087
  %2089 = vdwg.mxu0
  %2090 = vrot.lane.b32.xlu0 %v1871, 96
  %v2091 = vpop.permute.xlu0 %2090
  %v2100 = vrot.slane %v1938, 7
  %v2101 = vsel %vm452, %v2100, %v1913
  %v2102 = vrot.slane %v1963, 6
  %v2103 = vsel %vm455, %v2102, %v2101
  %v2104 = vrot.slane %v1988, 5
  %v2105 = vsel %vm458, %v2104, %v2103
  %v2106 = vrot.slane %v2013, 4
  %v2107 = vsel %vm461, %v2106, %v2105
  %v2108 = vrot.slane %v2038, 3
  %v2109 = vsel %vm464, %v2108, %v2107
  %v2110 = vrot.slane %v2063, 2
  %v2111 = vsel %vm467, %v2110, %v2109
  %v2112 = vrot.slane %v2088, 1
  %v2113 = vsel %vm470, %v2112, %v2111
  %v2115 = vsel %vm122, %v2091, 0
  %2117 = vmatpush.xpose.msra.mxu0 0.0
  %2118 = vmatpush.xpose.msra.mxu0 0.0
  %2119 = vmatpush.xpose.msra.mxu0 0.0
  %2120 = vmatpush.xpose.msra.mxu0 0.0
  %2121 = vmatpush.xpose.msra.mxu0 0.0
  %2122 = vmatpush.xpose.msra.mxu0 0.0
  %2123 = vmatpush.xpose.msra.mxu0 0.0
  %2124 = vmatpush.xpose.msra.mxu0 0.0
  %2125 = vmatpush.xpose.msra.mxu0 0.0
  %2126 = vmatpush.xpose.msra.mxu0 0.0
  %2127 = vmatpush.xpose.msra.mxu0 0.0
  %2128 = vmatpush.xpose.msra.mxu0 0.0
  %2129 = vmatpush.xpose.msra.mxu0 0.0
  %2130 = vmatpush.xpose.msra.mxu0 0.0
  %2131 = vmatpush.xpose.msra.mxu0 0.0
  %2132 = vmatpush.xpose.msra.mxu0 %v2115
  %2133 = vmatmul.f32.gmra.mxu0 %v1890
  %v2134 = vpop.f32.mrf.mxu0
  %v2135 = vadd.f32 %v2113, %v2134
  %2136 = vdwg.mxu0
  %v2137 = vadd.f32 %v2135, %v193
  %v2138 = vsel %vm496, %v2137, -inf
  %2139 = vmax.xlane.f32.xlu0 %v2138
  %v2140 = vpop.xlane.xlu0 %2139
  %v2141 = vsub.f32 %v2137, %v2140
  %v2142 = vmul.f32 %v2141, 1.442695
  %v2143 = vpow.pop %v2142
  %v2144 = vmul.f32 %v2143, %v191
  %v2145 = vsel %vm496, %v2144, 0.0
  %2146 = vadd.xlane.f32.xlu0 %v2145
  %v2147 = vpop.xlane.xlu0 %2146
  %v2148 = vmax.f32 %v2147, 1e-30
  %v2149 = vrcp.pop %v2148
  %v2150 = vmul.f32 %v2144, %v2149
  %v2152 = vrot.slane %v2150, 1
  %v2153 = vrot.slane %v2150, 2
  %v2154 = vrot.slane %v2150, 3
  %v2155 = vrot.slane %v2150, 4
  %v2156 = vrot.slane %v2150, 5
  %v2157 = vrot.slane %v2150, 6
  %v2158 = vrot.slane %v2150, 7
  %v2159 = vsel %vm496, %v2150, 0
  %2161 = vmatpush.msra.mxu0 0.0
  %2162 = vmatpush.msra.mxu0 0.0
  %2163 = vmatpush.msra.mxu0 0.0
  %2164 = vmatpush.msra.mxu0 0.0
  %2165 = vmatpush.msra.mxu0 0.0
  %2166 = vmatpush.msra.mxu0 0.0
  %2167 = vmatpush.msra.mxu0 0.0
  %2168 = vmatpush.msra.mxu0 0.0
  %2169 = vmatpush.msra.mxu0 0.0
  %2170 = vmatpush.msra.mxu0 0.0
  %2171 = vmatpush.msra.mxu0 0.0
  %2172 = vmatpush.msra.mxu0 0.0
  %2173 = vmatpush.msra.mxu0 0.0
  %2174 = vmatpush.msra.mxu0 0.0
  %2175 = vmatpush.msra.mxu0 0.0
  %2176 = vmatpush.msra.mxu0 %v1874
  %2177 = vmatmul.f32.gmra.mxu0 %v2159
  %v2178 = vpop.f32.mrf.mxu0
  %v2179 = vadd.f32 0.0, %v2178
  %2180 = vdwg.mxu0
  %v2181 = vsel %vm496, %v2152, 0
  %2183 = vmatpush.msra.mxu0 0.0
  %2184 = vmatpush.msra.mxu0 0.0
  %2185 = vmatpush.msra.mxu0 0.0
  %2186 = vmatpush.msra.mxu0 0.0
  %2187 = vmatpush.msra.mxu0 0.0
  %2188 = vmatpush.msra.mxu0 0.0
  %2189 = vmatpush.msra.mxu0 0.0
  %2190 = vmatpush.msra.mxu0 0.0
  %2191 = vmatpush.msra.mxu0 0.0
  %2192 = vmatpush.msra.mxu0 0.0
  %2193 = vmatpush.msra.mxu0 0.0
  %2194 = vmatpush.msra.mxu0 0.0
  %2195 = vmatpush.msra.mxu0 0.0
  %2196 = vmatpush.msra.mxu0 0.0
  %2197 = vmatpush.msra.mxu0 0.0
  %2198 = vmatpush.msra.mxu0 %v1875
  %2199 = vmatmul.f32.gmra.mxu0 %v2181
  %v2200 = vpop.f32.mrf.mxu0
  %v2201 = vadd.f32 0.0, %v2200
  %2202 = vdwg.mxu0
  %v2203 = vsel %vm496, %v2153, 0
  %2205 = vmatpush.msra.mxu0 0.0
  %2206 = vmatpush.msra.mxu0 0.0
  %2207 = vmatpush.msra.mxu0 0.0
  %2208 = vmatpush.msra.mxu0 0.0
  %2209 = vmatpush.msra.mxu0 0.0
  %2210 = vmatpush.msra.mxu0 0.0
  %2211 = vmatpush.msra.mxu0 0.0
  %2212 = vmatpush.msra.mxu0 0.0
  %2213 = vmatpush.msra.mxu0 0.0
  %2214 = vmatpush.msra.mxu0 0.0
  %2215 = vmatpush.msra.mxu0 0.0
  %2216 = vmatpush.msra.mxu0 0.0
  %2217 = vmatpush.msra.mxu0 0.0
  %2218 = vmatpush.msra.mxu0 0.0
  %2219 = vmatpush.msra.mxu0 0.0
  %2220 = vmatpush.msra.mxu0 %v1876
  %2221 = vmatmul.f32.gmra.mxu0 %v2203
  %v2222 = vpop.f32.mrf.mxu0
  %v2223 = vadd.f32 0.0, %v2222
  %2224 = vdwg.mxu0
  %v2225 = vsel %vm496, %v2154, 0
  %2227 = vmatpush.msra.mxu0 0.0
  %2228 = vmatpush.msra.mxu0 0.0
  %2229 = vmatpush.msra.mxu0 0.0
  %2230 = vmatpush.msra.mxu0 0.0
  %2231 = vmatpush.msra.mxu0 0.0
  %2232 = vmatpush.msra.mxu0 0.0
  %2233 = vmatpush.msra.mxu0 0.0
  %2234 = vmatpush.msra.mxu0 0.0
  %2235 = vmatpush.msra.mxu0 0.0
  %2236 = vmatpush.msra.mxu0 0.0
  %2237 = vmatpush.msra.mxu0 0.0
  %2238 = vmatpush.msra.mxu0 0.0
  %2239 = vmatpush.msra.mxu0 0.0
  %2240 = vmatpush.msra.mxu0 0.0
  %2241 = vmatpush.msra.mxu0 0.0
  %2242 = vmatpush.msra.mxu0 %v1877
  %2243 = vmatmul.f32.gmra.mxu0 %v2225
  %v2244 = vpop.f32.mrf.mxu0
  %v2245 = vadd.f32 0.0, %v2244
  %2246 = vdwg.mxu0
  %v2247 = vsel %vm496, %v2155, 0
  %2249 = vmatpush.msra.mxu0 0.0
  %2250 = vmatpush.msra.mxu0 0.0
  %2251 = vmatpush.msra.mxu0 0.0
  %2252 = vmatpush.msra.mxu0 0.0
  %2253 = vmatpush.msra.mxu0 0.0
  %2254 = vmatpush.msra.mxu0 0.0
  %2255 = vmatpush.msra.mxu0 0.0
  %2256 = vmatpush.msra.mxu0 0.0
  %2257 = vmatpush.msra.mxu0 0.0
  %2258 = vmatpush.msra.mxu0 0.0
  %2259 = vmatpush.msra.mxu0 0.0
  %2260 = vmatpush.msra.mxu0 0.0
  %2261 = vmatpush.msra.mxu0 0.0
  %2262 = vmatpush.msra.mxu0 0.0
  %2263 = vmatpush.msra.mxu0 0.0
  %2264 = vmatpush.msra.mxu0 %v1878
  %2265 = vmatmul.f32.gmra.mxu0 %v2247
  %v2266 = vpop.f32.mrf.mxu0
  %v2267 = vadd.f32 0.0, %v2266
  %2268 = vdwg.mxu0
  %v2269 = vsel %vm496, %v2156, 0
  %2271 = vmatpush.msra.mxu0 0.0
  %2272 = vmatpush.msra.mxu0 0.0
  %2273 = vmatpush.msra.mxu0 0.0
  %2274 = vmatpush.msra.mxu0 0.0
  %2275 = vmatpush.msra.mxu0 0.0
  %2276 = vmatpush.msra.mxu0 0.0
  %2277 = vmatpush.msra.mxu0 0.0
  %2278 = vmatpush.msra.mxu0 0.0
  %2279 = vmatpush.msra.mxu0 0.0
  %2280 = vmatpush.msra.mxu0 0.0
  %2281 = vmatpush.msra.mxu0 0.0
  %2282 = vmatpush.msra.mxu0 0.0
  %2283 = vmatpush.msra.mxu0 0.0
  %2284 = vmatpush.msra.mxu0 0.0
  %2285 = vmatpush.msra.mxu0 0.0
  %2286 = vmatpush.msra.mxu0 %v1879
  %2287 = vmatmul.f32.gmra.mxu0 %v2269
  %v2288 = vpop.f32.mrf.mxu0
  %v2289 = vadd.f32 0.0, %v2288
  %2290 = vdwg.mxu0
  %v2291 = vsel %vm496, %v2157, 0
  %2293 = vmatpush.msra.mxu0 0.0
  %2294 = vmatpush.msra.mxu0 0.0
  %2295 = vmatpush.msra.mxu0 0.0
  %2296 = vmatpush.msra.mxu0 0.0
  %2297 = vmatpush.msra.mxu0 0.0
  %2298 = vmatpush.msra.mxu0 0.0
  %2299 = vmatpush.msra.mxu0 0.0
  %2300 = vmatpush.msra.mxu0 0.0
  %2301 = vmatpush.msra.mxu0 0.0
  %2302 = vmatpush.msra.mxu0 0.0
  %2303 = vmatpush.msra.mxu0 0.0
  %2304 = vmatpush.msra.mxu0 0.0
  %2305 = vmatpush.msra.mxu0 0.0
  %2306 = vmatpush.msra.mxu0 0.0
  %2307 = vmatpush.msra.mxu0 0.0
  %2308 = vmatpush.msra.mxu0 %v1880
  %2309 = vmatmul.f32.gmra.mxu0 %v2291
  %v2310 = vpop.f32.mrf.mxu0
  %v2311 = vadd.f32 0.0, %v2310
  %2312 = vdwg.mxu0
  %v2313 = vsel %vm496, %v2158, 0
  %2315 = vmatpush.msra.mxu0 0.0
  %2316 = vmatpush.msra.mxu0 0.0
  %2317 = vmatpush.msra.mxu0 0.0
  %2318 = vmatpush.msra.mxu0 0.0
  %2319 = vmatpush.msra.mxu0 0.0
  %2320 = vmatpush.msra.mxu0 0.0
  %2321 = vmatpush.msra.mxu0 0.0
  %2322 = vmatpush.msra.mxu0 0.0
  %2323 = vmatpush.msra.mxu0 0.0
  %2324 = vmatpush.msra.mxu0 0.0
  %2325 = vmatpush.msra.mxu0 0.0
  %2326 = vmatpush.msra.mxu0 0.0
  %2327 = vmatpush.msra.mxu0 0.0
  %2328 = vmatpush.msra.mxu0 0.0
  %2329 = vmatpush.msra.mxu0 0.0
  %2330 = vmatpush.msra.mxu0 %v1881
  %2331 = vmatmul.f32.gmra.mxu0 %v2313
  %v2332 = vpop.f32.mrf.mxu0
  %v2333 = vadd.f32 0.0, %v2332
  %2334 = vdwg.mxu0
  %2335 = vrot.lane.b32.xlu0 %v1871, 64
  %v2336 = vpop.permute.xlu0 %2335
  %v2346 = vrot.slane %v2201, 7
  %v2347 = vsel %vm452, %v2346, %v2179
  %v2348 = vrot.slane %v2223, 6
  %v2349 = vsel %vm455, %v2348, %v2347
  %v2350 = vrot.slane %v2245, 5
  %v2351 = vsel %vm458, %v2350, %v2349
  %v2352 = vrot.slane %v2267, 4
  %v2353 = vsel %vm461, %v2352, %v2351
  %v2354 = vrot.slane %v2289, 3
  %v2355 = vsel %vm464, %v2354, %v2353
  %v2356 = vrot.slane %v2311, 2
  %v2357 = vsel %vm467, %v2356, %v2355
  %v2358 = vrot.slane %v2333, 1
  %v2359 = vsel %vm470, %v2358, %v2357
  %2361 = vmatpush.msra.mxu0 0.0
  %2362 = vmatpush.msra.mxu0 0.0
  %2363 = vmatpush.msra.mxu0 0.0
  %2364 = vmatpush.msra.mxu0 0.0
  %2365 = vmatpush.msra.mxu0 0.0
  %2366 = vmatpush.msra.mxu0 0.0
  %2367 = vmatpush.msra.mxu0 0.0
  %2368 = vmatpush.msra.mxu0 0.0
  %2369 = vmatpush.msra.mxu0 0.0
  %2370 = vmatpush.msra.mxu0 0.0
  %2371 = vmatpush.msra.mxu0 0.0
  %2372 = vmatpush.msra.mxu0 0.0
  %2373 = vmatpush.msra.mxu0 0.0
  %2374 = vmatpush.msra.mxu0 0.0
  %2375 = vmatpush.msra.mxu0 0.0
  %2376 = vmatpush.msra.mxu0 %v2336
  %2377 = vmatmul.f32.gmra.mxu0 %v2159
  %v2378 = vpop.f32.mrf.mxu0
  %v2379 = vadd.f32 %v2359, %v2378
  %2380 = vdwg.mxu0
  %2381 = vrot.lane.b32.xlu0 %v1871, 32
  %v2382 = vpop.permute.xlu0 %2381
  %v2384 = vadd.f32 %v2379, %v2382
  %v2385 = vmax.f32 %v2384, 0.0
  %v2386 = vadd.f32 %v1839, %v2385
  %s2387 = scalar_lea.vmem %s9, 128
  %v2388 = vld [vmem:[%s2387] sm:$0xff]
  %v2389 = vld [vmem:[%s2387 + $0x8] sm:$0xff]
  %v2390 = vld [vmem:[%s2387 + $0x10] sm:$0xff]
  %v2391 = vld [vmem:[%s2387 + $0x18] sm:$0xff]
  %s2392 = scalar_lea.vmem %s10, 4
  %v2393 = vld [vmem:[%s2392] sm:$0x1]
  %v2395 = vperm.slane %v2393, 0
  %v2398 = vsel %vm122, %v2386, 0
  %2400 = vmatpush.msra.mxu0 0.0
  %2401 = vmatpush.msra.mxu0 0.0
  %2402 = vmatpush.msra.mxu0 0.0
  %2403 = vmatpush.msra.mxu0 0.0
  %2404 = vmatpush.msra.mxu0 0.0
  %2405 = vmatpush.msra.mxu0 0.0
  %2406 = vmatpush.msra.mxu0 0.0
  %2407 = vmatpush.msra.mxu0 0.0
  %2408 = vmatpush.msra.mxu0 0.0
  %2409 = vmatpush.msra.mxu0 0.0
  %2410 = vmatpush.msra.mxu0 0.0
  %2411 = vmatpush.msra.mxu0 0.0
  %2412 = vmatpush.msra.mxu0 %v2391
  %2413 = vmatpush.msra.mxu0 %v2390
  %2414 = vmatpush.msra.mxu0 %v2389
  %2415 = vmatpush.msra.mxu0 %v2388
  %2416 = vmatmul.f32.gmra.mxu0 %v2398
  %v2417 = vpop.f32.mrf.mxu0
  %v2418 = vadd.f32 %v2395, %v2417
  %2419 = vdwg.mxu0
  %s2420 = scalar_lea.vmem %s11, 256
  %v2421 = vld [vmem:[%s2420] sm:$0xff]
  %v2422 = vld [vmem:[%s2420 + $0x8] sm:$0xff]
  %v2423 = vld [vmem:[%s2420 + $0x10] sm:$0xff]
  %v2424 = vld [vmem:[%s2420 + $0x18] sm:$0xff]
  %v2425 = vld [vmem:[%s2420 + $0x20] sm:$0xff]
  %v2426 = vld [vmem:[%s2420 + $0x28] sm:$0xff]
  %v2427 = vld [vmem:[%s2420 + $0x30] sm:$0xff]
  %v2428 = vld [vmem:[%s2420 + $0x38] sm:$0xff]
  %v2430 = vrot.slane %v2418, 1
  %v2431 = vrot.slane %v2418, 2
  %v2432 = vrot.slane %v2418, 3
  %v2433 = vrot.slane %v2418, 4
  %v2434 = vrot.slane %v2418, 5
  %v2435 = vrot.slane %v2418, 6
  %v2436 = vrot.slane %v2418, 7
  %v2437 = vsel %vm122, %v2418, 0
  %v2440 = vsel %vm122, %v2421, 0
  %2442 = vmatpush.xpose.msra.mxu0 0.0
  %2443 = vmatpush.xpose.msra.mxu0 0.0
  %2444 = vmatpush.xpose.msra.mxu0 0.0
  %2445 = vmatpush.xpose.msra.mxu0 0.0
  %2446 = vmatpush.xpose.msra.mxu0 0.0
  %2447 = vmatpush.xpose.msra.mxu0 0.0
  %2448 = vmatpush.xpose.msra.mxu0 0.0
  %2449 = vmatpush.xpose.msra.mxu0 0.0
  %2450 = vmatpush.xpose.msra.mxu0 0.0
  %2451 = vmatpush.xpose.msra.mxu0 0.0
  %2452 = vmatpush.xpose.msra.mxu0 0.0
  %2453 = vmatpush.xpose.msra.mxu0 0.0
  %2454 = vmatpush.xpose.msra.mxu0 0.0
  %2455 = vmatpush.xpose.msra.mxu0 0.0
  %2456 = vmatpush.xpose.msra.mxu0 0.0
  %2457 = vmatpush.xpose.msra.mxu0 %v2440
  %2458 = vmatmul.f32.gmra.mxu0 %v2437
  %v2459 = vpop.f32.mrf.mxu0
  %v2460 = vadd.f32 0.0, %v2459
  %2461 = vdwg.mxu0
  %v2462 = vsel %vm122, %v2430, 0
  %v2465 = vsel %vm122, %v2422, 0
  %2467 = vmatpush.xpose.msra.mxu0 0.0
  %2468 = vmatpush.xpose.msra.mxu0 0.0
  %2469 = vmatpush.xpose.msra.mxu0 0.0
  %2470 = vmatpush.xpose.msra.mxu0 0.0
  %2471 = vmatpush.xpose.msra.mxu0 0.0
  %2472 = vmatpush.xpose.msra.mxu0 0.0
  %2473 = vmatpush.xpose.msra.mxu0 0.0
  %2474 = vmatpush.xpose.msra.mxu0 0.0
  %2475 = vmatpush.xpose.msra.mxu0 0.0
  %2476 = vmatpush.xpose.msra.mxu0 0.0
  %2477 = vmatpush.xpose.msra.mxu0 0.0
  %2478 = vmatpush.xpose.msra.mxu0 0.0
  %2479 = vmatpush.xpose.msra.mxu0 0.0
  %2480 = vmatpush.xpose.msra.mxu0 0.0
  %2481 = vmatpush.xpose.msra.mxu0 0.0
  %2482 = vmatpush.xpose.msra.mxu0 %v2465
  %2483 = vmatmul.f32.gmra.mxu0 %v2462
  %v2484 = vpop.f32.mrf.mxu0
  %v2485 = vadd.f32 0.0, %v2484
  %2486 = vdwg.mxu0
  %v2487 = vsel %vm122, %v2431, 0
  %v2490 = vsel %vm122, %v2423, 0
  %2492 = vmatpush.xpose.msra.mxu0 0.0
  %2493 = vmatpush.xpose.msra.mxu0 0.0
  %2494 = vmatpush.xpose.msra.mxu0 0.0
  %2495 = vmatpush.xpose.msra.mxu0 0.0
  %2496 = vmatpush.xpose.msra.mxu0 0.0
  %2497 = vmatpush.xpose.msra.mxu0 0.0
  %2498 = vmatpush.xpose.msra.mxu0 0.0
  %2499 = vmatpush.xpose.msra.mxu0 0.0
  %2500 = vmatpush.xpose.msra.mxu0 0.0
  %2501 = vmatpush.xpose.msra.mxu0 0.0
  %2502 = vmatpush.xpose.msra.mxu0 0.0
  %2503 = vmatpush.xpose.msra.mxu0 0.0
  %2504 = vmatpush.xpose.msra.mxu0 0.0
  %2505 = vmatpush.xpose.msra.mxu0 0.0
  %2506 = vmatpush.xpose.msra.mxu0 0.0
  %2507 = vmatpush.xpose.msra.mxu0 %v2490
  %2508 = vmatmul.f32.gmra.mxu0 %v2487
  %v2509 = vpop.f32.mrf.mxu0
  %v2510 = vadd.f32 0.0, %v2509
  %2511 = vdwg.mxu0
  %v2512 = vsel %vm122, %v2432, 0
  %v2515 = vsel %vm122, %v2424, 0
  %2517 = vmatpush.xpose.msra.mxu0 0.0
  %2518 = vmatpush.xpose.msra.mxu0 0.0
  %2519 = vmatpush.xpose.msra.mxu0 0.0
  %2520 = vmatpush.xpose.msra.mxu0 0.0
  %2521 = vmatpush.xpose.msra.mxu0 0.0
  %2522 = vmatpush.xpose.msra.mxu0 0.0
  %2523 = vmatpush.xpose.msra.mxu0 0.0
  %2524 = vmatpush.xpose.msra.mxu0 0.0
  %2525 = vmatpush.xpose.msra.mxu0 0.0
  %2526 = vmatpush.xpose.msra.mxu0 0.0
  %2527 = vmatpush.xpose.msra.mxu0 0.0
  %2528 = vmatpush.xpose.msra.mxu0 0.0
  %2529 = vmatpush.xpose.msra.mxu0 0.0
  %2530 = vmatpush.xpose.msra.mxu0 0.0
  %2531 = vmatpush.xpose.msra.mxu0 0.0
  %2532 = vmatpush.xpose.msra.mxu0 %v2515
  %2533 = vmatmul.f32.gmra.mxu0 %v2512
  %v2534 = vpop.f32.mrf.mxu0
  %v2535 = vadd.f32 0.0, %v2534
  %2536 = vdwg.mxu0
  %v2537 = vsel %vm122, %v2433, 0
  %v2540 = vsel %vm122, %v2425, 0
  %2542 = vmatpush.xpose.msra.mxu0 0.0
  %2543 = vmatpush.xpose.msra.mxu0 0.0
  %2544 = vmatpush.xpose.msra.mxu0 0.0
  %2545 = vmatpush.xpose.msra.mxu0 0.0
  %2546 = vmatpush.xpose.msra.mxu0 0.0
  %2547 = vmatpush.xpose.msra.mxu0 0.0
  %2548 = vmatpush.xpose.msra.mxu0 0.0
  %2549 = vmatpush.xpose.msra.mxu0 0.0
  %2550 = vmatpush.xpose.msra.mxu0 0.0
  %2551 = vmatpush.xpose.msra.mxu0 0.0
  %2552 = vmatpush.xpose.msra.mxu0 0.0
  %2553 = vmatpush.xpose.msra.mxu0 0.0
  %2554 = vmatpush.xpose.msra.mxu0 0.0
  %2555 = vmatpush.xpose.msra.mxu0 0.0
  %2556 = vmatpush.xpose.msra.mxu0 0.0
  %2557 = vmatpush.xpose.msra.mxu0 %v2540
  %2558 = vmatmul.f32.gmra.mxu0 %v2537
  %v2559 = vpop.f32.mrf.mxu0
  %v2560 = vadd.f32 0.0, %v2559
  %2561 = vdwg.mxu0
  %v2562 = vsel %vm122, %v2434, 0
  %v2565 = vsel %vm122, %v2426, 0
  %2567 = vmatpush.xpose.msra.mxu0 0.0
  %2568 = vmatpush.xpose.msra.mxu0 0.0
  %2569 = vmatpush.xpose.msra.mxu0 0.0
  %2570 = vmatpush.xpose.msra.mxu0 0.0
  %2571 = vmatpush.xpose.msra.mxu0 0.0
  %2572 = vmatpush.xpose.msra.mxu0 0.0
  %2573 = vmatpush.xpose.msra.mxu0 0.0
  %2574 = vmatpush.xpose.msra.mxu0 0.0
  %2575 = vmatpush.xpose.msra.mxu0 0.0
  %2576 = vmatpush.xpose.msra.mxu0 0.0
  %2577 = vmatpush.xpose.msra.mxu0 0.0
  %2578 = vmatpush.xpose.msra.mxu0 0.0
  %2579 = vmatpush.xpose.msra.mxu0 0.0
  %2580 = vmatpush.xpose.msra.mxu0 0.0
  %2581 = vmatpush.xpose.msra.mxu0 0.0
  %2582 = vmatpush.xpose.msra.mxu0 %v2565
  %2583 = vmatmul.f32.gmra.mxu0 %v2562
  %v2584 = vpop.f32.mrf.mxu0
  %v2585 = vadd.f32 0.0, %v2584
  %2586 = vdwg.mxu0
  %v2587 = vsel %vm122, %v2435, 0
  %v2590 = vsel %vm122, %v2427, 0
  %2592 = vmatpush.xpose.msra.mxu0 0.0
  %2593 = vmatpush.xpose.msra.mxu0 0.0
  %2594 = vmatpush.xpose.msra.mxu0 0.0
  %2595 = vmatpush.xpose.msra.mxu0 0.0
  %2596 = vmatpush.xpose.msra.mxu0 0.0
  %2597 = vmatpush.xpose.msra.mxu0 0.0
  %2598 = vmatpush.xpose.msra.mxu0 0.0
  %2599 = vmatpush.xpose.msra.mxu0 0.0
  %2600 = vmatpush.xpose.msra.mxu0 0.0
  %2601 = vmatpush.xpose.msra.mxu0 0.0
  %2602 = vmatpush.xpose.msra.mxu0 0.0
  %2603 = vmatpush.xpose.msra.mxu0 0.0
  %2604 = vmatpush.xpose.msra.mxu0 0.0
  %2605 = vmatpush.xpose.msra.mxu0 0.0
  %2606 = vmatpush.xpose.msra.mxu0 0.0
  %2607 = vmatpush.xpose.msra.mxu0 %v2590
  %2608 = vmatmul.f32.gmra.mxu0 %v2587
  %v2609 = vpop.f32.mrf.mxu0
  %v2610 = vadd.f32 0.0, %v2609
  %2611 = vdwg.mxu0
  %v2612 = vsel %vm122, %v2436, 0
  %v2615 = vsel %vm122, %v2428, 0
  %2617 = vmatpush.xpose.msra.mxu0 0.0
  %2618 = vmatpush.xpose.msra.mxu0 0.0
  %2619 = vmatpush.xpose.msra.mxu0 0.0
  %2620 = vmatpush.xpose.msra.mxu0 0.0
  %2621 = vmatpush.xpose.msra.mxu0 0.0
  %2622 = vmatpush.xpose.msra.mxu0 0.0
  %2623 = vmatpush.xpose.msra.mxu0 0.0
  %2624 = vmatpush.xpose.msra.mxu0 0.0
  %2625 = vmatpush.xpose.msra.mxu0 0.0
  %2626 = vmatpush.xpose.msra.mxu0 0.0
  %2627 = vmatpush.xpose.msra.mxu0 0.0
  %2628 = vmatpush.xpose.msra.mxu0 0.0
  %2629 = vmatpush.xpose.msra.mxu0 0.0
  %2630 = vmatpush.xpose.msra.mxu0 0.0
  %2631 = vmatpush.xpose.msra.mxu0 0.0
  %2632 = vmatpush.xpose.msra.mxu0 %v2615
  %2633 = vmatmul.f32.gmra.mxu0 %v2612
  %v2634 = vpop.f32.mrf.mxu0
  %v2635 = vadd.f32 0.0, %v2634
  %2636 = vdwg.mxu0
  %2637 = vrot.lane.b32.xlu0 %v2418, 96
  %v2638 = vpop.permute.xlu0 %2637
  %v2647 = vrot.slane %v2485, 7
  %v2648 = vsel %vm452, %v2647, %v2460
  %v2649 = vrot.slane %v2510, 6
  %v2650 = vsel %vm455, %v2649, %v2648
  %v2651 = vrot.slane %v2535, 5
  %v2652 = vsel %vm458, %v2651, %v2650
  %v2653 = vrot.slane %v2560, 4
  %v2654 = vsel %vm461, %v2653, %v2652
  %v2655 = vrot.slane %v2585, 3
  %v2656 = vsel %vm464, %v2655, %v2654
  %v2657 = vrot.slane %v2610, 2
  %v2658 = vsel %vm467, %v2657, %v2656
  %v2659 = vrot.slane %v2635, 1
  %v2660 = vsel %vm470, %v2659, %v2658
  %v2662 = vsel %vm122, %v2638, 0
  %2664 = vmatpush.xpose.msra.mxu0 0.0
  %2665 = vmatpush.xpose.msra.mxu0 0.0
  %2666 = vmatpush.xpose.msra.mxu0 0.0
  %2667 = vmatpush.xpose.msra.mxu0 0.0
  %2668 = vmatpush.xpose.msra.mxu0 0.0
  %2669 = vmatpush.xpose.msra.mxu0 0.0
  %2670 = vmatpush.xpose.msra.mxu0 0.0
  %2671 = vmatpush.xpose.msra.mxu0 0.0
  %2672 = vmatpush.xpose.msra.mxu0 0.0
  %2673 = vmatpush.xpose.msra.mxu0 0.0
  %2674 = vmatpush.xpose.msra.mxu0 0.0
  %2675 = vmatpush.xpose.msra.mxu0 0.0
  %2676 = vmatpush.xpose.msra.mxu0 0.0
  %2677 = vmatpush.xpose.msra.mxu0 0.0
  %2678 = vmatpush.xpose.msra.mxu0 0.0
  %2679 = vmatpush.xpose.msra.mxu0 %v2662
  %2680 = vmatmul.f32.gmra.mxu0 %v2437
  %v2681 = vpop.f32.mrf.mxu0
  %v2682 = vadd.f32 %v2660, %v2681
  %2683 = vdwg.mxu0
  %v2684 = vadd.f32 %v2682, %v193
  %v2685 = vsel %vm496, %v2684, -inf
  %2686 = vmax.xlane.f32.xlu0 %v2685
  %v2687 = vpop.xlane.xlu0 %2686
  %v2688 = vsub.f32 %v2684, %v2687
  %v2689 = vmul.f32 %v2688, 1.442695
  %v2690 = vpow.pop %v2689
  %v2691 = vmul.f32 %v2690, %v191
  %v2692 = vsel %vm496, %v2691, 0.0
  %2693 = vadd.xlane.f32.xlu0 %v2692
  %v2694 = vpop.xlane.xlu0 %2693
  %v2695 = vmax.f32 %v2694, 1e-30
  %v2696 = vrcp.pop %v2695
  %v2697 = vmul.f32 %v2691, %v2696
  %v2699 = vrot.slane %v2697, 1
  %v2700 = vrot.slane %v2697, 2
  %v2701 = vrot.slane %v2697, 3
  %v2702 = vrot.slane %v2697, 4
  %v2703 = vrot.slane %v2697, 5
  %v2704 = vrot.slane %v2697, 6
  %v2705 = vrot.slane %v2697, 7
  %v2706 = vsel %vm496, %v2697, 0
  %2708 = vmatpush.msra.mxu0 0.0
  %2709 = vmatpush.msra.mxu0 0.0
  %2710 = vmatpush.msra.mxu0 0.0
  %2711 = vmatpush.msra.mxu0 0.0
  %2712 = vmatpush.msra.mxu0 0.0
  %2713 = vmatpush.msra.mxu0 0.0
  %2714 = vmatpush.msra.mxu0 0.0
  %2715 = vmatpush.msra.mxu0 0.0
  %2716 = vmatpush.msra.mxu0 0.0
  %2717 = vmatpush.msra.mxu0 0.0
  %2718 = vmatpush.msra.mxu0 0.0
  %2719 = vmatpush.msra.mxu0 0.0
  %2720 = vmatpush.msra.mxu0 0.0
  %2721 = vmatpush.msra.mxu0 0.0
  %2722 = vmatpush.msra.mxu0 0.0
  %2723 = vmatpush.msra.mxu0 %v2421
  %2724 = vmatmul.f32.gmra.mxu0 %v2706
  %v2725 = vpop.f32.mrf.mxu0
  %v2726 = vadd.f32 0.0, %v2725
  %2727 = vdwg.mxu0
  %v2728 = vsel %vm496, %v2699, 0
  %2730 = vmatpush.msra.mxu0 0.0
  %2731 = vmatpush.msra.mxu0 0.0
  %2732 = vmatpush.msra.mxu0 0.0
  %2733 = vmatpush.msra.mxu0 0.0
  %2734 = vmatpush.msra.mxu0 0.0
  %2735 = vmatpush.msra.mxu0 0.0
  %2736 = vmatpush.msra.mxu0 0.0
  %2737 = vmatpush.msra.mxu0 0.0
  %2738 = vmatpush.msra.mxu0 0.0
  %2739 = vmatpush.msra.mxu0 0.0
  %2740 = vmatpush.msra.mxu0 0.0
  %2741 = vmatpush.msra.mxu0 0.0
  %2742 = vmatpush.msra.mxu0 0.0
  %2743 = vmatpush.msra.mxu0 0.0
  %2744 = vmatpush.msra.mxu0 0.0
  %2745 = vmatpush.msra.mxu0 %v2422
  %2746 = vmatmul.f32.gmra.mxu0 %v2728
  %v2747 = vpop.f32.mrf.mxu0
  %v2748 = vadd.f32 0.0, %v2747
  %2749 = vdwg.mxu0
  %v2750 = vsel %vm496, %v2700, 0
  %2752 = vmatpush.msra.mxu0 0.0
  %2753 = vmatpush.msra.mxu0 0.0
  %2754 = vmatpush.msra.mxu0 0.0
  %2755 = vmatpush.msra.mxu0 0.0
  %2756 = vmatpush.msra.mxu0 0.0
  %2757 = vmatpush.msra.mxu0 0.0
  %2758 = vmatpush.msra.mxu0 0.0
  %2759 = vmatpush.msra.mxu0 0.0
  %2760 = vmatpush.msra.mxu0 0.0
  %2761 = vmatpush.msra.mxu0 0.0
  %2762 = vmatpush.msra.mxu0 0.0
  %2763 = vmatpush.msra.mxu0 0.0
  %2764 = vmatpush.msra.mxu0 0.0
  %2765 = vmatpush.msra.mxu0 0.0
  %2766 = vmatpush.msra.mxu0 0.0
  %2767 = vmatpush.msra.mxu0 %v2423
  %2768 = vmatmul.f32.gmra.mxu0 %v2750
  %v2769 = vpop.f32.mrf.mxu0
  %v2770 = vadd.f32 0.0, %v2769
  %2771 = vdwg.mxu0
  %v2772 = vsel %vm496, %v2701, 0
  %2774 = vmatpush.msra.mxu0 0.0
  %2775 = vmatpush.msra.mxu0 0.0
  %2776 = vmatpush.msra.mxu0 0.0
  %2777 = vmatpush.msra.mxu0 0.0
  %2778 = vmatpush.msra.mxu0 0.0
  %2779 = vmatpush.msra.mxu0 0.0
  %2780 = vmatpush.msra.mxu0 0.0
  %2781 = vmatpush.msra.mxu0 0.0
  %2782 = vmatpush.msra.mxu0 0.0
  %2783 = vmatpush.msra.mxu0 0.0
  %2784 = vmatpush.msra.mxu0 0.0
  %2785 = vmatpush.msra.mxu0 0.0
  %2786 = vmatpush.msra.mxu0 0.0
  %2787 = vmatpush.msra.mxu0 0.0
  %2788 = vmatpush.msra.mxu0 0.0
  %2789 = vmatpush.msra.mxu0 %v2424
  %2790 = vmatmul.f32.gmra.mxu0 %v2772
  %v2791 = vpop.f32.mrf.mxu0
  %v2792 = vadd.f32 0.0, %v2791
  %2793 = vdwg.mxu0
  %v2794 = vsel %vm496, %v2702, 0
  %2796 = vmatpush.msra.mxu0 0.0
  %2797 = vmatpush.msra.mxu0 0.0
  %2798 = vmatpush.msra.mxu0 0.0
  %2799 = vmatpush.msra.mxu0 0.0
  %2800 = vmatpush.msra.mxu0 0.0
  %2801 = vmatpush.msra.mxu0 0.0
  %2802 = vmatpush.msra.mxu0 0.0
  %2803 = vmatpush.msra.mxu0 0.0
  %2804 = vmatpush.msra.mxu0 0.0
  %2805 = vmatpush.msra.mxu0 0.0
  %2806 = vmatpush.msra.mxu0 0.0
  %2807 = vmatpush.msra.mxu0 0.0
  %2808 = vmatpush.msra.mxu0 0.0
  %2809 = vmatpush.msra.mxu0 0.0
  %2810 = vmatpush.msra.mxu0 0.0
  %2811 = vmatpush.msra.mxu0 %v2425
  %2812 = vmatmul.f32.gmra.mxu0 %v2794
  %v2813 = vpop.f32.mrf.mxu0
  %v2814 = vadd.f32 0.0, %v2813
  %2815 = vdwg.mxu0
  %v2816 = vsel %vm496, %v2703, 0
  %2818 = vmatpush.msra.mxu0 0.0
  %2819 = vmatpush.msra.mxu0 0.0
  %2820 = vmatpush.msra.mxu0 0.0
  %2821 = vmatpush.msra.mxu0 0.0
  %2822 = vmatpush.msra.mxu0 0.0
  %2823 = vmatpush.msra.mxu0 0.0
  %2824 = vmatpush.msra.mxu0 0.0
  %2825 = vmatpush.msra.mxu0 0.0
  %2826 = vmatpush.msra.mxu0 0.0
  %2827 = vmatpush.msra.mxu0 0.0
  %2828 = vmatpush.msra.mxu0 0.0
  %2829 = vmatpush.msra.mxu0 0.0
  %2830 = vmatpush.msra.mxu0 0.0
  %2831 = vmatpush.msra.mxu0 0.0
  %2832 = vmatpush.msra.mxu0 0.0
  %2833 = vmatpush.msra.mxu0 %v2426
  %2834 = vmatmul.f32.gmra.mxu0 %v2816
  %v2835 = vpop.f32.mrf.mxu0
  %v2836 = vadd.f32 0.0, %v2835
  %2837 = vdwg.mxu0
  %v2838 = vsel %vm496, %v2704, 0
  %2840 = vmatpush.msra.mxu0 0.0
  %2841 = vmatpush.msra.mxu0 0.0
  %2842 = vmatpush.msra.mxu0 0.0
  %2843 = vmatpush.msra.mxu0 0.0
  %2844 = vmatpush.msra.mxu0 0.0
  %2845 = vmatpush.msra.mxu0 0.0
  %2846 = vmatpush.msra.mxu0 0.0
  %2847 = vmatpush.msra.mxu0 0.0
  %2848 = vmatpush.msra.mxu0 0.0
  %2849 = vmatpush.msra.mxu0 0.0
  %2850 = vmatpush.msra.mxu0 0.0
  %2851 = vmatpush.msra.mxu0 0.0
  %2852 = vmatpush.msra.mxu0 0.0
  %2853 = vmatpush.msra.mxu0 0.0
  %2854 = vmatpush.msra.mxu0 0.0
  %2855 = vmatpush.msra.mxu0 %v2427
  %2856 = vmatmul.f32.gmra.mxu0 %v2838
  %v2857 = vpop.f32.mrf.mxu0
  %v2858 = vadd.f32 0.0, %v2857
  %2859 = vdwg.mxu0
  %v2860 = vsel %vm496, %v2705, 0
  %2862 = vmatpush.msra.mxu0 0.0
  %2863 = vmatpush.msra.mxu0 0.0
  %2864 = vmatpush.msra.mxu0 0.0
  %2865 = vmatpush.msra.mxu0 0.0
  %2866 = vmatpush.msra.mxu0 0.0
  %2867 = vmatpush.msra.mxu0 0.0
  %2868 = vmatpush.msra.mxu0 0.0
  %2869 = vmatpush.msra.mxu0 0.0
  %2870 = vmatpush.msra.mxu0 0.0
  %2871 = vmatpush.msra.mxu0 0.0
  %2872 = vmatpush.msra.mxu0 0.0
  %2873 = vmatpush.msra.mxu0 0.0
  %2874 = vmatpush.msra.mxu0 0.0
  %2875 = vmatpush.msra.mxu0 0.0
  %2876 = vmatpush.msra.mxu0 0.0
  %2877 = vmatpush.msra.mxu0 %v2428
  %2878 = vmatmul.f32.gmra.mxu0 %v2860
  %v2879 = vpop.f32.mrf.mxu0
  %v2880 = vadd.f32 0.0, %v2879
  %2881 = vdwg.mxu0
  %2882 = vrot.lane.b32.xlu0 %v2418, 64
  %v2883 = vpop.permute.xlu0 %2882
  %v2893 = vrot.slane %v2748, 7
  %v2894 = vsel %vm452, %v2893, %v2726
  %v2895 = vrot.slane %v2770, 6
  %v2896 = vsel %vm455, %v2895, %v2894
  %v2897 = vrot.slane %v2792, 5
  %v2898 = vsel %vm458, %v2897, %v2896
  %v2899 = vrot.slane %v2814, 4
  %v2900 = vsel %vm461, %v2899, %v2898
  %v2901 = vrot.slane %v2836, 3
  %v2902 = vsel %vm464, %v2901, %v2900
  %v2903 = vrot.slane %v2858, 2
  %v2904 = vsel %vm467, %v2903, %v2902
  %v2905 = vrot.slane %v2880, 1
  %v2906 = vsel %vm470, %v2905, %v2904
  %2908 = vmatpush.msra.mxu0 0.0
  %2909 = vmatpush.msra.mxu0 0.0
  %2910 = vmatpush.msra.mxu0 0.0
  %2911 = vmatpush.msra.mxu0 0.0
  %2912 = vmatpush.msra.mxu0 0.0
  %2913 = vmatpush.msra.mxu0 0.0
  %2914 = vmatpush.msra.mxu0 0.0
  %2915 = vmatpush.msra.mxu0 0.0
  %2916 = vmatpush.msra.mxu0 0.0
  %2917 = vmatpush.msra.mxu0 0.0
  %2918 = vmatpush.msra.mxu0 0.0
  %2919 = vmatpush.msra.mxu0 0.0
  %2920 = vmatpush.msra.mxu0 0.0
  %2921 = vmatpush.msra.mxu0 0.0
  %2922 = vmatpush.msra.mxu0 0.0
  %2923 = vmatpush.msra.mxu0 %v2883
  %2924 = vmatmul.f32.gmra.mxu0 %v2706
  %v2925 = vpop.f32.mrf.mxu0
  %v2926 = vadd.f32 %v2906, %v2925
  %2927 = vdwg.mxu0
  %2928 = vrot.lane.b32.xlu0 %v2418, 32
  %v2929 = vpop.permute.xlu0 %2928
  %v2931 = vadd.f32 %v2926, %v2929
  %v2932 = vmax.f32 %v2931, 0.0
  %v2933 = vadd.f32 %v2386, %v2932
  %v2934 = vld [vmem:[%s13] sm:$0xff]
  %v2935 = vld [vmem:[%s13 + $0x8] sm:$0xff]
  %v2936 = vld [vmem:[%s13 + $0x10] sm:$0xff]
  %v2937 = vld [vmem:[%s13 + $0x18] sm:$0xff]
  %v2938 = vld [vmem:[%s14] sm:$0x1]
  %v2940 = vperm.slane %v2938, 0
  %v2943 = vsel %vm122, %v2933, 0
  %2945 = vmatpush.msra.mxu0 0.0
  %2946 = vmatpush.msra.mxu0 0.0
  %2947 = vmatpush.msra.mxu0 0.0
  %2948 = vmatpush.msra.mxu0 0.0
  %2949 = vmatpush.msra.mxu0 0.0
  %2950 = vmatpush.msra.mxu0 0.0
  %2951 = vmatpush.msra.mxu0 0.0
  %2952 = vmatpush.msra.mxu0 0.0
  %2953 = vmatpush.msra.mxu0 0.0
  %2954 = vmatpush.msra.mxu0 0.0
  %2955 = vmatpush.msra.mxu0 0.0
  %2956 = vmatpush.msra.mxu0 0.0
  %2957 = vmatpush.msra.mxu0 %v2937
  %2958 = vmatpush.msra.mxu0 %v2936
  %2959 = vmatpush.msra.mxu0 %v2935
  %2960 = vmatpush.msra.mxu0 %v2934
  %2961 = vmatmul.f32.gmra.mxu0 %v2943
  %v2962 = vpop.f32.mrf.mxu0
  %v2963 = vadd.f32 %v2940, %v2962
  %2964 = vdwg.mxu0
  %2965 = vst [vmem:[%s15] sm:$0xff] %v2963
  // Predicated region
  $region62: #{transformer_gnn_forward.1} parent=0 // pred_check
    _
  $region63: #{transformer_gnn_forward.1} parent=0 // pred_check_branch
    %2967 = sbr.rel (0) target = $region65
  $region64: #{transformer_gnn_forward.1} parent=0 // pred_region
    _
  $region65: #{transformer_gnn_forward.1} parent=0 // pred_fallthru
    _
  // Predicated region
  $region66: #{transformer_gnn_forward.1} parent=0 // pred_check
    _
  $region67: #{transformer_gnn_forward.1} parent=0 // pred_check_branch
    %2969 = sbr.rel (0) target = $region69
  $region68: #{transformer_gnn_forward.1} parent=0 // pred_region
    _
  $region69: #{transformer_gnn_forward.1} parent=0 // pred_fallthru
    _

</llo_original>
